<compile_context>
chip_gen: v7x
topology: tpu7x:2x2x1
jax: 0.10.0
libtpu: 0.0.40
codegen_flags: <defaults>
</compile_context>

<pallas_src>
import math
import functools

import jax
import jax.numpy as jnp
from jax import lax
from jax.experimental import pallas as pl
from jax.experimental.pallas import tpu as pltpu

NUM_HIDDENS = 32
NUM_HEADS = 4
FFN_HIDDENS = 64
EPS = 1e-5
MASK_VALUE = -1e6  # d2l masked_softmax replaces masked scores with -1e6

# Order must match the kernel signature below.
WEIGHT_NAMES = ('wq1', 'wk1', 'wv1', 'wo1', 'ln1_g', 'ln1_b',
                'wq2', 'wk2', 'wv2', 'wo2', 'ln2_g', 'ln2_b',
                'ffn_w1', 'ffn_b1', 'ffn_w2', 'ffn_b2', 'ln3_g', 'ln3_b')


# ----------------------------------------------------------------------------
# Fused decoder-block kernel (one batch element per grid step)
# ----------------------------------------------------------------------------
def _decoder_block_kernel(valid_lens_ref,               # SMEM (B,) int32 (scalar prefetch)
                          x_ref, kv_ref, enc_ref,       # (1,T,H) / (1,S_kv,H) / (1,S_enc,H)
                          wq1_ref, wk1_ref, wv1_ref, wo1_ref, g1_ref, bb1_ref,
                          wq2_ref, wk2_ref, wv2_ref, wo2_ref, g2_ref, bb2_ref,
                          fw1_ref, fb1_ref, fw2_ref, fb2_ref, g3_ref, bb3_ref,
                          o_ref, *, num_heads):
    b = pl.program_id(0)

    x = x_ref[0]        # (T, H)
    kv = kv_ref[0]      # (S_kv, H)
    enc = enc_ref[0]    # (S_enc, H)

    T, H = x.shape
    S_kv = kv.shape[0]
    S_enc = enc.shape[0]
    d = H // num_heads
    scale = 1.0 / math.sqrt(d)

    # --- masks generated in-kernel (additive bias), hoisted out of head loops
    row = lax.broadcasted_iota(jnp.int32, (T, S_kv), 0)
    col = lax.broadcasted_iota(jnp.int32, (T, S_kv), 1)
    # dec_valid_lens[row] = row + 1  =>  key j valid iff j <= row
    dec_bias = jnp.where(col <= row, 0.0, MASK_VALUE)

    col_e = lax.broadcasted_iota(jnp.int32, (T, S_enc), 1)
    enc_bias = jnp.where(col_e < valid_lens_ref[b], 0.0, MASK_VALUE)

    # --- load weights once
    wq1, wk1, wv1, wo1 = wq1_ref[...], wk1_ref[...], wv1_ref[...], wo1_ref[...]
    wq2, wk2, wv2, wo2 = wq2_ref[...], wk2_ref[...], wv2_ref[...], wo2_ref[...]
    g1, be1 = g1_ref[...], bb1_ref[...]
    g2, be2 = g2_ref[...], bb2_ref[...]
    g3, be3 = g3_ref[...], bb3_ref[...]
    fw1, fb1, fw2, fb2 = fw1_ref[...], fb1_ref[...], fw2_ref[...], fb2_ref[...]

    def mha(q_in, kv_in, wq, wk, wv, wo, bias):
        # scale folded into Q (hoisted out of the head loop)
        q = jnp.dot(q_in, wq, preferred_element_type=jnp.float32) * scale
        k = jnp.dot(kv_in, wk, preferred_element_type=jnp.float32)
        v = jnp.dot(kv_in, wv, preferred_element_type=jnp.float32)
        out = jnp.zeros((q_in.shape[0], H), jnp.float32)
        for h in range(num_heads):
            sl = slice(h * d, (h + 1) * d)
            qh, kh, vh = q[:, sl], k[:, sl], v[:, sl]
            # contract last axes directly (no materialized transpose)
            s = lax.dot_general(qh, kh, (((1,), (1,)), ((), ())),
                                preferred_element_type=jnp.float32) + bias
            s = s - jnp.max(s, axis=-1, keepdims=True)
            p = jnp.exp(s)
            p = p * pl.reciprocal(jnp.sum(p, axis=-1, keepdims=True), approx=False)
            ho = jnp.dot(p, vh, preferred_element_type=jnp.float32)        # (T, d)
            # concat-free output projection: accumulate per-head slice of Wo
            out = out + jnp.dot(ho, wo[sl, :], preferred_element_type=jnp.float32)
        return out

    def add_norm(res, y, gamma, beta):
        z = res + y
        mean = jnp.mean(z, axis=-1, keepdims=True)
        var = jnp.mean(jnp.square(z - mean), axis=-1, keepdims=True)
        return (z - mean) * lax.rsqrt(var + EPS) * gamma + beta

    # --- decoder block, all intermediates VMEM-resident
    x2 = mha(x, kv, wq1, wk1, wv1, wo1, dec_bias)
    y = add_norm(x, x2, g1, be1)
    y2 = mha(y, enc, wq2, wk2, wv2, wo2, enc_bias)
    z = add_norm(y, y2, g2, be2)
    h_ffn = jnp.maximum(jnp.dot(z, fw1, preferred_element_type=jnp.float32) + fb1, 0.0)
    ffn = jnp.dot(h_ffn, fw2, preferred_element_type=jnp.float32) + fb2
    o_ref[0] = add_norm(z, ffn, g3, be3)


# ----------------------------------------------------------------------------
# Pallas wrapper: one pallas_call for the whole block
# ----------------------------------------------------------------------------
def decoder_block_fused(X, key_values, enc_outputs, enc_valid_lens, params):
    B, T, H = X.shape
    S_kv = key_values.shape[1]
    S_enc = enc_outputs.shape[1]
    F = params['ffn_w1'].shape[1]

    def act_spec(shape):
        return pl.BlockSpec(shape, lambda b, vl: (b, 0, 0))

    def w_spec(shape):
        return pl.BlockSpec(shape, lambda b, vl: (0, 0))

    in_specs = [
        act_spec((1, T, H)),        # X
        act_spec((1, S_kv, H)),     # key_values
        act_spec((1, S_enc, H)),    # enc_outputs
        w_spec((H, H)), w_spec((H, H)), w_spec((H, H)), w_spec((H, H)),   # attn1
        w_spec((1, H)), w_spec((1, H)),                                   # ln1
        w_spec((H, H)), w_spec((H, H)), w_spec((H, H)), w_spec((H, H)),   # attn2
        w_spec((1, H)), w_spec((1, H)),                                   # ln2
        w_spec((H, F)), w_spec((1, F)), w_spec((F, H)), w_spec((1, H)),   # ffn
        w_spec((1, H)), w_spec((1, H)),                                   # ln3
    ]

    grid_spec = pltpu.PrefetchScalarGridSpec(
        num_scalar_prefetch=1,
        grid=(B,),
        in_specs=in_specs,
        out_specs=pl.BlockSpec((1, T, H), lambda b, vl: (b, 0, 0)),
    )

    kernel = functools.partial(_decoder_block_kernel, num_heads=NUM_HEADS)
    weights = [params[n] for n in WEIGHT_NAMES]

    return pl.pallas_call(
        kernel,
        out_shape=jax.ShapeDtypeStruct((B, T, H), jnp.float32),
        grid_spec=grid_spec,
        compiler_params=pltpu.CompilerParams(dimension_semantics=("parallel",)),
    )(enc_valid_lens.astype(jnp.int32), X, key_values, enc_outputs, *weights)


# ----------------------------------------------------------------------------
# Decoder block (state / KV-cache glue in plain JAX)
# ----------------------------------------------------------------------------
def transformer_decoder_block(X, state, params, block_i):
    enc_outputs, enc_valid_lens, kv_cache = state
    if kv_cache[block_i] is None:
        key_values = X
    else:
        key_values = jnp.concatenate([kv_cache[block_i], X], axis=1)
    kv_cache[block_i] = key_values

    out = decoder_block_fused(X, key_values, enc_outputs, enc_valid_lens, params)
    return out, (enc_outputs, enc_valid_lens, kv_cache)


# ----------------------------------------------------------------------------
# Pure-JAX reference (for correctness check)
# ----------------------------------------------------------------------------
def _causal_mask(B, T, S):
    m = (jnp.arange(S)[None, :] < (jnp.arange(T)[:, None] + 1)).astype(jnp.float32)
    return jnp.broadcast_to(m[None], (B, T, S))


def _enc_mask(enc_valid_lens, B, T, S):
    m = (jnp.arange(S)[None, None, :] < enc_valid_lens[:, None, None]).astype(jnp.float32)
    return jnp.broadcast_to(m, (B, T, S))


def _ref_mha(q_in, kv_in, mask, wq, wk, wv, wo):
    B, T, H = q_in.shape
    S = kv_in.shape[1]
    d = H // NUM_HEADS
    q = (q_in @ wq).reshape(B, T, NUM_HEADS, d).transpose(0, 2, 1, 3)
    k = (kv_in @ wk).reshape(B, S, NUM_HEADS, d).transpose(0, 2, 1, 3)
    v = (kv_in @ wv).reshape(B, S, NUM_HEADS, d).transpose(0, 2, 1, 3)
    scores = jnp.einsum('bhtd,bhsd->bhts', q, k) / math.sqrt(d)
    scores = jnp.where(mask[:, None, :, :] > 0.5, scores, MASK_VALUE)
    p = jax.nn.softmax(scores, axis=-1)
    out = jnp.einsum('bhts,bhsd->bhtd', p, v).transpose(0, 2, 1, 3).reshape(B, T, H)
    return out @ wo


def _ref_addnorm(x, y, g, b):
    z = x + y
    mean = jnp.mean(z, axis=-1, keepdims=True)
    var = jnp.mean(jnp.square(z - mean), axis=-1, keepdims=True)
    return (z - mean) * jax.lax.rsqrt(var + EPS) * g + b


def _ref_block(X, enc_outputs, enc_valid_lens, p):
    B, T, H = X.shape
    dec_mask = _causal_mask(B, T, T)
    enc_mask = _enc_mask(enc_valid_lens, B, T, enc_outputs.shape[1])
    X2 = _ref_mha(X, X, dec_mask, p['wq1'], p['wk1'], p['wv1'], p['wo1'])
    Y = _ref_addnorm(X, X2, p['ln1_g'], p['ln1_b'])
    Y2 = _ref_mha(Y, enc_outputs, enc_mask, p['wq2'], p['wk2'], p['wv2'], p['wo2'])
    Z = _ref_addnorm(Y, Y2, p['ln2_g'], p['ln2_b'])
    h = jnp.maximum(Z @ p['ffn_w1'] + p['ffn_b1'], 0.0)
    ffn_out = h @ p['ffn_w2'] + p['ffn_b2']
    return _ref_addnorm(Z, ffn_out, p['ln3_g'], p['ln3_b'])


# ----------------------------------------------------------------------------
# Deterministic parameter init
# ----------------------------------------------------------------------------
def init_params(key):
    H, F = NUM_HIDDENS, FFN_HIDDENS
    ks = jax.random.split(key, 12)
    s = 0.1
    p = {}
    names = ['wq1', 'wk1', 'wv1', 'wo1', 'wq2', 'wk2', 'wv2', 'wo2']
    for i, n in enumerate(names):
        p[n] = jax.random.normal(ks[i], (H, H), jnp.float32) * s
    p['ffn_w1'] = jax.random.normal(ks[8], (H, F), jnp.float32) * s
    p['ffn_b1'] = jax.random.normal(ks[9], (1, F), jnp.float32) * s
    p['ffn_w2'] = jax.random.normal(ks[10], (F, H), jnp.float32) * s
    p['ffn_b2'] = jax.random.normal(ks[11], (1, H), jnp.float32) * s
    for i in (1, 2, 3):
        p[f'ln{i}_g'] = jnp.ones((1, H), jnp.float32)
        p[f'ln{i}_b'] = jnp.zeros((1, H), jnp.float32)
    return p


if __name__ == "__main__":
    B, T, S_ENC = 2, 8, 8
    key = jax.random.PRNGKey(0)
    k_x, k_enc, k_p = jax.random.split(key, 3)

    X = jax.random.normal(k_x, (B, T, NUM_HIDDENS), jnp.float32)
    enc_outputs = jax.random.normal(k_enc, (B, S_ENC, NUM_HIDDENS), jnp.float32)
    enc_valid_lens = jnp.array([8, 5], dtype=jnp.int32)
    params = init_params(k_p)

    state = [enc_outputs, enc_valid_lens, [None]]  # single decoder block, i = 0
    out, state = transformer_decoder_block(X, state, params, 0)
    out = jax.block_until_ready(out)

    ref = _ref_block(X, enc_outputs, enc_valid_lens, params)
    assert out.shape == (B, T, NUM_HIDDENS)
    assert jnp.allclose(out, ref, atol=1e-4, rtol=1e-4), "mismatch vs reference"
    assert state[2][0].shape == (B, T, NUM_HIDDENS)

    print("KERNEL_OK")
</pallas_src>

<mosaic_0001>
module attributes {stable_mosaic.version = 11 : i64} {
  func.func @_decoder_block_kernel(%arg0: i32, %arg1: memref<2xi32, #tpu.memory_space<smem>>, %arg2: memref<1x8x32xf32, #tpu.memory_space<vmem>>, %arg3: memref<1x8x32xf32, #tpu.memory_space<vmem>>, %arg4: memref<1x8x32xf32, #tpu.memory_space<vmem>>, %arg5: memref<32x32xf32, #tpu.memory_space<vmem>>, %arg6: memref<32x32xf32, #tpu.memory_space<vmem>>, %arg7: memref<32x32xf32, #tpu.memory_space<vmem>>, %arg8: memref<32x32xf32, #tpu.memory_space<vmem>>, %arg9: memref<1x32xf32, #tpu.memory_space<vmem>>, %arg10: memref<1x32xf32, #tpu.memory_space<vmem>>, %arg11: memref<32x32xf32, #tpu.memory_space<vmem>>, %arg12: memref<32x32xf32, #tpu.memory_space<vmem>>, %arg13: memref<32x32xf32, #tpu.memory_space<vmem>>, %arg14: memref<32x32xf32, #tpu.memory_space<vmem>>, %arg15: memref<1x32xf32, #tpu.memory_space<vmem>>, %arg16: memref<1x32xf32, #tpu.memory_space<vmem>>, %arg17: memref<32x64xf32, #tpu.memory_space<vmem>>, %arg18: memref<1x64xf32, #tpu.memory_space<vmem>>, %arg19: memref<64x32xf32, #tpu.memory_space<vmem>>, %arg20: memref<1x32xf32, #tpu.memory_space<vmem>>, %arg21: memref<1x32xf32, #tpu.memory_space<vmem>>, %arg22: memref<1x32xf32, #tpu.memory_space<vmem>>, %arg23: memref<1x8x32xf32, #tpu.memory_space<vmem>>) attributes {dimension_semantics = [#tpu.dimension_semantics<parallel>], iteration_bounds = array<i64: 2>, scalar_prefetch = 1 : i64, scratch_operands = 0 : i64, tpu.core_type = #tpu.core_type<tc>, window_params = [{transform_indices = @transform_0, window_bounds = array<i64: 1, 8, 32>}, {transform_indices = @transform_1, window_bounds = array<i64: 1, 8, 32>}, {transform_indices = @transform_2, window_bounds = array<i64: 1, 8, 32>}, {pipeline_mode = #tpu.pipeline_mode<synchronous>, transform_indices = @transform_3, window_bounds = array<i64: 32, 32>}, {pipeline_mode = #tpu.pipeline_mode<synchronous>, transform_indices = @transform_4, window_bounds = array<i64: 32, 32>}, {pipeline_mode = #tpu.pipeline_mode<synchronous>, transform_indices = @transform_5, window_bounds = array<i64: 32, 32>}, {pipeline_mode = #tpu.pipeline_mode<synchronous>, transform_indices = @transform_6, window_bounds = array<i64: 32, 32>}, {pipeline_mode = #tpu.pipeline_mode<synchronous>, transform_indices = @transform_7, window_bounds = array<i64: 1, 32>}, {pipeline_mode = #tpu.pipeline_mode<synchronous>, transform_indices = @transform_8, window_bounds = array<i64: 1, 32>}, {pipeline_mode = #tpu.pipeline_mode<synchronous>, transform_indices = @transform_9, window_bounds = array<i64: 32, 32>}, {pipeline_mode = #tpu.pipeline_mode<synchronous>, transform_indices = @transform_10, window_bounds = array<i64: 32, 32>}, {pipeline_mode = #tpu.pipeline_mode<synchronous>, transform_indices = @transform_11, window_bounds = array<i64: 32, 32>}, {pipeline_mode = #tpu.pipeline_mode<synchronous>, transform_indices = @transform_12, window_bounds = array<i64: 32, 32>}, {pipeline_mode = #tpu.pipeline_mode<synchronous>, transform_indices = @transform_13, window_bounds = array<i64: 1, 32>}, {pipeline_mode = #tpu.pipeline_mode<synchronous>, transform_indices = @transform_14, window_bounds = array<i64: 1, 32>}, {pipeline_mode = #tpu.pipeline_mode<synchronous>, transform_indices = @transform_15, window_bounds = array<i64: 32, 64>}, {pipeline_mode = #tpu.pipeline_mode<synchronous>, transform_indices = @transform_16, window_bounds = array<i64: 1, 64>}, {pipeline_mode = #tpu.pipeline_mode<synchronous>, transform_indices = @transform_17, window_bounds = array<i64: 64, 32>}, {pipeline_mode = #tpu.pipeline_mode<synchronous>, transform_indices = @transform_18, window_bounds = array<i64: 1, 32>}, {pipeline_mode = #tpu.pipeline_mode<synchronous>, transform_indices = @transform_19, window_bounds = array<i64: 1, 32>}, {pipeline_mode = #tpu.pipeline_mode<synchronous>, transform_indices = @transform_20, window_bounds = array<i64: 1, 32>}, {transform_indices = @transform_21, window_bounds = array<i64: 1, 8, 32>}]} {
    %c0 = arith.constant 0 : index
    %c0_0 = arith.constant 0 : index
    %c0_1 = arith.constant 0 : index
    %0 = vector.load %arg2[%c0, %c0_0, %c0_1] : memref<1x8x32xf32, #tpu.memory_space<vmem>>, vector<1x8x32xf32>
    %1 = vector.shape_cast %0 : vector<1x8x32xf32> to vector<8x32xf32>
    %c0_2 = arith.constant 0 : index
    %c0_3 = arith.constant 0 : index
    %c0_4 = arith.constant 0 : index
    %2 = vector.load %arg3[%c0_2, %c0_3, %c0_4] : memref<1x8x32xf32, #tpu.memory_space<vmem>>, vector<1x8x32xf32>
    %3 = vector.shape_cast %2 : vector<1x8x32xf32> to vector<8x32xf32>
    %c0_5 = arith.constant 0 : index
    %c0_6 = arith.constant 0 : index
    %c0_7 = arith.constant 0 : index
    %4 = vector.load %arg4[%c0_5, %c0_6, %c0_7] : memref<1x8x32xf32, #tpu.memory_space<vmem>>, vector<1x8x32xf32>
    %5 = vector.shape_cast %4 : vector<1x8x32xf32> to vector<8x32xf32>
    %6 = tpu.iota {dimensions = array<i32: 0>} : vector<8x8xi32>
    %7 = tpu.iota {dimensions = array<i32: 1>} : vector<8x8xi32>
    %8 = arith.cmpi sle, %7, %6 : vector<8x8xi32>
    %cst = arith.constant 0.000000e+00 : f32
    %cst_8 = arith.constant -1.000000e+06 : f32
    %9 = vector.broadcast %cst : f32 to vector<8x8xf32>
    %10 = vector.broadcast %cst_8 : f32 to vector<8x8xf32>
    %11 = arith.select %8, %9, %10 : vector<8x8xi1>, vector<8x8xf32>
    %12 = tpu.iota {dimensions = array<i32: 1>} : vector<8x8xi32>
    %13 = arith.index_cast %arg0 : i32 to index
    %14 = memref.load %arg1[%13] : memref<2xi32, #tpu.memory_space<smem>>
    %15 = vector.broadcast %14 : i32 to vector<8x8xi32>
    %16 = arith.cmpi slt, %12, %15 : vector<8x8xi32>
    %cst_9 = arith.constant 0.000000e+00 : f32
    %cst_10 = arith.constant -1.000000e+06 : f32
    %17 = vector.broadcast %cst_9 : f32 to vector<8x8xf32>
    %18 = vector.broadcast %cst_10 : f32 to vector<8x8xf32>
    %19 = arith.select %16, %17, %18 : vector<8x8xi1>, vector<8x8xf32>
    %c0_11 = arith.constant 0 : index
    %c0_12 = arith.constant 0 : index
    %20 = vector.load %arg5[%c0_11, %c0_12] : memref<32x32xf32, #tpu.memory_space<vmem>>, vector<32x32xf32>
    %c0_13 = arith.constant 0 : index
    %c0_14 = arith.constant 0 : index
    %21 = vector.load %arg6[%c0_13, %c0_14] : memref<32x32xf32, #tpu.memory_space<vmem>>, vector<32x32xf32>
    %c0_15 = arith.constant 0 : index
    %c0_16 = arith.constant 0 : index
    %22 = vector.load %arg7[%c0_15, %c0_16] : memref<32x32xf32, #tpu.memory_space<vmem>>, vector<32x32xf32>
    %c0_17 = arith.constant 0 : index
    %c0_18 = arith.constant 0 : index
    %23 = vector.load %arg8[%c0_17, %c0_18] : memref<32x32xf32, #tpu.memory_space<vmem>>, vector<32x32xf32>
    %c0_19 = arith.constant 0 : index
    %c0_20 = arith.constant 0 : index
    %24 = vector.load %arg11[%c0_19, %c0_20] : memref<32x32xf32, #tpu.memory_space<vmem>>, vector<32x32xf32>
    %c0_21 = arith.constant 0 : index
    %c0_22 = arith.constant 0 : index
    %25 = vector.load %arg12[%c0_21, %c0_22] : memref<32x32xf32, #tpu.memory_space<vmem>>, vector<32x32xf32>
    %c0_23 = arith.constant 0 : index
    %c0_24 = arith.constant 0 : index
    %26 = vector.load %arg13[%c0_23, %c0_24] : memref<32x32xf32, #tpu.memory_space<vmem>>, vector<32x32xf32>
    %c0_25 = arith.constant 0 : index
    %c0_26 = arith.constant 0 : index
    %27 = vector.load %arg14[%c0_25, %c0_26] : memref<32x32xf32, #tpu.memory_space<vmem>>, vector<32x32xf32>
    %c0_27 = arith.constant 0 : index
    %c0_28 = arith.constant 0 : index
    %28 = vector.load %arg9[%c0_27, %c0_28] : memref<1x32xf32, #tpu.memory_space<vmem>>, vector<1x32xf32>
    %c0_29 = arith.constant 0 : index
    %c0_30 = arith.constant 0 : index
    %29 = vector.load %arg10[%c0_29, %c0_30] : memref<1x32xf32, #tpu.memory_space<vmem>>, vector<1x32xf32>
    %c0_31 = arith.constant 0 : index
    %c0_32 = arith.constant 0 : index
    %30 = vector.load %arg15[%c0_31, %c0_32] : memref<1x32xf32, #tpu.memory_space<vmem>>, vector<1x32xf32>
    %c0_33 = arith.constant 0 : index
    %c0_34 = arith.constant 0 : index
    %31 = vector.load %arg16[%c0_33, %c0_34] : memref<1x32xf32, #tpu.memory_space<vmem>>, vector<1x32xf32>
    %c0_35 = arith.constant 0 : index
    %c0_36 = arith.constant 0 : index
    %32 = vector.load %arg21[%c0_35, %c0_36] : memref<1x32xf32, #tpu.memory_space<vmem>>, vector<1x32xf32>
    %c0_37 = arith.constant 0 : index
    %c0_38 = arith.constant 0 : index
    %33 = vector.load %arg22[%c0_37, %c0_38] : memref<1x32xf32, #tpu.memory_space<vmem>>, vector<1x32xf32>
    %c0_39 = arith.constant 0 : index
    %c0_40 = arith.constant 0 : index
    %34 = vector.load %arg17[%c0_39, %c0_40] : memref<32x64xf32, #tpu.memory_space<vmem>>, vector<32x64xf32>
    %c0_41 = arith.constant 0 : index
    %c0_42 = arith.constant 0 : index
    %35 = vector.load %arg18[%c0_41, %c0_42] : memref<1x64xf32, #tpu.memory_space<vmem>>, vector<1x64xf32>
    %c0_43 = arith.constant 0 : index
    %c0_44 = arith.constant 0 : index
    %36 = vector.load %arg19[%c0_43, %c0_44] : memref<64x32xf32, #tpu.memory_space<vmem>>, vector<64x32xf32>
    %c0_45 = arith.constant 0 : index
    %c0_46 = arith.constant 0 : index
    %37 = vector.load %arg20[%c0_45, %c0_46] : memref<1x32xf32, #tpu.memory_space<vmem>>, vector<1x32xf32>
    %cst_47 = arith.constant dense<0.000000e+00> : vector<8x32xf32>
    %38 = tpu.matmul %1, %20, %cst_47 {dimension_numbers = #tpu.dot_dimension_numbers<[1], [0], [0], [1], [0, 0, 1, 1], [], []>} : vector<8x32xf32>, vector<32x32xf32>, vector<8x32xf32> -> vector<8x32xf32>
    %cst_48 = arith.constant 0.353553385 : f32
    %39 = vector.broadcast %cst_48 : f32 to vector<8x32xf32>
    %40 = arith.mulf %38, %39 : vector<8x32xf32>
    %cst_49 = arith.constant dense<0.000000e+00> : vector<8x32xf32>
    %41 = tpu.matmul %3, %21, %cst_49 {dimension_numbers = #tpu.dot_dimension_numbers<[1], [0], [0], [1], [0, 0, 1, 1], [], []>} : vector<8x32xf32>, vector<32x32xf32>, vector<8x32xf32> -> vector<8x32xf32>
    %cst_50 = arith.constant dense<0.000000e+00> : vector<8x32xf32>
    %42 = tpu.matmul %3, %22, %cst_50 {dimension_numbers = #tpu.dot_dimension_numbers<[1], [0], [0], [1], [0, 0, 1, 1], [], []>} : vector<8x32xf32>, vector<32x32xf32>, vector<8x32xf32> -> vector<8x32xf32>
    %cst_51 = arith.constant 0.000000e+00 : f32
    %43 = vector.broadcast %cst_51 : f32 to vector<8x32xf32>
    %44 = vector.extract_strided_slice %40 {offsets = [0, 0], sizes = [8, 8], strides = [1, 1]} : vector<8x32xf32> to vector<8x8xf32>
    %45 = vector.extract_strided_slice %41 {offsets = [0, 0], sizes = [8, 8], strides = [1, 1]} : vector<8x32xf32> to vector<8x8xf32>
    %46 = vector.extract_strided_slice %42 {offsets = [0, 0], sizes = [8, 8], strides = [1, 1]} : vector<8x32xf32> to vector<8x8xf32>
    %cst_52 = arith.constant dense<0.000000e+00> : vector<8x8xf32>
    %47 = tpu.matmul %44, %45, %cst_52 {dimension_numbers = #tpu.dot_dimension_numbers<[1], [1], [0], [0], [0, 0, 1, 0], [], []>} : vector<8x8xf32>, vector<8x8xf32>, vector<8x8xf32> -> vector<8x8xf32>
    %48 = arith.addf %47, %11 : vector<8x8xf32>
    %cst_53 = arith.constant dense<0xFF800000> : vector<8xf32>
    %49 = vector.multi_reduction <maximumf>, %48, %cst_53 [1] : vector<8x8xf32> to vector<8xf32>
    %50 = vector.shape_cast %49 : vector<8xf32> to vector<8x1xf32>
    %51 = vector.broadcast %50 : vector<8x1xf32> to vector<8x8xf32>
    %52 = arith.subf %48, %51 : vector<8x8xf32>
    %53 = math.exp %52 : vector<8x8xf32>
    %cst_54 = arith.constant dense<0.000000e+00> : vector<8xf32>
    %54 = vector.multi_reduction <add>, %53, %cst_54 [1] : vector<8x8xf32> to vector<8xf32>
    %55 = vector.shape_cast %54 : vector<8xf32> to vector<8x1xf32>
    %56 = tpu.reciprocal %55 : vector<8x1xf32> -> vector<8x1xf32>
    %57 = vector.broadcast %56 : vector<8x1xf32> to vector<8x8xf32>
    %58 = arith.mulf %53, %57 : vector<8x8xf32>
    %cst_55 = arith.constant dense<0.000000e+00> : vector<8x8xf32>
    %59 = tpu.matmul %58, %46, %cst_55 {dimension_numbers = #tpu.dot_dimension_numbers<[1], [0], [0], [1], [0, 0, 1, 1], [], []>} : vector<8x8xf32>, vector<8x8xf32>, vector<8x8xf32> -> vector<8x8xf32>
    %60 = vector.extract_strided_slice %23 {offsets = [0, 0], sizes = [8, 32], strides = [1, 1]} : vector<32x32xf32> to vector<8x32xf32>
    %cst_56 = arith.constant dense<0.000000e+00> : vector<8x32xf32>
    %61 = tpu.matmul %59, %60, %cst_56 {dimension_numbers = #tpu.dot_dimension_numbers<[1], [0], [0], [1], [0, 0, 1, 1], [], []>} : vector<8x8xf32>, vector<8x32xf32>, vector<8x32xf32> -> vector<8x32xf32>
    %62 = arith.addf %43, %61 : vector<8x32xf32>
    %63 = vector.extract_strided_slice %40 {offsets = [0, 8], sizes = [8, 8], strides = [1, 1]} : vector<8x32xf32> to vector<8x8xf32>
    %64 = vector.extract_strided_slice %41 {offsets = [0, 8], sizes = [8, 8], strides = [1, 1]} : vector<8x32xf32> to vector<8x8xf32>
    %65 = vector.extract_strided_slice %42 {offsets = [0, 8], sizes = [8, 8], strides = [1, 1]} : vector<8x32xf32> to vector<8x8xf32>
    %cst_57 = arith.constant dense<0.000000e+00> : vector<8x8xf32>
    %66 = tpu.matmul %63, %64, %cst_57 {dimension_numbers = #tpu.dot_dimension_numbers<[1], [1], [0], [0], [0, 0, 1, 0], [], []>} : vector<8x8xf32>, vector<8x8xf32>, vector<8x8xf32> -> vector<8x8xf32>
    %67 = arith.addf %66, %11 : vector<8x8xf32>
    %cst_58 = arith.constant dense<0xFF800000> : vector<8xf32>
    %68 = vector.multi_reduction <maximumf>, %67, %cst_58 [1] : vector<8x8xf32> to vector<8xf32>
    %69 = vector.shape_cast %68 : vector<8xf32> to vector<8x1xf32>
    %70 = vector.broadcast %69 : vector<8x1xf32> to vector<8x8xf32>
    %71 = arith.subf %67, %70 : vector<8x8xf32>
    %72 = math.exp %71 : vector<8x8xf32>
    %cst_59 = arith.constant dense<0.000000e+00> : vector<8xf32>
    %73 = vector.multi_reduction <add>, %72, %cst_59 [1] : vector<8x8xf32> to vector<8xf32>
    %74 = vector.shape_cast %73 : vector<8xf32> to vector<8x1xf32>
    %75 = tpu.reciprocal %74 : vector<8x1xf32> -> vector<8x1xf32>
    %76 = vector.broadcast %75 : vector<8x1xf32> to vector<8x8xf32>
    %77 = arith.mulf %72, %76 : vector<8x8xf32>
    %cst_60 = arith.constant dense<0.000000e+00> : vector<8x8xf32>
    %78 = tpu.matmul %77, %65, %cst_60 {dimension_numbers = #tpu.dot_dimension_numbers<[1], [0], [0], [1], [0, 0, 1, 1], [], []>} : vector<8x8xf32>, vector<8x8xf32>, vector<8x8xf32> -> vector<8x8xf32>
    %79 = vector.extract_strided_slice %23 {offsets = [8, 0], sizes = [8, 32], strides = [1, 1]} : vector<32x32xf32> to vector<8x32xf32>
    %cst_61 = arith.constant dense<0.000000e+00> : vector<8x32xf32>
    %80 = tpu.matmul %78, %79, %cst_61 {dimension_numbers = #tpu.dot_dimension_numbers<[1], [0], [0], [1], [0, 0, 1, 1], [], []>} : vector<8x8xf32>, vector<8x32xf32>, vector<8x32xf32> -> vector<8x32xf32>
    %81 = arith.addf %62, %80 : vector<8x32xf32>
    %82 = vector.extract_strided_slice %40 {offsets = [0, 16], sizes = [8, 8], strides = [1, 1]} : vector<8x32xf32> to vector<8x8xf32>
    %83 = vector.extract_strided_slice %41 {offsets = [0, 16], sizes = [8, 8], strides = [1, 1]} : vector<8x32xf32> to vector<8x8xf32>
    %84 = vector.extract_strided_slice %42 {offsets = [0, 16], sizes = [8, 8], strides = [1, 1]} : vector<8x32xf32> to vector<8x8xf32>
    %cst_62 = arith.constant dense<0.000000e+00> : vector<8x8xf32>
    %85 = tpu.matmul %82, %83, %cst_62 {dimension_numbers = #tpu.dot_dimension_numbers<[1], [1], [0], [0], [0, 0, 1, 0], [], []>} : vector<8x8xf32>, vector<8x8xf32>, vector<8x8xf32> -> vector<8x8xf32>
    %86 = arith.addf %85, %11 : vector<8x8xf32>
    %cst_63 = arith.constant dense<0xFF800000> : vector<8xf32>
    %87 = vector.multi_reduction <maximumf>, %86, %cst_63 [1] : vector<8x8xf32> to vector<8xf32>
    %88 = vector.shape_cast %87 : vector<8xf32> to vector<8x1xf32>
    %89 = vector.broadcast %88 : vector<8x1xf32> to vector<8x8xf32>
    %90 = arith.subf %86, %89 : vector<8x8xf32>
    %91 = math.exp %90 : vector<8x8xf32>
    %cst_64 = arith.constant dense<0.000000e+00> : vector<8xf32>
    %92 = vector.multi_reduction <add>, %91, %cst_64 [1] : vector<8x8xf32> to vector<8xf32>
    %93 = vector.shape_cast %92 : vector<8xf32> to vector<8x1xf32>
    %94 = tpu.reciprocal %93 : vector<8x1xf32> -> vector<8x1xf32>
    %95 = vector.broadcast %94 : vector<8x1xf32> to vector<8x8xf32>
    %96 = arith.mulf %91, %95 : vector<8x8xf32>
    %cst_65 = arith.constant dense<0.000000e+00> : vector<8x8xf32>
    %97 = tpu.matmul %96, %84, %cst_65 {dimension_numbers = #tpu.dot_dimension_numbers<[1], [0], [0], [1], [0, 0, 1, 1], [], []>} : vector<8x8xf32>, vector<8x8xf32>, vector<8x8xf32> -> vector<8x8xf32>
    %98 = vector.extract_strided_slice %23 {offsets = [16, 0], sizes = [8, 32], strides = [1, 1]} : vector<32x32xf32> to vector<8x32xf32>
    %cst_66 = arith.constant dense<0.000000e+00> : vector<8x32xf32>
    %99 = tpu.matmul %97, %98, %cst_66 {dimension_numbers = #tpu.dot_dimension_numbers<[1], [0], [0], [1], [0, 0, 1, 1], [], []>} : vector<8x8xf32>, vector<8x32xf32>, vector<8x32xf32> -> vector<8x32xf32>
    %100 = arith.addf %81, %99 : vector<8x32xf32>
    %101 = vector.extract_strided_slice %40 {offsets = [0, 24], sizes = [8, 8], strides = [1, 1]} : vector<8x32xf32> to vector<8x8xf32>
    %102 = vector.extract_strided_slice %41 {offsets = [0, 24], sizes = [8, 8], strides = [1, 1]} : vector<8x32xf32> to vector<8x8xf32>
    %103 = vector.extract_strided_slice %42 {offsets = [0, 24], sizes = [8, 8], strides = [1, 1]} : vector<8x32xf32> to vector<8x8xf32>
    %cst_67 = arith.constant dense<0.000000e+00> : vector<8x8xf32>
    %104 = tpu.matmul %101, %102, %cst_67 {dimension_numbers = #tpu.dot_dimension_numbers<[1], [1], [0], [0], [0, 0, 1, 0], [], []>} : vector<8x8xf32>, vector<8x8xf32>, vector<8x8xf32> -> vector<8x8xf32>
    %105 = arith.addf %104, %11 : vector<8x8xf32>
    %cst_68 = arith.constant dense<0xFF800000> : vector<8xf32>
    %106 = vector.multi_reduction <maximumf>, %105, %cst_68 [1] : vector<8x8xf32> to vector<8xf32>
    %107 = vector.shape_cast %106 : vector<8xf32> to vector<8x1xf32>
    %108 = vector.broadcast %107 : vector<8x1xf32> to vector<8x8xf32>
    %109 = arith.subf %105, %108 : vector<8x8xf32>
    %110 = math.exp %109 : vector<8x8xf32>
    %cst_69 = arith.constant dense<0.000000e+00> : vector<8xf32>
    %111 = vector.multi_reduction <add>, %110, %cst_69 [1] : vector<8x8xf32> to vector<8xf32>
    %112 = vector.shape_cast %111 : vector<8xf32> to vector<8x1xf32>
    %113 = tpu.reciprocal %112 : vector<8x1xf32> -> vector<8x1xf32>
    %114 = vector.broadcast %113 : vector<8x1xf32> to vector<8x8xf32>
    %115 = arith.mulf %110, %114 : vector<8x8xf32>
    %cst_70 = arith.constant dense<0.000000e+00> : vector<8x8xf32>
    %116 = tpu.matmul %115, %103, %cst_70 {dimension_numbers = #tpu.dot_dimension_numbers<[1], [0], [0], [1], [0, 0, 1, 1], [], []>} : vector<8x8xf32>, vector<8x8xf32>, vector<8x8xf32> -> vector<8x8xf32>
    %117 = vector.extract_strided_slice %23 {offsets = [24, 0], sizes = [8, 32], strides = [1, 1]} : vector<32x32xf32> to vector<8x32xf32>
    %cst_71 = arith.constant dense<0.000000e+00> : vector<8x32xf32>
    %118 = tpu.matmul %116, %117, %cst_71 {dimension_numbers = #tpu.dot_dimension_numbers<[1], [0], [0], [1], [0, 0, 1, 1], [], []>} : vector<8x8xf32>, vector<8x32xf32>, vector<8x32xf32> -> vector<8x32xf32>
    %119 = arith.addf %100, %118 : vector<8x32xf32>
    %120 = arith.addf %1, %119 : vector<8x32xf32>
    %cst_72 = arith.constant dense<0.000000e+00> : vector<8xf32>
    %121 = vector.multi_reduction <add>, %120, %cst_72 [1] : vector<8x32xf32> to vector<8xf32>
    %122 = vector.shape_cast %121 : vector<8xf32> to vector<8x1xf32>
    %cst_73 = arith.constant 3.200000e+01 : f32
    %123 = vector.broadcast %cst_73 : f32 to vector<8x1xf32>
    %124 = arith.divf %122, %123 : vector<8x1xf32>
    %125 = vector.broadcast %124 : vector<8x1xf32> to vector<8x32xf32>
    %126 = arith.subf %120, %125 : vector<8x32xf32>
    %127 = arith.mulf %126, %126 : vector<8x32xf32>
    %cst_74 = arith.constant dense<0.000000e+00> : vector<8xf32>
    %128 = vector.multi_reduction <add>, %127, %cst_74 [1] : vector<8x32xf32> to vector<8xf32>
    %129 = vector.shape_cast %128 : vector<8xf32> to vector<8x1xf32>
    %cst_75 = arith.constant 3.200000e+01 : f32
    %130 = vector.broadcast %cst_75 : f32 to vector<8x1xf32>
    %131 = arith.divf %129, %130 : vector<8x1xf32>
    %132 = vector.broadcast %124 : vector<8x1xf32> to vector<8x32xf32>
    %133 = arith.subf %120, %132 : vector<8x32xf32>
    %cst_76 = arith.constant 9.99999974E-6 : f32
    %134 = vector.broadcast %cst_76 : f32 to vector<8x1xf32>
    %135 = arith.addf %131, %134 : vector<8x1xf32>
    %136 = math.rsqrt %135 : vector<8x1xf32>
    %137 = vector.broadcast %136 : vector<8x1xf32> to vector<8x32xf32>
    %138 = arith.mulf %133, %137 : vector<8x32xf32>
    %139 = vector.broadcast %28 : vector<1x32xf32> to vector<8x32xf32>
    %140 = arith.mulf %138, %139 : vector<8x32xf32>
    %141 = vector.broadcast %29 : vector<1x32xf32> to vector<8x32xf32>
    %142 = arith.addf %140, %141 : vector<8x32xf32>
    %cst_77 = arith.constant dense<0.000000e+00> : vector<8x32xf32>
    %143 = tpu.matmul %142, %24, %cst_77 {dimension_numbers = #tpu.dot_dimension_numbers<[1], [0], [0], [1], [0, 0, 1, 1], [], []>} : vector<8x32xf32>, vector<32x32xf32>, vector<8x32xf32> -> vector<8x32xf32>
    %cst_78 = arith.constant 0.353553385 : f32
    %144 = vector.broadcast %cst_78 : f32 to vector<8x32xf32>
    %145 = arith.mulf %143, %144 : vector<8x32xf32>
    %cst_79 = arith.constant dense<0.000000e+00> : vector<8x32xf32>
    %146 = tpu.matmul %5, %25, %cst_79 {dimension_numbers = #tpu.dot_dimension_numbers<[1], [0], [0], [1], [0, 0, 1, 1], [], []>} : vector<8x32xf32>, vector<32x32xf32>, vector<8x32xf32> -> vector<8x32xf32>
    %cst_80 = arith.constant dense<0.000000e+00> : vector<8x32xf32>
    %147 = tpu.matmul %5, %26, %cst_80 {dimension_numbers = #tpu.dot_dimension_numbers<[1], [0], [0], [1], [0, 0, 1, 1], [], []>} : vector<8x32xf32>, vector<32x32xf32>, vector<8x32xf32> -> vector<8x32xf32>
    %cst_81 = arith.constant 0.000000e+00 : f32
    %148 = vector.broadcast %cst_81 : f32 to vector<8x32xf32>
    %149 = vector.extract_strided_slice %145 {offsets = [0, 0], sizes = [8, 8], strides = [1, 1]} : vector<8x32xf32> to vector<8x8xf32>
    %150 = vector.extract_strided_slice %146 {offsets = [0, 0], sizes = [8, 8], strides = [1, 1]} : vector<8x32xf32> to vector<8x8xf32>
    %151 = vector.extract_strided_slice %147 {offsets = [0, 0], sizes = [8, 8], strides = [1, 1]} : vector<8x32xf32> to vector<8x8xf32>
    %cst_82 = arith.constant dense<0.000000e+00> : vector<8x8xf32>
    %152 = tpu.matmul %149, %150, %cst_82 {dimension_numbers = #tpu.dot_dimension_numbers<[1], [1], [0], [0], [0, 0, 1, 0], [], []>} : vector<8x8xf32>, vector<8x8xf32>, vector<8x8xf32> -> vector<8x8xf32>
    %153 = arith.addf %152, %19 : vector<8x8xf32>
    %cst_83 = arith.constant dense<0xFF800000> : vector<8xf32>
    %154 = vector.multi_reduction <maximumf>, %153, %cst_83 [1] : vector<8x8xf32> to vector<8xf32>
    %155 = vector.shape_cast %154 : vector<8xf32> to vector<8x1xf32>
    %156 = vector.broadcast %155 : vector<8x1xf32> to vector<8x8xf32>
    %157 = arith.subf %153, %156 : vector<8x8xf32>
    %158 = math.exp %157 : vector<8x8xf32>
    %cst_84 = arith.constant dense<0.000000e+00> : vector<8xf32>
    %159 = vector.multi_reduction <add>, %158, %cst_84 [1] : vector<8x8xf32> to vector<8xf32>
    %160 = vector.shape_cast %159 : vector<8xf32> to vector<8x1xf32>
    %161 = tpu.reciprocal %160 : vector<8x1xf32> -> vector<8x1xf32>
    %162 = vector.broadcast %161 : vector<8x1xf32> to vector<8x8xf32>
    %163 = arith.mulf %158, %162 : vector<8x8xf32>
    %cst_85 = arith.constant dense<0.000000e+00> : vector<8x8xf32>
    %164 = tpu.matmul %163, %151, %cst_85 {dimension_numbers = #tpu.dot_dimension_numbers<[1], [0], [0], [1], [0, 0, 1, 1], [], []>} : vector<8x8xf32>, vector<8x8xf32>, vector<8x8xf32> -> vector<8x8xf32>
    %165 = vector.extract_strided_slice %27 {offsets = [0, 0], sizes = [8, 32], strides = [1, 1]} : vector<32x32xf32> to vector<8x32xf32>
    %cst_86 = arith.constant dense<0.000000e+00> : vector<8x32xf32>
    %166 = tpu.matmul %164, %165, %cst_86 {dimension_numbers = #tpu.dot_dimension_numbers<[1], [0], [0], [1], [0, 0, 1, 1], [], []>} : vector<8x8xf32>, vector<8x32xf32>, vector<8x32xf32> -> vector<8x32xf32>
    %167 = arith.addf %148, %166 : vector<8x32xf32>
    %168 = vector.extract_strided_slice %145 {offsets = [0, 8], sizes = [8, 8], strides = [1, 1]} : vector<8x32xf32> to vector<8x8xf32>
    %169 = vector.extract_strided_slice %146 {offsets = [0, 8], sizes = [8, 8], strides = [1, 1]} : vector<8x32xf32> to vector<8x8xf32>
    %170 = vector.extract_strided_slice %147 {offsets = [0, 8], sizes = [8, 8], strides = [1, 1]} : vector<8x32xf32> to vector<8x8xf32>
    %cst_87 = arith.constant dense<0.000000e+00> : vector<8x8xf32>
    %171 = tpu.matmul %168, %169, %cst_87 {dimension_numbers = #tpu.dot_dimension_numbers<[1], [1], [0], [0], [0, 0, 1, 0], [], []>} : vector<8x8xf32>, vector<8x8xf32>, vector<8x8xf32> -> vector<8x8xf32>
    %172 = arith.addf %171, %19 : vector<8x8xf32>
    %cst_88 = arith.constant dense<0xFF800000> : vector<8xf32>
    %173 = vector.multi_reduction <maximumf>, %172, %cst_88 [1] : vector<8x8xf32> to vector<8xf32>
    %174 = vector.shape_cast %173 : vector<8xf32> to vector<8x1xf32>
    %175 = vector.broadcast %174 : vector<8x1xf32> to vector<8x8xf32>
    %176 = arith.subf %172, %175 : vector<8x8xf32>
    %177 = math.exp %176 : vector<8x8xf32>
    %cst_89 = arith.constant dense<0.000000e+00> : vector<8xf32>
    %178 = vector.multi_reduction <add>, %177, %cst_89 [1] : vector<8x8xf32> to vector<8xf32>
    %179 = vector.shape_cast %178 : vector<8xf32> to vector<8x1xf32>
    %180 = tpu.reciprocal %179 : vector<8x1xf32> -> vector<8x1xf32>
    %181 = vector.broadcast %180 : vector<8x1xf32> to vector<8x8xf32>
    %182 = arith.mulf %177, %181 : vector<8x8xf32>
    %cst_90 = arith.constant dense<0.000000e+00> : vector<8x8xf32>
    %183 = tpu.matmul %182, %170, %cst_90 {dimension_numbers = #tpu.dot_dimension_numbers<[1], [0], [0], [1], [0, 0, 1, 1], [], []>} : vector<8x8xf32>, vector<8x8xf32>, vector<8x8xf32> -> vector<8x8xf32>
    %184 = vector.extract_strided_slice %27 {offsets = [8, 0], sizes = [8, 32], strides = [1, 1]} : vector<32x32xf32> to vector<8x32xf32>
    %cst_91 = arith.constant dense<0.000000e+00> : vector<8x32xf32>
    %185 = tpu.matmul %183, %184, %cst_91 {dimension_numbers = #tpu.dot_dimension_numbers<[1], [0], [0], [1], [0, 0, 1, 1], [], []>} : vector<8x8xf32>, vector<8x32xf32>, vector<8x32xf32> -> vector<8x32xf32>
    %186 = arith.addf %167, %185 : vector<8x32xf32>
    %187 = vector.extract_strided_slice %145 {offsets = [0, 16], sizes = [8, 8], strides = [1, 1]} : vector<8x32xf32> to vector<8x8xf32>
    %188 = vector.extract_strided_slice %146 {offsets = [0, 16], sizes = [8, 8], strides = [1, 1]} : vector<8x32xf32> to vector<8x8xf32>
    %189 = vector.extract_strided_slice %147 {offsets = [0, 16], sizes = [8, 8], strides = [1, 1]} : vector<8x32xf32> to vector<8x8xf32>
    %cst_92 = arith.constant dense<0.000000e+00> : vector<8x8xf32>
    %190 = tpu.matmul %187, %188, %cst_92 {dimension_numbers = #tpu.dot_dimension_numbers<[1], [1], [0], [0], [0, 0, 1, 0], [], []>} : vector<8x8xf32>, vector<8x8xf32>, vector<8x8xf32> -> vector<8x8xf32>
    %191 = arith.addf %190, %19 : vector<8x8xf32>
    %cst_93 = arith.constant dense<0xFF800000> : vector<8xf32>
    %192 = vector.multi_reduction <maximumf>, %191, %cst_93 [1] : vector<8x8xf32> to vector<8xf32>
    %193 = vector.shape_cast %192 : vector<8xf32> to vector<8x1xf32>
    %194 = vector.broadcast %193 : vector<8x1xf32> to vector<8x8xf32>
    %195 = arith.subf %191, %194 : vector<8x8xf32>
    %196 = math.exp %195 : vector<8x8xf32>
    %cst_94 = arith.constant dense<0.000000e+00> : vector<8xf32>
    %197 = vector.multi_reduction <add>, %196, %cst_94 [1] : vector<8x8xf32> to vector<8xf32>
    %198 = vector.shape_cast %197 : vector<8xf32> to vector<8x1xf32>
    %199 = tpu.reciprocal %198 : vector<8x1xf32> -> vector<8x1xf32>
    %200 = vector.broadcast %199 : vector<8x1xf32> to vector<8x8xf32>
    %201 = arith.mulf %196, %200 : vector<8x8xf32>
    %cst_95 = arith.constant dense<0.000000e+00> : vector<8x8xf32>
    %202 = tpu.matmul %201, %189, %cst_95 {dimension_numbers = #tpu.dot_dimension_numbers<[1], [0], [0], [1], [0, 0, 1, 1], [], []>} : vector<8x8xf32>, vector<8x8xf32>, vector<8x8xf32> -> vector<8x8xf32>
    %203 = vector.extract_strided_slice %27 {offsets = [16, 0], sizes = [8, 32], strides = [1, 1]} : vector<32x32xf32> to vector<8x32xf32>
    %cst_96 = arith.constant dense<0.000000e+00> : vector<8x32xf32>
    %204 = tpu.matmul %202, %203, %cst_96 {dimension_numbers = #tpu.dot_dimension_numbers<[1], [0], [0], [1], [0, 0, 1, 1], [], []>} : vector<8x8xf32>, vector<8x32xf32>, vector<8x32xf32> -> vector<8x32xf32>
    %205 = arith.addf %186, %204 : vector<8x32xf32>
    %206 = vector.extract_strided_slice %145 {offsets = [0, 24], sizes = [8, 8], strides = [1, 1]} : vector<8x32xf32> to vector<8x8xf32>
    %207 = vector.extract_strided_slice %146 {offsets = [0, 24], sizes = [8, 8], strides = [1, 1]} : vector<8x32xf32> to vector<8x8xf32>
    %208 = vector.extract_strided_slice %147 {offsets = [0, 24], sizes = [8, 8], strides = [1, 1]} : vector<8x32xf32> to vector<8x8xf32>
    %cst_97 = arith.constant dense<0.000000e+00> : vector<8x8xf32>
    %209 = tpu.matmul %206, %207, %cst_97 {dimension_numbers = #tpu.dot_dimension_numbers<[1], [1], [0], [0], [0, 0, 1, 0], [], []>} : vector<8x8xf32>, vector<8x8xf32>, vector<8x8xf32> -> vector<8x8xf32>
    %210 = arith.addf %209, %19 : vector<8x8xf32>
    %cst_98 = arith.constant dense<0xFF800000> : vector<8xf32>
    %211 = vector.multi_reduction <maximumf>, %210, %cst_98 [1] : vector<8x8xf32> to vector<8xf32>
    %212 = vector.shape_cast %211 : vector<8xf32> to vector<8x1xf32>
    %213 = vector.broadcast %212 : vector<8x1xf32> to vector<8x8xf32>
    %214 = arith.subf %210, %213 : vector<8x8xf32>
    %215 = math.exp %214 : vector<8x8xf32>
    %cst_99 = arith.constant dense<0.000000e+00> : vector<8xf32>
    %216 = vector.multi_reduction <add>, %215, %cst_99 [1] : vector<8x8xf32> to vector<8xf32>
    %217 = vector.shape_cast %216 : vector<8xf32> to vector<8x1xf32>
    %218 = tpu.reciprocal %217 : vector<8x1xf32> -> vector<8x1xf32>
    %219 = vector.broadcast %218 : vector<8x1xf32> to vector<8x8xf32>
    %220 = arith.mulf %215, %219 : vector<8x8xf32>
    %cst_100 = arith.constant dense<0.000000e+00> : vector<8x8xf32>
    %221 = tpu.matmul %220, %208, %cst_100 {dimension_numbers = #tpu.dot_dimension_numbers<[1], [0], [0], [1], [0, 0, 1, 1], [], []>} : vector<8x8xf32>, vector<8x8xf32>, vector<8x8xf32> -> vector<8x8xf32>
    %222 = vector.extract_strided_slice %27 {offsets = [24, 0], sizes = [8, 32], strides = [1, 1]} : vector<32x32xf32> to vector<8x32xf32>
    %cst_101 = arith.constant dense<0.000000e+00> : vector<8x32xf32>
    %223 = tpu.matmul %221, %222, %cst_101 {dimension_numbers = #tpu.dot_dimension_numbers<[1], [0], [0], [1], [0, 0, 1, 1], [], []>} : vector<8x8xf32>, vector<8x32xf32>, vector<8x32xf32> -> vector<8x32xf32>
    %224 = arith.addf %205, %223 : vector<8x32xf32>
    %225 = arith.addf %142, %224 : vector<8x32xf32>
    %cst_102 = arith.constant dense<0.000000e+00> : vector<8xf32>
    %226 = vector.multi_reduction <add>, %225, %cst_102 [1] : vector<8x32xf32> to vector<8xf32>
    %227 = vector.shape_cast %226 : vector<8xf32> to vector<8x1xf32>
    %cst_103 = arith.constant 3.200000e+01 : f32
    %228 = vector.broadcast %cst_103 : f32 to vector<8x1xf32>
    %229 = arith.divf %227, %228 : vector<8x1xf32>
    %230 = vector.broadcast %229 : vector<8x1xf32> to vector<8x32xf32>
    %231 = arith.subf %225, %230 : vector<8x32xf32>
    %232 = arith.mulf %231, %231 : vector<8x32xf32>
    %cst_104 = arith.constant dense<0.000000e+00> : vector<8xf32>
    %233 = vector.multi_reduction <add>, %232, %cst_104 [1] : vector<8x32xf32> to vector<8xf32>
    %234 = vector.shape_cast %233 : vector<8xf32> to vector<8x1xf32>
    %cst_105 = arith.constant 3.200000e+01 : f32
    %235 = vector.broadcast %cst_105 : f32 to vector<8x1xf32>
    %236 = arith.divf %234, %235 : vector<8x1xf32>
    %237 = vector.broadcast %229 : vector<8x1xf32> to vector<8x32xf32>
    %238 = arith.subf %225, %237 : vector<8x32xf32>
    %cst_106 = arith.constant 9.99999974E-6 : f32
    %239 = vector.broadcast %cst_106 : f32 to vector<8x1xf32>
    %240 = arith.addf %236, %239 : vector<8x1xf32>
    %241 = math.rsqrt %240 : vector<8x1xf32>
    %242 = vector.broadcast %241 : vector<8x1xf32> to vector<8x32xf32>
    %243 = arith.mulf %238, %242 : vector<8x32xf32>
    %244 = vector.broadcast %30 : vector<1x32xf32> to vector<8x32xf32>
    %245 = arith.mulf %243, %244 : vector<8x32xf32>
    %246 = vector.broadcast %31 : vector<1x32xf32> to vector<8x32xf32>
    %247 = arith.addf %245, %246 : vector<8x32xf32>
    %cst_107 = arith.constant dense<0.000000e+00> : vector<8x64xf32>
    %248 = tpu.matmul %247, %34, %cst_107 {dimension_numbers = #tpu.dot_dimension_numbers<[1], [0], [0], [1], [0, 0, 1, 1], [], []>} : vector<8x32xf32>, vector<32x64xf32>, vector<8x64xf32> -> vector<8x64xf32>
    %249 = vector.broadcast %35 : vector<1x64xf32> to vector<8x64xf32>
    %250 = arith.addf %248, %249 : vector<8x64xf32>
    %cst_108 = arith.constant 0.000000e+00 : f32
    %251 = vector.broadcast %cst_108 : f32 to vector<8x64xf32>
    %252 = arith.maximumf %250, %251 : vector<8x64xf32>
    %cst_109 = arith.constant dense<0.000000e+00> : vector<8x32xf32>
    %253 = tpu.matmul %252, %36, %cst_109 {dimension_numbers = #tpu.dot_dimension_numbers<[1], [0], [0], [1], [0, 0, 1, 1], [], []>} : vector<8x64xf32>, vector<64x32xf32>, vector<8x32xf32> -> vector<8x32xf32>
    %254 = vector.broadcast %37 : vector<1x32xf32> to vector<8x32xf32>
    %255 = arith.addf %253, %254 : vector<8x32xf32>
    %256 = arith.addf %247, %255 : vector<8x32xf32>
    %cst_110 = arith.constant dense<0.000000e+00> : vector<8xf32>
    %257 = vector.multi_reduction <add>, %256, %cst_110 [1] : vector<8x32xf32> to vector<8xf32>
    %258 = vector.shape_cast %257 : vector<8xf32> to vector<8x1xf32>
    %cst_111 = arith.constant 3.200000e+01 : f32
    %259 = vector.broadcast %cst_111 : f32 to vector<8x1xf32>
    %260 = arith.divf %258, %259 : vector<8x1xf32>
    %261 = vector.broadcast %260 : vector<8x1xf32> to vector<8x32xf32>
    %262 = arith.subf %256, %261 : vector<8x32xf32>
    %263 = arith.mulf %262, %262 : vector<8x32xf32>
    %cst_112 = arith.constant dense<0.000000e+00> : vector<8xf32>
    %264 = vector.multi_reduction <add>, %263, %cst_112 [1] : vector<8x32xf32> to vector<8xf32>
    %265 = vector.shape_cast %264 : vector<8xf32> to vector<8x1xf32>
    %cst_113 = arith.constant 3.200000e+01 : f32
    %266 = vector.broadcast %cst_113 : f32 to vector<8x1xf32>
    %267 = arith.divf %265, %266 : vector<8x1xf32>
    %268 = vector.broadcast %260 : vector<8x1xf32> to vector<8x32xf32>
    %269 = arith.subf %256, %268 : vector<8x32xf32>
    %cst_114 = arith.constant 9.99999974E-6 : f32
    %270 = vector.broadcast %cst_114 : f32 to vector<8x1xf32>
    %271 = arith.addf %267, %270 : vector<8x1xf32>
    %272 = math.rsqrt %271 : vector<8x1xf32>
    %273 = vector.broadcast %272 : vector<8x1xf32> to vector<8x32xf32>
    %274 = arith.mulf %269, %273 : vector<8x32xf32>
    %275 = vector.broadcast %32 : vector<1x32xf32> to vector<8x32xf32>
    %276 = arith.mulf %274, %275 : vector<8x32xf32>
    %277 = vector.broadcast %33 : vector<1x32xf32> to vector<8x32xf32>
    %278 = arith.addf %276, %277 : vector<8x32xf32>
    %c0_115 = arith.constant 0 : index
    %c0_116 = arith.constant 0 : index
    %c0_117 = arith.constant 0 : index
    %279 = vector.load %arg23[%c0_115, %c0_116, %c0_117] : memref<1x8x32xf32, #tpu.memory_space<vmem>>, vector<1x8x32xf32>
    %280 = vector.shape_cast %279 : vector<1x8x32xf32> to vector<8x32xf32>
    %281 = vector.shape_cast %278 : vector<8x32xf32> to vector<1x8x32xf32>
    tpu.vector_store %arg23[%c0_115, %c0_116, %c0_117], %281 {strides = array<i32>} : memref<1x8x32xf32, #tpu.memory_space<vmem>>, vector<1x8x32xf32>,
    return
  }
  func.func @transform_0(%arg0: i32, %arg1: memref<2xi32, #tpu.memory_space<smem>>) -> (i32, i32, i32) {
    %c0_i32 = arith.constant 0 : i32
    %c0_i32_0 = arith.constant 0 : i32
    %c0_i32_1 = arith.constant 0 : i32
    return %arg0, %c0_i32, %c0_i32_0 : i32, i32, i32
  }
  func.func @transform_1(%arg0: i32, %arg1: memref<2xi32, #tpu.memory_space<smem>>) -> (i32, i32, i32) {
    %c0_i32 = arith.constant 0 : i32
    %c0_i32_0 = arith.constant 0 : i32
    %c0_i32_1 = arith.constant 0 : i32
    return %arg0, %c0_i32, %c0_i32_0 : i32, i32, i32
  }
  func.func @transform_2(%arg0: i32, %arg1: memref<2xi32, #tpu.memory_space<smem>>) -> (i32, i32, i32) {
    %c0_i32 = arith.constant 0 : i32
    %c0_i32_0 = arith.constant 0 : i32
    %c0_i32_1 = arith.constant 0 : i32
    return %arg0, %c0_i32, %c0_i32_0 : i32, i32, i32
  }
  func.func @transform_3(%arg0: i32, %arg1: memref<2xi32, #tpu.memory_space<smem>>) -> (i32, i32) {
    %c0_i32 = arith.constant 0 : i32
    %c0_i32_0 = arith.constant 0 : i32
    %c0_i32_1 = arith.constant 0 : i32
    return %c0_i32, %c0_i32_0 : i32, i32
  }
  func.func @transform_4(%arg0: i32, %arg1: memref<2xi32, #tpu.memory_space<smem>>) -> (i32, i32) {
    %c0_i32 = arith.constant 0 : i32
    %c0_i32_0 = arith.constant 0 : i32
    %c0_i32_1 = arith.constant 0 : i32
    return %c0_i32, %c0_i32_0 : i32, i32
  }
  func.func @transform_5(%arg0: i32, %arg1: memref<2xi32, #tpu.memory_space<smem>>) -> (i32, i32) {
    %c0_i32 = arith.constant 0 : i32
    %c0_i32_0 = arith.constant 0 : i32
    %c0_i32_1 = arith.constant 0 : i32
    return %c0_i32, %c0_i32_0 : i32, i32
  }
  func.func @transform_6(%arg0: i32, %arg1: memref<2xi32, #tpu.memory_space<smem>>) -> (i32, i32) {
    %c0_i32 = arith.constant 0 : i32
    %c0_i32_0 = arith.constant 0 : i32
    %c0_i32_1 = arith.constant 0 : i32
    return %c0_i32, %c0_i32_0 : i32, i32
  }
  func.func @transform_7(%arg0: i32, %arg1: memref<2xi32, #tpu.memory_space<smem>>) -> (i32, i32) {
    %c0_i32 = arith.constant 0 : i32
    %c0_i32_0 = arith.constant 0 : i32
    %c0_i32_1 = arith.constant 0 : i32
    return %c0_i32, %c0_i32_0 : i32, i32
  }
  func.func @transform_8(%arg0: i32, %arg1: memref<2xi32, #tpu.memory_space<smem>>) -> (i32, i32) {
    %c0_i32 = arith.constant 0 : i32
    %c0_i32_0 = arith.constant 0 : i32
    %c0_i32_1 = arith.constant 0 : i32
    return %c0_i32, %c0_i32_0 : i32, i32
  }
  func.func @transform_9(%arg0: i32, %arg1: memref<2xi32, #tpu.memory_space<smem>>) -> (i32, i32) {
    %c0_i32 = arith.constant 0 : i32
    %c0_i32_0 = arith.constant 0 : i32
    %c0_i32_1 = arith.constant 0 : i32
    return %c0_i32, %c0_i32_0 : i32, i32
  }
  func.func @transform_10(%arg0: i32, %arg1: memref<2xi32, #tpu.memory_space<smem>>) -> (i32, i32) {
    %c0_i32 = arith.constant 0 : i32
    %c0_i32_0 = arith.constant 0 : i32
    %c0_i32_1 = arith.constant 0 : i32
    return %c0_i32, %c0_i32_0 : i32, i32
  }
  func.func @transform_11(%arg0: i32, %arg1: memref<2xi32, #tpu.memory_space<smem>>) -> (i32, i32) {
    %c0_i32 = arith.constant 0 : i32
    %c0_i32_0 = arith.constant 0 : i32
    %c0_i32_1 = arith.constant 0 : i32
    return %c0_i32, %c0_i32_0 : i32, i32
  }
  func.func @transform_12(%arg0: i32, %arg1: memref<2xi32, #tpu.memory_space<smem>>) -> (i32, i32) {
    %c0_i32 = arith.constant 0 : i32
    %c0_i32_0 = arith.constant 0 : i32
    %c0_i32_1 = arith.constant 0 : i32
    return %c0_i32, %c0_i32_0 : i32, i32
  }
  func.func @transform_13(%arg0: i32, %arg1: memref<2xi32, #tpu.memory_space<smem>>) -> (i32, i32) {
    %c0_i32 = arith.constant 0 : i32
    %c0_i32_0 = arith.constant 0 : i32
    %c0_i32_1 = arith.constant 0 : i32
    return %c0_i32, %c0_i32_0 : i32, i32
  }
  func.func @transform_14(%arg0: i32, %arg1: memref<2xi32, #tpu.memory_space<smem>>) -> (i32, i32) {
    %c0_i32 = arith.constant 0 : i32
    %c0_i32_0 = arith.constant 0 : i32
    %c0_i32_1 = arith.constant 0 : i32
    return %c0_i32, %c0_i32_0 : i32, i32
  }
  func.func @transform_15(%arg0: i32, %arg1: memref<2xi32, #tpu.memory_space<smem>>) -> (i32, i32) {
    %c0_i32 = arith.constant 0 : i32
    %c0_i32_0 = arith.constant 0 : i32
    %c0_i32_1 = arith.constant 0 : i32
    return %c0_i32, %c0_i32_0 : i32, i32
  }
  func.func @transform_16(%arg0: i32, %arg1: memref<2xi32, #tpu.memory_space<smem>>) -> (i32, i32) {
    %c0_i32 = arith.constant 0 : i32
    %c0_i32_0 = arith.constant 0 : i32
    %c0_i32_1 = arith.constant 0 : i32
    return %c0_i32, %c0_i32_0 : i32, i32
  }
  func.func @transform_17(%arg0: i32, %arg1: memref<2xi32, #tpu.memory_space<smem>>) -> (i32, i32) {
    %c0_i32 = arith.constant 0 : i32
    %c0_i32_0 = arith.constant 0 : i32
    %c0_i32_1 = arith.constant 0 : i32
    return %c0_i32, %c0_i32_0 : i32, i32
  }
  func.func @transform_18(%arg0: i32, %arg1: memref<2xi32, #tpu.memory_space<smem>>) -> (i32, i32) {
    %c0_i32 = arith.constant 0 : i32
    %c0_i32_0 = arith.constant 0 : i32
    %c0_i32_1 = arith.constant 0 : i32
    return %c0_i32, %c0_i32_0 : i32, i32
  }
  func.func @transform_19(%arg0: i32, %arg1: memref<2xi32, #tpu.memory_space<smem>>) -> (i32, i32) {
    %c0_i32 = arith.constant 0 : i32
    %c0_i32_0 = arith.constant 0 : i32
    %c0_i32_1 = arith.constant 0 : i32
    return %c0_i32, %c0_i32_0 : i32, i32
  }
  func.func @transform_20(%arg0: i32, %arg1: memref<2xi32, #tpu.memory_space<smem>>) -> (i32, i32) {
    %c0_i32 = arith.constant 0 : i32
    %c0_i32_0 = arith.constant 0 : i32
    %c0_i32_1 = arith.constant 0 : i32
    return %c0_i32, %c0_i32_0 : i32, i32
  }
  func.func @transform_21(%arg0: i32, %arg1: memref<2xi32, #tpu.memory_space<smem>>) -> (i32, i32, i32) {
    %c0_i32 = arith.constant 0 : i32
    %c0_i32_0 = arith.constant 0 : i32
    %c0_i32_1 = arith.constant 0 : i32
    return %arg0, %c0_i32, %c0_i32_0 : i32, i32, i32
  }
}

</mosaic_0001>

<llo_original>
// kernel: tpu_custom_call.1
$region0: #{tpu_custom_call.1}
  #allocation0 [shape = 'u32[]', space=smem, size = 0x4, offset = 0x4, fixed_abs, tag = 'smem constant byte address 0x4 - core index']
  #allocation1 [shape = 'u32[144,128]{1,0:T(1,128)}', space=vmem, size = 0x12000, scoped, tag = 'internal scratch']
  #allocation2 [shape = 's32[1]{0}', space=sflag, size = 0x4, scoped, tag = 'scoped memory for tpu_custom_call.1']
  #allocation3 [shape = 'u8[512]{0}', space=smem, size = 0x200, scoped, tag = 'prefetched SMEM operand 0']
  %s0 = inlined_call_operand.hbm [shape: s32[2], index: 0, kind: input, shape index: {}]
  %s1 = inlined_call_operand.hbm [shape: f32[2,8,32], index: 1, kind: input, shape index: {}]
  %s2 = inlined_call_operand.hbm [shape: f32[2,8,32], index: 2, kind: input, shape index: {}]
  %s3 = inlined_call_operand.hbm [shape: f32[2,8,32], index: 3, kind: input, shape index: {}]
  %s4 = inlined_call_operand.vmem [shape: f32[32,32], index: 4, kind: input, shape index: {}]
  %s5 = inlined_call_operand.vmem [shape: f32[32,32], index: 5, kind: input, shape index: {}]
  %s6 = inlined_call_operand.vmem [shape: f32[32,32], index: 6, kind: input, shape index: {}]
  %s7 = inlined_call_operand.hbm [shape: f32[32,32], index: 7, kind: input, shape index: {}]
  %s8 = inlined_call_operand.hbm [shape: f32[1,32], index: 8, kind: input, shape index: {}]
  %s9 = inlined_call_operand.hbm [shape: f32[1,32], index: 9, kind: input, shape index: {}]
  %s10 = inlined_call_operand.vmem [shape: f32[32,32], index: 10, kind: input, shape index: {}]
  %s11 = inlined_call_operand.hbm [shape: f32[32,32], index: 11, kind: input, shape index: {}]
  %s12 = inlined_call_operand.hbm [shape: f32[32,32], index: 12, kind: input, shape index: {}]
  %s13 = inlined_call_operand.hbm [shape: f32[32,32], index: 13, kind: input, shape index: {}]
  %s14 = inlined_call_operand.hbm [shape: f32[1,32], index: 14, kind: input, shape index: {}]
  %s15 = inlined_call_operand.hbm [shape: f32[1,32], index: 15, kind: input, shape index: {}]
  %s16 = inlined_call_operand.hbm [shape: f32[32,64], index: 16, kind: input, shape index: {}]
  %s17 = inlined_call_operand.hbm [shape: f32[1,64], index: 17, kind: input, shape index: {}]
  %s18 = inlined_call_operand.vmem [shape: f32[64,32], index: 18, kind: input, shape index: {}]
  %s19 = inlined_call_operand.vmem [shape: f32[1,32], index: 19, kind: input, shape index: {}]
  %s20 = inlined_call_operand.vmem [shape: f32[1,32], index: 20, kind: input, shape index: {}]
  %s21 = inlined_call_operand.vmem [shape: f32[1,32], index: 21, kind: input, shape index: {}]
  %s22 = inlined_call_operand.hbm [shape: f32[2,8,32], index: 22, kind: output, shape index: {}]
  %s23 = sld [smem:[#allocation0]]
  $region169: #{tpu_custom_call.1} parent=0
    _
  %s25 = ssub.s32 1, %s23
  %s26 = scalar_select 0, %s25, %s23
  %28 = dma.hbm_to_smem %s0, 16, [#allocation3], [#allocation2]
  %29 = dma.done [#allocation2], 16
  %30 = sfence
  $region1: #{tpu_custom_call.1} parent=0
    #allocation4 [shape = 'u8[8192]{0}', space=vmem, size = 0x2000, scoped, tag = 'input window, operand 1']
    #allocation5 [shape = 's32[2]{0}', space=sflag, size = 0x8, scoped, tag = 'scoped memory for tpu_custom_call.1']
    #allocation6 [shape = 's32[2]{0}', space=sflag, size = 0x8, scoped, tag = 'scoped memory for tpu_custom_call.1']
    #allocation7 [shape = 'u8[8192]{0}', space=vmem, size = 0x2000, scoped, tag = 'input window, operand 2']
    #allocation8 [shape = 's32[2]{0}', space=sflag, size = 0x8, scoped, tag = 'scoped memory for tpu_custom_call.1']
    #allocation9 [shape = 'u8[8192]{0}', space=vmem, size = 0x2000, scoped, tag = 'input window, operand 3']
    #allocation10 [shape = 'u8[16384]{0}', space=vmem, size = 0x4000, scoped, tag = 'input window, operand 7, single buffered']
    #allocation11 [shape = 's32[1]{0}', space=sflag, size = 0x4, scoped, tag = 'scoped memory for tpu_custom_call.1']
    #allocation12 [shape = 'u8[512]{0}', space=vmem, size = 0x400, scoped, tag = 'input window, operand 8, single buffered']
    #allocation13 [shape = 'u8[512]{0}', space=vmem, size = 0x400, scoped, tag = 'input window, operand 9, single buffered']
    #allocation14 [shape = 's32[1]{0}', space=sflag, size = 0x4, scoped, tag = 'scoped memory for tpu_custom_call.1']
    #allocation15 [shape = 'u8[16384]{0}', space=vmem, size = 0x4000, scoped, tag = 'input window, operand 11, single buffered']
    #allocation16 [shape = 'u8[16384]{0}', space=vmem, size = 0x4000, scoped, tag = 'input window, operand 12, single buffered']
    #allocation17 [shape = 's32[1]{0}', space=sflag, size = 0x4, scoped, tag = 'scoped memory for tpu_custom_call.1']
    #allocation18 [shape = 'u8[16384]{0}', space=vmem, size = 0x4000, scoped, tag = 'input window, operand 13, single buffered']
    #allocation19 [shape = 'u8[512]{0}', space=vmem, size = 0x400, scoped, tag = 'input window, operand 14, single buffered']
    #allocation20 [shape = 's32[1]{0}', space=sflag, size = 0x4, scoped, tag = 'scoped memory for tpu_custom_call.1']
    #allocation21 [shape = 'u8[512]{0}', space=vmem, size = 0x400, scoped, tag = 'input window, operand 15, single buffered']
    #allocation22 [shape = 'u8[16384]{0}', space=vmem, size = 0x4000, scoped, tag = 'input window, operand 16, single buffered']
    #allocation23 [shape = 's32[1]{0}', space=sflag, size = 0x4, scoped, tag = 'scoped memory for tpu_custom_call.1']
    #allocation24 [shape = 'u8[512]{0}', space=vmem, size = 0x400, scoped, tag = 'input window, operand 17, single buffered']
    #allocation25 [shape = 'u8[8192]{0}', space=vmem, size = 0x2000, scoped, tag = 'output window, operand 0']
    %31 = vsyncpa [#allocation5], 0
    %s32 = scalar_lea.sflag [#allocation5], 1
    %33 = vsyncpa %s32, 0
    %34 = vsyncpa [#allocation8], 0
    %s35 = scalar_lea.sflag [#allocation8], 1
    %36 = vsyncpa %s35, 0
    %37 = vsyncpa [#allocation11], 0
    %38 = vsyncpa [#allocation14], 0
    %39 = vsyncpa [#allocation17], 0
    %40 = vsyncpa [#allocation20], 0
    %41 = vsyncpa [#allocation23], 0
    %42 = vsyncpa [#allocation6], 0
    %s43 = scalar_lea.sflag [#allocation6], 1
    %44 = vsyncpa %s43, 0
    loop: start=0, step=1, limit=4
    $region2: #{tpu_custom_call.1} parent=1 // loop_pre_header
      _
    $region3: #{tpu_custom_call.1} parent=1 // loop_header
      %s46 = sphi 0, %s50
      %p47 = scmp.ge.s32.totalorder %s46, 4
      %s56 = sphi 0, %s58
      %s59 = sphi 0, %s56
      %s60 = sphi 0, %s59
      %s76 = sphi 0, %s60
      %s82 = sphi 0, %s84
      %s85 = sphi 0, %s82
      %s86 = sphi 0, %s85
      %s102 = sphi 0, %s86
      %s108 = sphi 0, %s110
      %s111 = sphi 0, %s108
      %s112 = sphi 0, %s111
      %s128 = sphi 0, %s112
      %s132 = sphi 0, %s132
      %s134 = sphi 0, %s132
      %s135 = sphi 0, %s134
      %s149 = sphi 0, %s135
      %s153 = sphi 0, %s153
      %s155 = sphi 0, %s153
      %s156 = sphi 0, %s155
      %s170 = sphi 0, %s156
      %s174 = sphi 0, %s174
      %s176 = sphi 0, %s174
      %s177 = sphi 0, %s176
      %s191 = sphi 0, %s177
      %s195 = sphi 0, %s195
      %s197 = sphi 0, %s195
      %s198 = sphi 0, %s197
      %s212 = sphi 0, %s198
      %s216 = sphi 0, %s216
      %s218 = sphi 0, %s216
      %s219 = sphi 0, %s218
      %s233 = sphi 0, %s219
      %s237 = sphi 0, %s237
      %s239 = sphi 0, %s237
      %s240 = sphi 0, %s239
      %s254 = sphi 0, %s240
      %s258 = sphi 0, %s258
      %s260 = sphi 0, %s258
      %s261 = sphi 0, %s260
      %s275 = sphi 0, %s261
      %s279 = sphi 0, %s279
      %s281 = sphi 0, %s279
      %s282 = sphi 0, %s281
      %s296 = sphi 0, %s282
      %s300 = sphi 0, %s300
      %s302 = sphi 0, %s300
      %s303 = sphi 0, %s302
      %s317 = sphi 0, %s303
      %s321 = sphi 0, %s321
      %s323 = sphi 0, %s321
      %s324 = sphi 0, %s323
      %s338 = sphi 0, %s324
      %s342 = sphi 0, %s342
      %s344 = sphi 0, %s342
      %s345 = sphi 0, %s344
      %s359 = sphi 0, %s345
      %s363 = sphi 0, %s363
      %s365 = sphi 0, %s363
      %s366 = sphi 0, %s365
      %s380 = sphi 0, %s366
      %s384 = sphi 0, %s384
      %s386 = sphi 0, %s384
      %s387 = sphi 0, %s386
      %s401 = sphi 0, %s387
      %s405 = sphi 0, %s405
      %s407 = sphi 0, %s405
      %s408 = sphi 0, %s407
      %s422 = sphi 0, %s408
      %s426 = sphi 0, %s426
      %s428 = sphi 0, %s426
      %s429 = sphi 0, %s428
      %s443 = sphi 0, %s429
      %s447 = sphi 0, %s447
      %s449 = sphi 0, %s447
      %s450 = sphi 0, %s449
      %s464 = sphi 0, %s450
      %s468 = sphi 0, %s468
      %s470 = sphi 0, %s468
      %s471 = sphi 0, %s470
      %s485 = sphi 0, %s471
      %s489 = sphi 0, %s489
      %s491 = sphi 0, %s489
      %s492 = sphi 0, %s491
      %s506 = sphi 0, %s492
      %s512 = sphi 0, %s514
      %s515 = sphi 0, %s512
      %s516 = sphi 0, %s515
      %s532 = sphi 0, %s516
    $region4: #{tpu_custom_call.1} parent=1 // loop_header_branch
      %49 = sbr.rel (%p47) target = $region8
    $region5: #{tpu_custom_call.1} parent=1 // loop_body
      %s51 = ssub.s32 %s46, 1
      %s52 = ssub.s32 %s46, 2
      %s53 = sadd.s32 %s46, 1
      %s54 = ssub.s32 %s46, %s53
      %p55 = scmp.eq.s32.totalorder %s54, 0
      %s57 = sadd.s32 %s56, 1
      %s58 = scalar_select %p55, %s56, %s57
      %p61 = pneg %p55
      %p62 = scmp.eq.s32.totalorder %s46, 1
      %p63 = por %p61, %p62
      %p64 = scmp.ne.s32.totalorder %s56, %s59
      %p65 = scmp.eq.s32.totalorder %s46, 0
      %p66 = por %p64, %p65
      %p67 = scmp.ne.s32.totalorder %s56, %s59
      %p68 = scmp.eq.s32.totalorder %s51, 1
      %p69 = por %p67, %p68
      %p70 = scmp.ne.s32.totalorder %s59, %s60
      %p71 = scmp.eq.s32.totalorder %s51, 0
      %p72 = por %p70, %p71
      %p73 = scmp.ne.s32.totalorder %s59, %s60
      %p74 = scmp.eq.s32.totalorder %s52, 1
      %p75 = por %p73, %p74
      %p77 = scmp.ne.s32.totalorder %s60, %s76
      %p78 = scmp.eq.s32.totalorder %s52, 0
      %p79 = por %p77, %p78
      %s80 = ssub.s32 %s46, %s53
      %p81 = scmp.eq.s32.totalorder %s80, 0
      %s83 = sadd.s32 %s82, 1
      %s84 = scalar_select %p81, %s82, %s83
      %p87 = pneg %p81
      %p88 = scmp.eq.s32.totalorder %s46, 1
      %p89 = por %p87, %p88
      %p90 = scmp.ne.s32.totalorder %s82, %s85
      %p91 = scmp.eq.s32.totalorder %s46, 0
      %p92 = por %p90, %p91
      %p93 = scmp.ne.s32.totalorder %s82, %s85
      %p94 = scmp.eq.s32.totalorder %s51, 1
      %p95 = por %p93, %p94
      %p96 = scmp.ne.s32.totalorder %s85, %s86
      %p97 = scmp.eq.s32.totalorder %s51, 0
      %p98 = por %p96, %p97
      %p99 = scmp.ne.s32.totalorder %s85, %s86
      %p100 = scmp.eq.s32.totalorder %s52, 1
      %p101 = por %p99, %p100
      %p103 = scmp.ne.s32.totalorder %s86, %s102
      %p104 = scmp.eq.s32.totalorder %s52, 0
      %p105 = por %p103, %p104
      %s106 = ssub.s32 %s46, %s53
      %p107 = scmp.eq.s32.totalorder %s106, 0
      %s109 = sadd.s32 %s108, 1
      %s110 = scalar_select %p107, %s108, %s109
      %p113 = pneg %p107
      %p114 = scmp.eq.s32.totalorder %s46, 1
      %p115 = por %p113, %p114
      %p116 = scmp.ne.s32.totalorder %s108, %s111
      %p117 = scmp.eq.s32.totalorder %s46, 0
      %p118 = por %p116, %p117
      %p119 = scmp.ne.s32.totalorder %s108, %s111
      %p120 = scmp.eq.s32.totalorder %s51, 1
      %p121 = por %p119, %p120
      %p122 = scmp.ne.s32.totalorder %s111, %s112
      %p123 = scmp.eq.s32.totalorder %s51, 0
      %p124 = por %p122, %p123
      %p125 = scmp.ne.s32.totalorder %s111, %s112
      %p126 = scmp.eq.s32.totalorder %s52, 1
      %p127 = por %p125, %p126
      %p129 = scmp.ne.s32.totalorder %s112, %s128
      %p130 = scmp.eq.s32.totalorder %s52, 0
      %p131 = por %p129, %p130
      %s133 = sadd.s32 %s132, 1
      %p136 = scmp.eq.s32.totalorder %s46, 1
      %p137 = scmp.ne.s32.totalorder %s132, %s134
      %p138 = scmp.eq.s32.totalorder %s46, 0
      %p139 = por %p137, %p138
      %p140 = scmp.ne.s32.totalorder %s132, %s134
      %p141 = scmp.eq.s32.totalorder %s51, 1
      %p142 = por %p140, %p141
      %p143 = scmp.ne.s32.totalorder %s134, %s135
      %p144 = scmp.eq.s32.totalorder %s51, 0
      %p145 = por %p143, %p144
      %p146 = scmp.ne.s32.totalorder %s134, %s135
      %p147 = scmp.eq.s32.totalorder %s52, 1
      %p148 = por %p146, %p147
      %p150 = scmp.ne.s32.totalorder %s135, %s149
      %p151 = scmp.eq.s32.totalorder %s52, 0
      %p152 = por %p150, %p151
      %s154 = sadd.s32 %s153, 1
      %p157 = scmp.eq.s32.totalorder %s46, 1
      %p158 = scmp.ne.s32.totalorder %s153, %s155
      %p159 = scmp.eq.s32.totalorder %s46, 0
      %p160 = por %p158, %p159
      %p161 = scmp.ne.s32.totalorder %s153, %s155
      %p162 = scmp.eq.s32.totalorder %s51, 1
      %p163 = por %p161, %p162
      %p164 = scmp.ne.s32.totalorder %s155, %s156
      %p165 = scmp.eq.s32.totalorder %s51, 0
      %p166 = por %p164, %p165
      %p167 = scmp.ne.s32.totalorder %s155, %s156
      %p168 = scmp.eq.s32.totalorder %s52, 1
      %p169 = por %p167, %p168
      %p171 = scmp.ne.s32.totalorder %s156, %s170
      %p172 = scmp.eq.s32.totalorder %s52, 0
      %p173 = por %p171, %p172
      %s175 = sadd.s32 %s174, 1
      %p178 = scmp.eq.s32.totalorder %s46, 1
      %p179 = scmp.ne.s32.totalorder %s174, %s176
      %p180 = scmp.eq.s32.totalorder %s46, 0
      %p181 = por %p179, %p180
      %p182 = scmp.ne.s32.totalorder %s174, %s176
      %p183 = scmp.eq.s32.totalorder %s51, 1
      %p184 = por %p182, %p183
      %p185 = scmp.ne.s32.totalorder %s176, %s177
      %p186 = scmp.eq.s32.totalorder %s51, 0
      %p187 = por %p185, %p186
      %p188 = scmp.ne.s32.totalorder %s176, %s177
      %p189 = scmp.eq.s32.totalorder %s52, 1
      %p190 = por %p188, %p189
      %p192 = scmp.ne.s32.totalorder %s177, %s191
      %p193 = scmp.eq.s32.totalorder %s52, 0
      %p194 = por %p192, %p193
      %s196 = sadd.s32 %s195, 1
      %p199 = scmp.eq.s32.totalorder %s46, 1
      %p200 = scmp.ne.s32.totalorder %s195, %s197
      %p201 = scmp.eq.s32.totalorder %s46, 0
      %p202 = por %p200, %p201
      %p203 = scmp.ne.s32.totalorder %s195, %s197
      %p204 = scmp.eq.s32.totalorder %s51, 1
      %p205 = por %p203, %p204
      %p206 = scmp.ne.s32.totalorder %s197, %s198
      %p207 = scmp.eq.s32.totalorder %s51, 0
      %p208 = por %p206, %p207
      %p209 = scmp.ne.s32.totalorder %s197, %s198
      %p210 = scmp.eq.s32.totalorder %s52, 1
      %p211 = por %p209, %p210
      %p213 = scmp.ne.s32.totalorder %s198, %s212
      %p214 = scmp.eq.s32.totalorder %s52, 0
      %p215 = por %p213, %p214
      %s217 = sadd.s32 %s216, 1
      %p220 = scmp.eq.s32.totalorder %s46, 1
      %p221 = scmp.ne.s32.totalorder %s216, %s218
      %p222 = scmp.eq.s32.totalorder %s46, 0
      %p223 = por %p221, %p222
      %p224 = scmp.ne.s32.totalorder %s216, %s218
      %p225 = scmp.eq.s32.totalorder %s51, 1
      %p226 = por %p224, %p225
      %p227 = scmp.ne.s32.totalorder %s218, %s219
      %p228 = scmp.eq.s32.totalorder %s51, 0
      %p229 = por %p227, %p228
      %p230 = scmp.ne.s32.totalorder %s218, %s219
      %p231 = scmp.eq.s32.totalorder %s52, 1
      %p232 = por %p230, %p231
      %p234 = scmp.ne.s32.totalorder %s219, %s233
      %p235 = scmp.eq.s32.totalorder %s52, 0
      %p236 = por %p234, %p235
      %s238 = sadd.s32 %s237, 1
      %p241 = scmp.eq.s32.totalorder %s46, 1
      %p242 = scmp.ne.s32.totalorder %s237, %s239
      %p243 = scmp.eq.s32.totalorder %s46, 0
      %p244 = por %p242, %p243
      %p245 = scmp.ne.s32.totalorder %s237, %s239
      %p246 = scmp.eq.s32.totalorder %s51, 1
      %p247 = por %p245, %p246
      %p248 = scmp.ne.s32.totalorder %s239, %s240
      %p249 = scmp.eq.s32.totalorder %s51, 0
      %p250 = por %p248, %p249
      %p251 = scmp.ne.s32.totalorder %s239, %s240
      %p252 = scmp.eq.s32.totalorder %s52, 1
      %p253 = por %p251, %p252
      %p255 = scmp.ne.s32.totalorder %s240, %s254
      %p256 = scmp.eq.s32.totalorder %s52, 0
      %p257 = por %p255, %p256
      %s259 = sadd.s32 %s258, 1
      %p262 = scmp.eq.s32.totalorder %s46, 1
      %p263 = scmp.ne.s32.totalorder %s258, %s260
      %p264 = scmp.eq.s32.totalorder %s46, 0
      %p265 = por %p263, %p264
      %p266 = scmp.ne.s32.totalorder %s258, %s260
      %p267 = scmp.eq.s32.totalorder %s51, 1
      %p268 = por %p266, %p267
      %p269 = scmp.ne.s32.totalorder %s260, %s261
      %p270 = scmp.eq.s32.totalorder %s51, 0
      %p271 = por %p269, %p270
      %p272 = scmp.ne.s32.totalorder %s260, %s261
      %p273 = scmp.eq.s32.totalorder %s52, 1
      %p274 = por %p272, %p273
      %p276 = scmp.ne.s32.totalorder %s261, %s275
      %p277 = scmp.eq.s32.totalorder %s52, 0
      %p278 = por %p276, %p277
      %s280 = sadd.s32 %s279, 1
      %p283 = scmp.eq.s32.totalorder %s46, 1
      %p284 = scmp.ne.s32.totalorder %s279, %s281
      %p285 = scmp.eq.s32.totalorder %s46, 0
      %p286 = por %p284, %p285
      %p287 = scmp.ne.s32.totalorder %s279, %s281
      %p288 = scmp.eq.s32.totalorder %s51, 1
      %p289 = por %p287, %p288
      %p290 = scmp.ne.s32.totalorder %s281, %s282
      %p291 = scmp.eq.s32.totalorder %s51, 0
      %p292 = por %p290, %p291
      %p293 = scmp.ne.s32.totalorder %s281, %s282
      %p294 = scmp.eq.s32.totalorder %s52, 1
      %p295 = por %p293, %p294
      %p297 = scmp.ne.s32.totalorder %s282, %s296
      %p298 = scmp.eq.s32.totalorder %s52, 0
      %p299 = por %p297, %p298
      %s301 = sadd.s32 %s300, 1
      %p304 = scmp.eq.s32.totalorder %s46, 1
      %p305 = scmp.ne.s32.totalorder %s300, %s302
      %p306 = scmp.eq.s32.totalorder %s46, 0
      %p307 = por %p305, %p306
      %p308 = scmp.ne.s32.totalorder %s300, %s302
      %p309 = scmp.eq.s32.totalorder %s51, 1
      %p310 = por %p308, %p309
      %p311 = scmp.ne.s32.totalorder %s302, %s303
      %p312 = scmp.eq.s32.totalorder %s51, 0
      %p313 = por %p311, %p312
      %p314 = scmp.ne.s32.totalorder %s302, %s303
      %p315 = scmp.eq.s32.totalorder %s52, 1
      %p316 = por %p314, %p315
      %p318 = scmp.ne.s32.totalorder %s303, %s317
      %p319 = scmp.eq.s32.totalorder %s52, 0
      %p320 = por %p318, %p319
      %s322 = sadd.s32 %s321, 1
      %p325 = scmp.eq.s32.totalorder %s46, 1
      %p326 = scmp.ne.s32.totalorder %s321, %s323
      %p327 = scmp.eq.s32.totalorder %s46, 0
      %p328 = por %p326, %p327
      %p329 = scmp.ne.s32.totalorder %s321, %s323
      %p330 = scmp.eq.s32.totalorder %s51, 1
      %p331 = por %p329, %p330
      %p332 = scmp.ne.s32.totalorder %s323, %s324
      %p333 = scmp.eq.s32.totalorder %s51, 0
      %p334 = por %p332, %p333
      %p335 = scmp.ne.s32.totalorder %s323, %s324
      %p336 = scmp.eq.s32.totalorder %s52, 1
      %p337 = por %p335, %p336
      %p339 = scmp.ne.s32.totalorder %s324, %s338
      %p340 = scmp.eq.s32.totalorder %s52, 0
      %p341 = por %p339, %p340
      %s343 = sadd.s32 %s342, 1
      %p346 = scmp.eq.s32.totalorder %s46, 1
      %p347 = scmp.ne.s32.totalorder %s342, %s344
      %p348 = scmp.eq.s32.totalorder %s46, 0
      %p349 = por %p347, %p348
      %p350 = scmp.ne.s32.totalorder %s342, %s344
      %p351 = scmp.eq.s32.totalorder %s51, 1
      %p352 = por %p350, %p351
      %p353 = scmp.ne.s32.totalorder %s344, %s345
      %p354 = scmp.eq.s32.totalorder %s51, 0
      %p355 = por %p353, %p354
      %p356 = scmp.ne.s32.totalorder %s344, %s345
      %p357 = scmp.eq.s32.totalorder %s52, 1
      %p358 = por %p356, %p357
      %p360 = scmp.ne.s32.totalorder %s345, %s359
      %p361 = scmp.eq.s32.totalorder %s52, 0
      %p362 = por %p360, %p361
      %s364 = sadd.s32 %s363, 1
      %p367 = scmp.eq.s32.totalorder %s46, 1
      %p368 = scmp.ne.s32.totalorder %s363, %s365
      %p369 = scmp.eq.s32.totalorder %s46, 0
      %p370 = por %p368, %p369
      %p371 = scmp.ne.s32.totalorder %s363, %s365
      %p372 = scmp.eq.s32.totalorder %s51, 1
      %p373 = por %p371, %p372
      %p374 = scmp.ne.s32.totalorder %s365, %s366
      %p375 = scmp.eq.s32.totalorder %s51, 0
      %p376 = por %p374, %p375
      %p377 = scmp.ne.s32.totalorder %s365, %s366
      %p378 = scmp.eq.s32.totalorder %s52, 1
      %p379 = por %p377, %p378
      %p381 = scmp.ne.s32.totalorder %s366, %s380
      %p382 = scmp.eq.s32.totalorder %s52, 0
      %p383 = por %p381, %p382
      %s385 = sadd.s32 %s384, 1
      %p388 = scmp.eq.s32.totalorder %s46, 1
      %p389 = scmp.ne.s32.totalorder %s384, %s386
      %p390 = scmp.eq.s32.totalorder %s46, 0
      %p391 = por %p389, %p390
      %p392 = scmp.ne.s32.totalorder %s384, %s386
      %p393 = scmp.eq.s32.totalorder %s51, 1
      %p394 = por %p392, %p393
      %p395 = scmp.ne.s32.totalorder %s386, %s387
      %p396 = scmp.eq.s32.totalorder %s51, 0
      %p397 = por %p395, %p396
      %p398 = scmp.ne.s32.totalorder %s386, %s387
      %p399 = scmp.eq.s32.totalorder %s52, 1
      %p400 = por %p398, %p399
      %p402 = scmp.ne.s32.totalorder %s387, %s401
      %p403 = scmp.eq.s32.totalorder %s52, 0
      %p404 = por %p402, %p403
      %s406 = sadd.s32 %s405, 1
      %p409 = scmp.eq.s32.totalorder %s46, 1
      %p410 = scmp.ne.s32.totalorder %s405, %s407
      %p411 = scmp.eq.s32.totalorder %s46, 0
      %p412 = por %p410, %p411
      %p413 = scmp.ne.s32.totalorder %s405, %s407
      %p414 = scmp.eq.s32.totalorder %s51, 1
      %p415 = por %p413, %p414
      %p416 = scmp.ne.s32.totalorder %s407, %s408
      %p417 = scmp.eq.s32.totalorder %s51, 0
      %p418 = por %p416, %p417
      %p419 = scmp.ne.s32.totalorder %s407, %s408
      %p420 = scmp.eq.s32.totalorder %s52, 1
      %p421 = por %p419, %p420
      %p423 = scmp.ne.s32.totalorder %s408, %s422
      %p424 = scmp.eq.s32.totalorder %s52, 0
      %p425 = por %p423, %p424
      %s427 = sadd.s32 %s426, 1
      %p430 = scmp.eq.s32.totalorder %s46, 1
      %p431 = scmp.ne.s32.totalorder %s426, %s428
      %p432 = scmp.eq.s32.totalorder %s46, 0
      %p433 = por %p431, %p432
      %p434 = scmp.ne.s32.totalorder %s426, %s428
      %p435 = scmp.eq.s32.totalorder %s51, 1
      %p436 = por %p434, %p435
      %p437 = scmp.ne.s32.totalorder %s428, %s429
      %p438 = scmp.eq.s32.totalorder %s51, 0
      %p439 = por %p437, %p438
      %p440 = scmp.ne.s32.totalorder %s428, %s429
      %p441 = scmp.eq.s32.totalorder %s52, 1
      %p442 = por %p440, %p441
      %p444 = scmp.ne.s32.totalorder %s429, %s443
      %p445 = scmp.eq.s32.totalorder %s52, 0
      %p446 = por %p444, %p445
      %s448 = sadd.s32 %s447, 1
      %p451 = scmp.eq.s32.totalorder %s46, 1
      %p452 = scmp.ne.s32.totalorder %s447, %s449
      %p453 = scmp.eq.s32.totalorder %s46, 0
      %p454 = por %p452, %p453
      %p455 = scmp.ne.s32.totalorder %s447, %s449
      %p456 = scmp.eq.s32.totalorder %s51, 1
      %p457 = por %p455, %p456
      %p458 = scmp.ne.s32.totalorder %s449, %s450
      %p459 = scmp.eq.s32.totalorder %s51, 0
      %p460 = por %p458, %p459
      %p461 = scmp.ne.s32.totalorder %s449, %s450
      %p462 = scmp.eq.s32.totalorder %s52, 1
      %p463 = por %p461, %p462
      %p465 = scmp.ne.s32.totalorder %s450, %s464
      %p466 = scmp.eq.s32.totalorder %s52, 0
      %p467 = por %p465, %p466
      %s469 = sadd.s32 %s468, 1
      %p472 = scmp.eq.s32.totalorder %s46, 1
      %p473 = scmp.ne.s32.totalorder %s468, %s470
      %p474 = scmp.eq.s32.totalorder %s46, 0
      %p475 = por %p473, %p474
      %p476 = scmp.ne.s32.totalorder %s468, %s470
      %p477 = scmp.eq.s32.totalorder %s51, 1
      %p478 = por %p476, %p477
      %p479 = scmp.ne.s32.totalorder %s470, %s471
      %p480 = scmp.eq.s32.totalorder %s51, 0
      %p481 = por %p479, %p480
      %p482 = scmp.ne.s32.totalorder %s470, %s471
      %p483 = scmp.eq.s32.totalorder %s52, 1
      %p484 = por %p482, %p483
      %p486 = scmp.ne.s32.totalorder %s471, %s485
      %p487 = scmp.eq.s32.totalorder %s52, 0
      %p488 = por %p486, %p487
      %s490 = sadd.s32 %s489, 1
      %p493 = scmp.eq.s32.totalorder %s46, 1
      %p494 = scmp.ne.s32.totalorder %s489, %s491
      %p495 = scmp.eq.s32.totalorder %s46, 0
      %p496 = por %p494, %p495
      %p497 = scmp.ne.s32.totalorder %s489, %s491
      %p498 = scmp.eq.s32.totalorder %s51, 1
      %p499 = por %p497, %p498
      %p500 = scmp.ne.s32.totalorder %s491, %s492
      %p501 = scmp.eq.s32.totalorder %s51, 0
      %p502 = por %p500, %p501
      %p503 = scmp.ne.s32.totalorder %s491, %s492
      %p504 = scmp.eq.s32.totalorder %s52, 1
      %p505 = por %p503, %p504
      %p507 = scmp.ne.s32.totalorder %s492, %s506
      %p508 = scmp.eq.s32.totalorder %s52, 0
      %p509 = por %p507, %p508
      %s510 = ssub.s32 %s46, %s53
      %p511 = scmp.eq.s32.totalorder %s510, 0
      %s513 = sadd.s32 %s512, 1
      %s514 = scalar_select %p511, %s512, %s513
      %p517 = pneg %p511
      %p518 = scmp.eq.s32.totalorder %s46, 1
      %p519 = por %p517, %p518
      %p520 = scmp.ne.s32.totalorder %s512, %s515
      %p521 = scmp.eq.s32.totalorder %s46, 0
      %p522 = por %p520, %p521
      %p523 = scmp.ne.s32.totalorder %s512, %s515
      %p524 = scmp.eq.s32.totalorder %s51, 1
      %p525 = por %p523, %p524
      %p526 = scmp.ne.s32.totalorder %s515, %s516
      %p527 = scmp.eq.s32.totalorder %s51, 0
      %p528 = por %p526, %p527
      %p529 = scmp.ne.s32.totalorder %s515, %s516
      %p530 = scmp.eq.s32.totalorder %s52, 1
      %p531 = por %p529, %p530
      %p533 = scmp.ne.s32.totalorder %s516, %s532
      %p534 = scmp.eq.s32.totalorder %s52, 0
      %p535 = por %p533, %p534
      %p536 = scmp.le.s32.totalorder 1, %s46
      %p537 = scmp.lt.s32.totalorder %s46, 3
      %p538 = pnand %p536, %p537
      %p539 = pneg %p538
      // Predicated region
      $region9: #{tpu_custom_call.1} parent=5 // pred_check
        _
      $region10: #{tpu_custom_call.1} parent=5 // pred_check_branch
        %541 = sbr.rel (%p538) target = $region12
      $region11: #{tpu_custom_call.1} parent=5 // pred_region
        %s542 = ssub.s32 %s46, 1
        // Predicated region
        $region13: #{tpu_custom_call.1} parent=11 // pred_check
          %p543 = pneg %p145
        $region14: #{tpu_custom_call.1} parent=11 // pred_check_branch
          %545 = sbr.rel (%p543) target = $region16
        $region15: #{tpu_custom_call.1} parent=11 // pred_region
          _
        $region16: #{tpu_custom_call.1} parent=11 // pred_fallthru
          _
        // Predicated region
        $region17: #{tpu_custom_call.1} parent=11 // pred_check
          %p546 = pneg %p166
        $region18: #{tpu_custom_call.1} parent=11 // pred_check_branch
          %548 = sbr.rel (%p546) target = $region20
        $region19: #{tpu_custom_call.1} parent=11 // pred_region
          _
        $region20: #{tpu_custom_call.1} parent=11 // pred_fallthru
          _
        // Predicated region
        $region21: #{tpu_custom_call.1} parent=11 // pred_check
          %p549 = pneg %p187
        $region22: #{tpu_custom_call.1} parent=11 // pred_check_branch
          %551 = sbr.rel (%p549) target = $region24
        $region23: #{tpu_custom_call.1} parent=11 // pred_region
          _
        $region24: #{tpu_custom_call.1} parent=11 // pred_fallthru
          _
        // Predicated region
        $region25: #{tpu_custom_call.1} parent=11 // pred_check
          %p552 = pneg %p208
        $region26: #{tpu_custom_call.1} parent=11 // pred_check_branch
          %554 = sbr.rel (%p552) target = $region28
        $region27: #{tpu_custom_call.1} parent=11 // pred_region
          %s556 = ssub.s32 512, 512
          %557 = vsyncadd [#allocation11], %s556
          %s558 = sshll.u32 [#allocation10], 4
          %s559 = int_to_ptr.vmem [resolvable:$true] %s558
          %564 = dma.hbm_to_vmem [thread:$0]  %s7, 512, %s559, [#allocation11], 128, 128, 8
        $region28: #{tpu_custom_call.1} parent=11 // pred_fallthru
          _
        // Predicated region
        $region29: #{tpu_custom_call.1} parent=11 // pred_check
          %p565 = pneg %p229
        $region30: #{tpu_custom_call.1} parent=11 // pred_check_branch
          %567 = sbr.rel (%p565) target = $region32
        $region31: #{tpu_custom_call.1} parent=11 // pred_region
          %s569 = ssub.s32 16, 16
          %570 = vsyncadd [#allocation11], %s569
          %s572 = sshll.u32 [#allocation12], 4
          %s573 = int_to_ptr.vmem [resolvable:$true] %s572
          %575 = dma.hbm_to_vmem [thread:$0]  %s8, 16, %s573, [#allocation11]
        $region32: #{tpu_custom_call.1} parent=11 // pred_fallthru
          _
        // Predicated region
        $region33: #{tpu_custom_call.1} parent=11 // pred_check
          %p576 = pneg %p250
        $region34: #{tpu_custom_call.1} parent=11 // pred_check_branch
          %578 = sbr.rel (%p576) target = $region36
        $region35: #{tpu_custom_call.1} parent=11 // pred_region
          %s580 = ssub.s32 16, 16
          %581 = vsyncadd [#allocation14], %s580
          %s583 = sshll.u32 [#allocation13], 4
          %s584 = int_to_ptr.vmem [resolvable:$true] %s583
          %586 = dma.hbm_to_vmem [thread:$0]  %s9, 16, %s584, [#allocation14]
        $region36: #{tpu_custom_call.1} parent=11 // pred_fallthru
          _
        // Predicated region
        $region37: #{tpu_custom_call.1} parent=11 // pred_check
          %p587 = pneg %p271
        $region38: #{tpu_custom_call.1} parent=11 // pred_check_branch
          %589 = sbr.rel (%p587) target = $region40
        $region39: #{tpu_custom_call.1} parent=11 // pred_region
          _
        $region40: #{tpu_custom_call.1} parent=11 // pred_fallthru
          _
        // Predicated region
        $region41: #{tpu_custom_call.1} parent=11 // pred_check
          %p590 = pneg %p292
        $region42: #{tpu_custom_call.1} parent=11 // pred_check_branch
          %592 = sbr.rel (%p590) target = $region44
        $region43: #{tpu_custom_call.1} parent=11 // pred_region
          %s594 = ssub.s32 512, 512
          %595 = vsyncadd [#allocation14], %s594
          %s596 = sshll.u32 [#allocation15], 4
          %s597 = int_to_ptr.vmem [resolvable:$true] %s596
          %602 = dma.hbm_to_vmem [thread:$0]  %s11, 512, %s597, [#allocation14], 128, 128, 8
        $region44: #{tpu_custom_call.1} parent=11 // pred_fallthru
          _
        // Predicated region
        $region45: #{tpu_custom_call.1} parent=11 // pred_check
          %p603 = pneg %p313
        $region46: #{tpu_custom_call.1} parent=11 // pred_check_branch
          %605 = sbr.rel (%p603) target = $region48
        $region47: #{tpu_custom_call.1} parent=11 // pred_region
          %s607 = ssub.s32 512, 512
          %608 = vsyncadd [#allocation17], %s607
          %s609 = sshll.u32 [#allocation16], 4
          %s610 = int_to_ptr.vmem [resolvable:$true] %s609
          %615 = dma.hbm_to_vmem [thread:$0]  %s12, 512, %s610, [#allocation17], 128, 128, 8
        $region48: #{tpu_custom_call.1} parent=11 // pred_fallthru
          _
        // Predicated region
        $region49: #{tpu_custom_call.1} parent=11 // pred_check
          %p616 = pneg %p334
        $region50: #{tpu_custom_call.1} parent=11 // pred_check_branch
          %618 = sbr.rel (%p616) target = $region52
        $region51: #{tpu_custom_call.1} parent=11 // pred_region
          %s620 = ssub.s32 512, 512
          %621 = vsyncadd [#allocation17], %s620
          %s622 = sshll.u32 [#allocation18], 4
          %s623 = int_to_ptr.vmem [resolvable:$true] %s622
          %628 = dma.hbm_to_vmem [thread:$0]  %s13, 512, %s623, [#allocation17], 128, 128, 8
        $region52: #{tpu_custom_call.1} parent=11 // pred_fallthru
          _
        // Predicated region
        $region53: #{tpu_custom_call.1} parent=11 // pred_check
          %p629 = pneg %p355
        $region54: #{tpu_custom_call.1} parent=11 // pred_check_branch
          %631 = sbr.rel (%p629) target = $region56
        $region55: #{tpu_custom_call.1} parent=11 // pred_region
          %s633 = ssub.s32 16, 16
          %634 = vsyncadd [#allocation20], %s633
          %s636 = sshll.u32 [#allocation19], 4
          %s637 = int_to_ptr.vmem [resolvable:$true] %s636
          %639 = dma.hbm_to_vmem [thread:$0]  %s14, 16, %s637, [#allocation20]
        $region56: #{tpu_custom_call.1} parent=11 // pred_fallthru
          _
        // Predicated region
        $region57: #{tpu_custom_call.1} parent=11 // pred_check
          %p640 = pneg %p376
        $region58: #{tpu_custom_call.1} parent=11 // pred_check_branch
          %642 = sbr.rel (%p640) target = $region60
        $region59: #{tpu_custom_call.1} parent=11 // pred_region
          %s644 = ssub.s32 16, 16
          %645 = vsyncadd [#allocation20], %s644
          %s647 = sshll.u32 [#allocation21], 4
          %s648 = int_to_ptr.vmem [resolvable:$true] %s647
          %650 = dma.hbm_to_vmem [thread:$0]  %s15, 16, %s648, [#allocation20]
        $region60: #{tpu_custom_call.1} parent=11 // pred_fallthru
          _
        // Predicated region
        $region61: #{tpu_custom_call.1} parent=11 // pred_check
          %p651 = pneg %p397
        $region62: #{tpu_custom_call.1} parent=11 // pred_check_branch
          %653 = sbr.rel (%p651) target = $region64
        $region63: #{tpu_custom_call.1} parent=11 // pred_region
          %s655 = ssub.s32 512, 512
          %656 = vsyncadd [#allocation23], %s655
          %s657 = sshll.u32 [#allocation22], 4
          %s658 = int_to_ptr.vmem [resolvable:$true] %s657
          %663 = dma.hbm_to_vmem [thread:$0]  %s16, 512, %s658, [#allocation23], 128, 128, 8
        $region64: #{tpu_custom_call.1} parent=11 // pred_fallthru
          _
        // Predicated region
        $region65: #{tpu_custom_call.1} parent=11 // pred_check
          %p664 = pneg %p418
        $region66: #{tpu_custom_call.1} parent=11 // pred_check_branch
          %666 = sbr.rel (%p664) target = $region68
        $region67: #{tpu_custom_call.1} parent=11 // pred_region
          %s668 = ssub.s32 16, 16
          %669 = vsyncadd [#allocation23], %s668
          %s671 = sshll.u32 [#allocation24], 4
          %s672 = int_to_ptr.vmem [resolvable:$true] %s671
          %674 = dma.hbm_to_vmem [thread:$0]  %s17, 16, %s672, [#allocation23]
        $region68: #{tpu_custom_call.1} parent=11 // pred_fallthru
          _
        // Predicated region
        $region69: #{tpu_custom_call.1} parent=11 // pred_check
          %p675 = pneg %p439
        $region70: #{tpu_custom_call.1} parent=11 // pred_check_branch
          %677 = sbr.rel (%p675) target = $region72
        $region71: #{tpu_custom_call.1} parent=11 // pred_region
          _
        $region72: #{tpu_custom_call.1} parent=11 // pred_fallthru
          _
        // Predicated region
        $region73: #{tpu_custom_call.1} parent=11 // pred_check
          %p678 = pneg %p460
        $region74: #{tpu_custom_call.1} parent=11 // pred_check_branch
          %680 = sbr.rel (%p678) target = $region76
        $region75: #{tpu_custom_call.1} parent=11 // pred_region
          _
        $region76: #{tpu_custom_call.1} parent=11 // pred_fallthru
          _
        // Predicated region
        $region77: #{tpu_custom_call.1} parent=11 // pred_check
          %p681 = pneg %p481
        $region78: #{tpu_custom_call.1} parent=11 // pred_check_branch
          %683 = sbr.rel (%p681) target = $region80
        $region79: #{tpu_custom_call.1} parent=11 // pred_region
          _
        $region80: #{tpu_custom_call.1} parent=11 // pred_fallthru
          _
        // Predicated region
        $region81: #{tpu_custom_call.1} parent=11 // pred_check
          %p684 = pneg %p502
        $region82: #{tpu_custom_call.1} parent=11 // pred_check_branch
          %686 = sbr.rel (%p684) target = $region84
        $region83: #{tpu_custom_call.1} parent=11 // pred_region
          _
        $region84: #{tpu_custom_call.1} parent=11 // pred_fallthru
          _
      $region12: #{tpu_custom_call.1} parent=5 // pred_fallthru
        _
      %p687 = scmp.lt.s32.totalorder %s46, 2
      // Predicated region
      $region85: #{tpu_custom_call.1} parent=5 // pred_check
        %p688 = pneg %p687
      $region86: #{tpu_custom_call.1} parent=5 // pred_check_branch
        %690 = sbr.rel (%p688) target = $region88
      $region87: #{tpu_custom_call.1} parent=5 // pred_region
        // Predicated region
        $region89: #{tpu_custom_call.1} parent=87 // pred_check
          %p691 = pneg %p66
        $region90: #{tpu_custom_call.1} parent=87 // pred_check_branch
          %693 = sbr.rel (%p691) target = $region92
        $region91: #{tpu_custom_call.1} parent=87 // pred_region
          %s694 = sand.u32 %s56, 1
          %s695 = scalar_lea.sflag [#allocation5], %s694
          %s696 = sand.u32 %s56, 1
          %s697 = smul.addr %s696, 8
          %s698 = scalar_lea.vmem [#allocation4], %s697
          %s700 = ssub.s32 128, 128
          %701 = vsyncadd %s695, %s700
          %s702 = smul.addr %s46, 128
          %s703 = scalar_lea.hbm %s1, %s702
          %s705 = sshll.u32 %s698, 4
          %s706 = int_to_ptr.vmem [resolvable:$true] %s705
          %708 = dma.hbm_to_vmem [thread:$0]  %s703, 128, %s706, %s695
        $region92: #{tpu_custom_call.1} parent=87 // pred_fallthru
          _
        // Predicated region
        $region93: #{tpu_custom_call.1} parent=87 // pred_check
          %p709 = pneg %p92
        $region94: #{tpu_custom_call.1} parent=87 // pred_check_branch
          %711 = sbr.rel (%p709) target = $region96
        $region95: #{tpu_custom_call.1} parent=87 // pred_region
          %s712 = sand.u32 %s46, 1
          %s713 = scalar_lea.sflag [#allocation8], %s712
          %s714 = sand.u32 %s82, 1
          %s715 = smul.addr %s714, 8
          %s716 = scalar_lea.vmem [#allocation7], %s715
          %s718 = ssub.s32 128, 128
          %719 = vsyncadd %s713, %s718
          %s720 = smul.addr %s46, 128
          %s721 = scalar_lea.hbm %s2, %s720
          %s723 = sshll.u32 %s716, 4
          %s724 = int_to_ptr.vmem [resolvable:$true] %s723
          %726 = dma.hbm_to_vmem [thread:$0]  %s721, 128, %s724, %s713
        $region96: #{tpu_custom_call.1} parent=87 // pred_fallthru
          _
        // Predicated region
        $region97: #{tpu_custom_call.1} parent=87 // pred_check
          %p727 = pneg %p118
        $region98: #{tpu_custom_call.1} parent=87 // pred_check_branch
          %729 = sbr.rel (%p727) target = $region100
        $region99: #{tpu_custom_call.1} parent=87 // pred_region
          %s730 = sand.u32 %s46, 1
          %s731 = scalar_lea.sflag [#allocation8], %s730
          %s732 = sand.u32 %s108, 1
          %s733 = smul.addr %s732, 8
          %s734 = scalar_lea.vmem [#allocation9], %s733
          %s736 = ssub.s32 128, 128
          %737 = vsyncadd %s731, %s736
          %s738 = smul.addr %s46, 128
          %s739 = scalar_lea.hbm %s3, %s738
          %s741 = sshll.u32 %s734, 4
          %s742 = int_to_ptr.vmem [resolvable:$true] %s741
          %744 = dma.hbm_to_vmem [thread:$0]  %s739, 128, %s742, %s731
        $region100: #{tpu_custom_call.1} parent=87 // pred_fallthru
          _
      $region88: #{tpu_custom_call.1} parent=5 // pred_fallthru
        _
      %p745 = scmp.le.s32.totalorder 1, %s46
      %p746 = scmp.lt.s32.totalorder %s46, 3
      %p747 = pnand %p745, %p746
      %p748 = pneg %p747
      // Predicated region
      $region101: #{tpu_custom_call.1} parent=5 // pred_check
        _
      $region102: #{tpu_custom_call.1} parent=5 // pred_check_branch
        %750 = sbr.rel (%p747) target = $region104
      $region103: #{tpu_custom_call.1} parent=5 // pred_region
        %s751 = ssub.s32 %s46, 1
        %s752 = sand.u32 %s59, 1
        %s753 = scalar_lea.sflag [#allocation5], %s752
        %s754 = sand.u32 %s59, 1
        %s755 = smul.addr %s754, 8
        %s756 = scalar_lea.vmem [#allocation4], %s755
        // Predicated region
        $region105: #{tpu_custom_call.1} parent=103 // pred_check
          %p757 = pneg %p72
        $region106: #{tpu_custom_call.1} parent=103 // pred_check_branch
          %759 = sbr.rel (%p757) target = $region108
        $region107: #{tpu_custom_call.1} parent=103 // pred_region
          %760 = dma.done %s753, 128
        $region108: #{tpu_custom_call.1} parent=103 // pred_fallthru
          _
        %s761 = sand.u32 %s51, 1
        %s762 = scalar_lea.sflag [#allocation8], %s761
        %s763 = sand.u32 %s85, 1
        %s764 = smul.addr %s763, 8
        %s765 = scalar_lea.vmem [#allocation7], %s764
        // Predicated region
        $region109: #{tpu_custom_call.1} parent=103 // pred_check
          %p766 = pneg %p98
        $region110: #{tpu_custom_call.1} parent=103 // pred_check_branch
          %768 = sbr.rel (%p766) target = $region112
        $region111: #{tpu_custom_call.1} parent=103 // pred_region
          %769 = dma.done %s762, 128
        $region112: #{tpu_custom_call.1} parent=103 // pred_fallthru
          _
        %s770 = sand.u32 %s51, 1
        %s771 = scalar_lea.sflag [#allocation8], %s770
        %s772 = sand.u32 %s111, 1
        %s773 = smul.addr %s772, 8
        %s774 = scalar_lea.vmem [#allocation9], %s773
        // Predicated region
        $region113: #{tpu_custom_call.1} parent=103 // pred_check
          %p775 = pneg %p124
        $region114: #{tpu_custom_call.1} parent=103 // pred_check_branch
          %777 = sbr.rel (%p775) target = $region116
        $region115: #{tpu_custom_call.1} parent=103 // pred_region
          %778 = dma.done %s771, 128
        $region116: #{tpu_custom_call.1} parent=103 // pred_fallthru
          _
        // Predicated region
        $region117: #{tpu_custom_call.1} parent=103 // pred_check
          %p779 = pneg %p208
        $region118: #{tpu_custom_call.1} parent=103 // pred_check_branch
          %781 = sbr.rel (%p779) target = $region120
        $region119: #{tpu_custom_call.1} parent=103 // pred_region
          %782 = dma.done [#allocation11], 512
        $region120: #{tpu_custom_call.1} parent=103 // pred_fallthru
          _
        // Predicated region
        $region121: #{tpu_custom_call.1} parent=103 // pred_check
          %p783 = pneg %p229
        $region122: #{tpu_custom_call.1} parent=103 // pred_check_branch
          %785 = sbr.rel (%p783) target = $region124
        $region123: #{tpu_custom_call.1} parent=103 // pred_region
          %786 = dma.done [#allocation11], 16
        $region124: #{tpu_custom_call.1} parent=103 // pred_fallthru
          _
        // Predicated region
        $region125: #{tpu_custom_call.1} parent=103 // pred_check
          %p787 = pneg %p250
        $region126: #{tpu_custom_call.1} parent=103 // pred_check_branch
          %789 = sbr.rel (%p787) target = $region128
        $region127: #{tpu_custom_call.1} parent=103 // pred_region
          %790 = dma.done [#allocation14], 16
        $region128: #{tpu_custom_call.1} parent=103 // pred_fallthru
          _
        // Predicated region
        $region129: #{tpu_custom_call.1} parent=103 // pred_check
          %p791 = pneg %p292
        $region130: #{tpu_custom_call.1} parent=103 // pred_check_branch
          %793 = sbr.rel (%p791) target = $region132
        $region131: #{tpu_custom_call.1} parent=103 // pred_region
          %794 = dma.done [#allocation14], 512
        $region132: #{tpu_custom_call.1} parent=103 // pred_fallthru
          _
        // Predicated region
        $region133: #{tpu_custom_call.1} parent=103 // pred_check
          %p795 = pneg %p313
        $region134: #{tpu_custom_call.1} parent=103 // pred_check_branch
          %797 = sbr.rel (%p795) target = $region136
        $region135: #{tpu_custom_call.1} parent=103 // pred_region
          %798 = dma.done [#allocation17], 512
        $region136: #{tpu_custom_call.1} parent=103 // pred_fallthru
          _
        // Predicated region
        $region137: #{tpu_custom_call.1} parent=103 // pred_check
          %p799 = pneg %p334
        $region138: #{tpu_custom_call.1} parent=103 // pred_check_branch
          %801 = sbr.rel (%p799) target = $region140
        $region139: #{tpu_custom_call.1} parent=103 // pred_region
          %802 = dma.done [#allocation17], 512
        $region140: #{tpu_custom_call.1} parent=103 // pred_fallthru
          _
        // Predicated region
        $region141: #{tpu_custom_call.1} parent=103 // pred_check
          %p803 = pneg %p355
        $region142: #{tpu_custom_call.1} parent=103 // pred_check_branch
          %805 = sbr.rel (%p803) target = $region144
        $region143: #{tpu_custom_call.1} parent=103 // pred_region
          %806 = dma.done [#allocation20], 16
        $region144: #{tpu_custom_call.1} parent=103 // pred_fallthru
          _
        // Predicated region
        $region145: #{tpu_custom_call.1} parent=103 // pred_check
          %p807 = pneg %p376
        $region146: #{tpu_custom_call.1} parent=103 // pred_check_branch
          %809 = sbr.rel (%p807) target = $region148
        $region147: #{tpu_custom_call.1} parent=103 // pred_region
          %810 = dma.done [#allocation20], 16
        $region148: #{tpu_custom_call.1} parent=103 // pred_fallthru
          _
        // Predicated region
        $region149: #{tpu_custom_call.1} parent=103 // pred_check
          %p811 = pneg %p397
        $region150: #{tpu_custom_call.1} parent=103 // pred_check_branch
          %813 = sbr.rel (%p811) target = $region152
        $region151: #{tpu_custom_call.1} parent=103 // pred_region
          %814 = dma.done [#allocation23], 512
        $region152: #{tpu_custom_call.1} parent=103 // pred_fallthru
          _
        // Predicated region
        $region153: #{tpu_custom_call.1} parent=103 // pred_check
          %p815 = pneg %p418
        $region154: #{tpu_custom_call.1} parent=103 // pred_check_branch
          %817 = sbr.rel (%p815) target = $region156
        $region155: #{tpu_custom_call.1} parent=103 // pred_region
          %818 = dma.done [#allocation23], 16
        $region156: #{tpu_custom_call.1} parent=103 // pred_fallthru
          _
        %s819 = sand.u32 %s59, 1
        %s820 = scalar_lea.sflag [#allocation5], %s819
        %s821 = sand.u32 %s59, 1
        %s822 = smul.addr %s821, 8
        %s823 = scalar_lea.vmem [#allocation4], %s822
        %p824 = pneg %p72
        %p825 = pneg %p69
        %s826 = sand.u32 %s51, 1
        %s827 = scalar_lea.sflag [#allocation8], %s826
        %s828 = sand.u32 %s85, 1
        %s829 = smul.addr %s828, 8
        %s830 = scalar_lea.vmem [#allocation7], %s829
        %p831 = pneg %p98
        %p832 = pneg %p95
        %s833 = sand.u32 %s51, 1
        %s834 = scalar_lea.sflag [#allocation8], %s833
        %s835 = sand.u32 %s111, 1
        %s836 = smul.addr %s835, 8
        %s837 = scalar_lea.vmem [#allocation9], %s836
        %p838 = pneg %p124
        %p839 = pneg %p121
        %p840 = pneg %p145
        %p841 = pneg %p142
        %p842 = pneg %p166
        %p843 = pneg %p163
        %p844 = pneg %p187
        %p845 = pneg %p184
        %p846 = pneg %p208
        %p847 = pneg %p205
        %p848 = pneg %p229
        %p849 = pneg %p226
        %p850 = pneg %p250
        %p851 = pneg %p247
        %p852 = pneg %p271
        %p853 = pneg %p268
        %p854 = pneg %p292
        %p855 = pneg %p289
        %p856 = pneg %p313
        %p857 = pneg %p310
        %p858 = pneg %p334
        %p859 = pneg %p331
        %p860 = pneg %p355
        %p861 = pneg %p352
        %p862 = pneg %p376
        %p863 = pneg %p373
        %p864 = pneg %p397
        %p865 = pneg %p394
        %p866 = pneg %p418
        %p867 = pneg %p415
        %p868 = pneg %p439
        %p869 = pneg %p436
        %p870 = pneg %p460
        %p871 = pneg %p457
        %p872 = pneg %p481
        %p873 = pneg %p478
        %p874 = pneg %p502
        %p875 = pneg %p499
        %p876 = pneg %p528
        %p877 = pneg %p525
        %s878 = sand.u32 %s515, 1
        %s879 = scalar_lea.sflag [#allocation6], %s878
        %s880 = sand.u32 %s515, 1
        %s881 = smul.addr %s880, 8
        %s882 = scalar_lea.vmem [#allocation25], %s881
        %v883 = vld [vmem:[%s756] sm:$0xff]
        %v884 = vld [vmem:[%s765] sm:$0xff]
        %v885 = vld [vmem:[%s774] sm:$0xff]
        %v886 = vlaneseq
        %v887 = vshrl.u32 %v886, 7
        %v888 = vlaneseq
        %v889 = vand.u32 %v888, 127
        %vm890 = vcmp.le.s32.totalorder %v889, %v887
        %v891 = vsel %vm890, 0.0, -1000000.0
        %s892 = sld [smem:[#allocation3 + %s51]]
        %v893 = vstv %s892
        %vm894 = vcmp.lt.s32.totalorder %v889, %v893
        %v895 = vsel %vm894, 0.0, -1000000.0
        %v896 = vld [vmem:[%s4] sm:$0xff]
        %v897 = vld [vmem:[%s4 + $0x8] sm:$0xff]
        %v898 = vld [vmem:[%s4 + $0x10] sm:$0xff]
        %v899 = vld [vmem:[%s4 + $0x18] sm:$0xff]
        %v900 = vld [vmem:[%s5] sm:$0xff]
        %v901 = vld [vmem:[%s5 + $0x8] sm:$0xff]
        %v902 = vld [vmem:[%s5 + $0x10] sm:$0xff]
        %v903 = vld [vmem:[%s5 + $0x18] sm:$0xff]
        %v904 = vld [vmem:[%s6] sm:$0xff]
        %v905 = vld [vmem:[%s6 + $0x8] sm:$0xff]
        %v906 = vld [vmem:[%s6 + $0x10] sm:$0xff]
        %v907 = vld [vmem:[%s6 + $0x18] sm:$0xff]
        %v908 = vld [vmem:[#allocation10] sm:$0xff]
        %v909 = vld [vmem:[#allocation10 + $0x8] sm:$0xff]
        %v910 = vld [vmem:[#allocation10 + $0x10] sm:$0xff]
        %v911 = vld [vmem:[#allocation10 + $0x18] sm:$0xff]
        %v912 = vld [vmem:[%s10] sm:$0xff]
        %v913 = vld [vmem:[%s10 + $0x8] sm:$0xff]
        %v914 = vld [vmem:[%s10 + $0x10] sm:$0xff]
        %v915 = vld [vmem:[%s10 + $0x18] sm:$0xff]
        %v916 = vld [vmem:[#allocation15] sm:$0xff]
        %v917 = vld [vmem:[#allocation15 + $0x8] sm:$0xff]
        %v918 = vld [vmem:[#allocation15 + $0x10] sm:$0xff]
        %v919 = vld [vmem:[#allocation15 + $0x18] sm:$0xff]
        %v920 = vld [vmem:[#allocation16] sm:$0xff]
        %v921 = vld [vmem:[#allocation16 + $0x8] sm:$0xff]
        %v922 = vld [vmem:[#allocation16 + $0x10] sm:$0xff]
        %v923 = vld [vmem:[#allocation16 + $0x18] sm:$0xff]
        %v924 = vld [vmem:[#allocation18] sm:$0xff]
        %v925 = vld [vmem:[#allocation18 + $0x8] sm:$0xff]
        %v926 = vld [vmem:[#allocation18 + $0x10] sm:$0xff]
        %v927 = vld [vmem:[#allocation18 + $0x18] sm:$0xff]
        %v928 = vld [vmem:[#allocation12] sm:$0x1]
        %v929 = vld [vmem:[#allocation13] sm:$0x1]
        %v930 = vld [vmem:[#allocation19] sm:$0x1]
        %v931 = vld [vmem:[#allocation21] sm:$0x1]
        %v932 = vld [vmem:[%s20] sm:$0x1]
        %v933 = vld [vmem:[%s21] sm:$0x1]
        %v934 = vld [vmem:[#allocation22] sm:$0xff]
        %v935 = vld [vmem:[#allocation22 + $0x8] sm:$0xff]
        %v936 = vld [vmem:[#allocation22 + $0x10] sm:$0xff]
        %v937 = vld [vmem:[#allocation22 + $0x18] sm:$0xff]
        %v938 = vld [vmem:[#allocation24] sm:$0x1]
        %v939 = vld [vmem:[%s18] sm:$0xff]
        %v940 = vld [vmem:[%s18 + $0x8] sm:$0xff]
        %v941 = vld [vmem:[%s18 + $0x10] sm:$0xff]
        %v942 = vld [vmem:[%s18 + $0x18] sm:$0xff]
        %v943 = vld [vmem:[%s18 + $0x20] sm:$0xff]
        %v944 = vld [vmem:[%s18 + $0x28] sm:$0xff]
        %v945 = vld [vmem:[%s18 + $0x30] sm:$0xff]
        %v946 = vld [vmem:[%s18 + $0x38] sm:$0xff]
        %v947 = vld [vmem:[%s19] sm:$0x1]
        %vm948 = vcmask 261120
        %v950 = vsel %vm948, %v883, 0
        %952 = vmatprep.subr.mxu0 0.0
        %953 = vmatpush1.msra.mxu0 %v896
        %954 = vmatprep.subr.mxu0 0.0
        %955 = vmatpush1.msra.mxu0 %v897
        %956 = vmatprep.subr.mxu0 0.0
        %957 = vmatpush1.msra.mxu0 %v898
        %958 = vmatprep.subr.mxu0 0.0
        %959 = vmatpush1.msra.mxu0 %v899
        %960 = vmatprep.subr.mxu0 0.0
        %961 = vmatpush1.msra.mxu0 0.0
        %962 = vmatprep.subr.mxu0 0.0
        %963 = vmatpush1.msra.mxu0 0.0
        %964 = vmatprep.subr.mxu0 0.0
        %965 = vmatpush1.msra.mxu0 0.0
        %966 = vmatprep.subr.mxu0 0.0
        %967 = vmatpush1.msra.mxu0 0.0
        %968 = vmatprep.subr.mxu0 0.0
        %969 = vmatpush1.msra.mxu0 0.0
        %970 = vmatprep.subr.mxu0 0.0
        %971 = vmatpush1.msra.mxu0 0.0
        %972 = vmatprep.subr.mxu0 0.0
        %973 = vmatpush1.msra.mxu0 0.0
        %974 = vmatprep.subr.mxu0 0.0
        %975 = vmatpush1.msra.mxu0 0.0
        %976 = vmatprep.subr.mxu0 0.0
        %977 = vmatpush1.msra.mxu0 0.0
        %978 = vmatprep.subr.mxu0 0.0
        %979 = vmatpush1.msra.mxu0 0.0
        %980 = vmatprep.subr.mxu0 0.0
        %981 = vmatpush1.msra.mxu0 0.0
        %982 = vmatprep.subr.mxu0 0.0
        %983 = vmatpush1.msra.mxu0 0.0
        %984 = vmatprep.subr.mxu0 0.0
        %985 = vmatpush1.msra.mxu0 0.0
        %986 = vmatprep.subr.mxu0 0.0
        %987 = vmatpush1.msra.mxu0 0.0
        %988 = vmatprep.subr.mxu0 0.0
        %989 = vmatpush1.msra.mxu0 0.0
        %990 = vmatprep.subr.mxu0 0.0
        %991 = vmatpush1.msra.mxu0 0.0
        %992 = vmatprep.subr.mxu0 0.0
        %993 = vmatpush1.msra.mxu0 0.0
        %994 = vmatprep.subr.mxu0 0.0
        %995 = vmatpush1.msra.mxu0 0.0
        %996 = vmatprep.subr.mxu0 0.0
        %997 = vmatpush1.msra.mxu0 0.0
        %998 = vmatprep.subr.mxu0 0.0
        %999 = vmatpush1.msra.mxu0 0.0
        %1000 = vmatprep.subr.mxu0 0.0
        %1001 = vmatpush1.msra.mxu0 0.0
        %1002 = vmatprep.subr.mxu0 0.0
        %1003 = vmatpush1.msra.mxu0 0.0
        %1004 = vmatprep.subr.mxu0 0.0
        %1005 = vmatpush1.msra.mxu0 0.0
        %1006 = vmatprep.subr.mxu0 0.0
        %1007 = vmatpush1.msra.mxu0 0.0
        %1008 = vmatprep.subr.mxu0 0.0
        %1009 = vmatpush1.msra.mxu0 0.0
        %1010 = vmatprep.subr.mxu0 0.0
        %1011 = vmatpush1.msra.mxu0 0.0
        %1012 = vmatprep.subr.mxu0 0.0
        %1013 = vmatpush1.msra.mxu0 0.0
        %1014 = vmatprep.subr.mxu0 0.0
        %1015 = vmatpush1.msra.mxu0 0.0
        %1016 = vmatprep.mubr.f32.mxu0 0.0
        %1017 = vmatmul.mubr.f32.gmra.mrb[0].mxu0 %v950
        %v1018 = vpop.f32.mrb[0].mxu0
        %v1019 = vadd.f32 0.0, %v1018
        %v1020 = vpop.f32.mrb[0].mxu0
        %1021 = vdwg.mxu0
        %v1022 = vmul.f32 %v1019, 0.35355338
        %v1024 = vsel %vm948, %v884, 0
        %1026 = vmatprep.subr.mxu0 0.0
        %1027 = vmatpush1.msra.mxu0 %v900
        %1028 = vmatprep.subr.mxu0 0.0
        %1029 = vmatpush1.msra.mxu0 %v901
        %1030 = vmatprep.subr.mxu0 0.0
        %1031 = vmatpush1.msra.mxu0 %v902
        %1032 = vmatprep.subr.mxu0 0.0
        %1033 = vmatpush1.msra.mxu0 %v903
        %1034 = vmatprep.subr.mxu0 0.0
        %1035 = vmatpush1.msra.mxu0 0.0
        %1036 = vmatprep.subr.mxu0 0.0
        %1037 = vmatpush1.msra.mxu0 0.0
        %1038 = vmatprep.subr.mxu0 0.0
        %1039 = vmatpush1.msra.mxu0 0.0
        %1040 = vmatprep.subr.mxu0 0.0
        %1041 = vmatpush1.msra.mxu0 0.0
        %1042 = vmatprep.subr.mxu0 0.0
        %1043 = vmatpush1.msra.mxu0 0.0
        %1044 = vmatprep.subr.mxu0 0.0
        %1045 = vmatpush1.msra.mxu0 0.0
        %1046 = vmatprep.subr.mxu0 0.0
        %1047 = vmatpush1.msra.mxu0 0.0
        %1048 = vmatprep.subr.mxu0 0.0
        %1049 = vmatpush1.msra.mxu0 0.0
        %1050 = vmatprep.subr.mxu0 0.0
        %1051 = vmatpush1.msra.mxu0 0.0
        %1052 = vmatprep.subr.mxu0 0.0
        %1053 = vmatpush1.msra.mxu0 0.0
        %1054 = vmatprep.subr.mxu0 0.0
        %1055 = vmatpush1.msra.mxu0 0.0
        %1056 = vmatprep.subr.mxu0 0.0
        %1057 = vmatpush1.msra.mxu0 0.0
        %1058 = vmatprep.subr.mxu0 0.0
        %1059 = vmatpush1.msra.mxu0 0.0
        %1060 = vmatprep.subr.mxu0 0.0
        %1061 = vmatpush1.msra.mxu0 0.0
        %1062 = vmatprep.subr.mxu0 0.0
        %1063 = vmatpush1.msra.mxu0 0.0
        %1064 = vmatprep.subr.mxu0 0.0
        %1065 = vmatpush1.msra.mxu0 0.0
        %1066 = vmatprep.subr.mxu0 0.0
        %1067 = vmatpush1.msra.mxu0 0.0
        %1068 = vmatprep.subr.mxu0 0.0
        %1069 = vmatpush1.msra.mxu0 0.0
        %1070 = vmatprep.subr.mxu0 0.0
        %1071 = vmatpush1.msra.mxu0 0.0
        %1072 = vmatprep.subr.mxu0 0.0
        %1073 = vmatpush1.msra.mxu0 0.0
        %1074 = vmatprep.subr.mxu0 0.0
        %1075 = vmatpush1.msra.mxu0 0.0
        %1076 = vmatprep.subr.mxu0 0.0
        %1077 = vmatpush1.msra.mxu0 0.0
        %1078 = vmatprep.subr.mxu0 0.0
        %1079 = vmatpush1.msra.mxu0 0.0
        %1080 = vmatprep.subr.mxu0 0.0
        %1081 = vmatpush1.msra.mxu0 0.0
        %1082 = vmatprep.subr.mxu0 0.0
        %1083 = vmatpush1.msra.mxu0 0.0
        %1084 = vmatprep.subr.mxu0 0.0
        %1085 = vmatpush1.msra.mxu0 0.0
        %1086 = vmatprep.subr.mxu0 0.0
        %1087 = vmatpush1.msra.mxu0 0.0
        %1088 = vmatprep.subr.mxu0 0.0
        %1089 = vmatpush1.msra.mxu0 0.0
        %1090 = vmatprep.mubr.f32.mxu0 0.0
        %1091 = vmatmul.mubr.f32.gmra.mrb[0].mxu0 %v1024
        %v1092 = vpop.f32.mrb[0].mxu0
        %v1093 = vadd.f32 0.0, %v1092
        %v1094 = vpop.f32.mrb[0].mxu0
        %1095 = vdwg.mxu0
        %1096 = vmatprep.subr.mxu0 0.0
        %1097 = vmatpush1.msra.mxu0 %v904
        %1098 = vmatprep.subr.mxu0 0.0
        %1099 = vmatpush1.msra.mxu0 %v905
        %1100 = vmatprep.subr.mxu0 0.0
        %1101 = vmatpush1.msra.mxu0 %v906
        %1102 = vmatprep.subr.mxu0 0.0
        %1103 = vmatpush1.msra.mxu0 %v907
        %1104 = vmatprep.subr.mxu0 0.0
        %1105 = vmatpush1.msra.mxu0 0.0
        %1106 = vmatprep.subr.mxu0 0.0
        %1107 = vmatpush1.msra.mxu0 0.0
        %1108 = vmatprep.subr.mxu0 0.0
        %1109 = vmatpush1.msra.mxu0 0.0
        %1110 = vmatprep.subr.mxu0 0.0
        %1111 = vmatpush1.msra.mxu0 0.0
        %1112 = vmatprep.subr.mxu0 0.0
        %1113 = vmatpush1.msra.mxu0 0.0
        %1114 = vmatprep.subr.mxu0 0.0
        %1115 = vmatpush1.msra.mxu0 0.0
        %1116 = vmatprep.subr.mxu0 0.0
        %1117 = vmatpush1.msra.mxu0 0.0
        %1118 = vmatprep.subr.mxu0 0.0
        %1119 = vmatpush1.msra.mxu0 0.0
        %1120 = vmatprep.subr.mxu0 0.0
        %1121 = vmatpush1.msra.mxu0 0.0
        %1122 = vmatprep.subr.mxu0 0.0
        %1123 = vmatpush1.msra.mxu0 0.0
        %1124 = vmatprep.subr.mxu0 0.0
        %1125 = vmatpush1.msra.mxu0 0.0
        %1126 = vmatprep.subr.mxu0 0.0
        %1127 = vmatpush1.msra.mxu0 0.0
        %1128 = vmatprep.subr.mxu0 0.0
        %1129 = vmatpush1.msra.mxu0 0.0
        %1130 = vmatprep.subr.mxu0 0.0
        %1131 = vmatpush1.msra.mxu0 0.0
        %1132 = vmatprep.subr.mxu0 0.0
        %1133 = vmatpush1.msra.mxu0 0.0
        %1134 = vmatprep.subr.mxu0 0.0
        %1135 = vmatpush1.msra.mxu0 0.0
        %1136 = vmatprep.subr.mxu0 0.0
        %1137 = vmatpush1.msra.mxu0 0.0
        %1138 = vmatprep.subr.mxu0 0.0
        %1139 = vmatpush1.msra.mxu0 0.0
        %1140 = vmatprep.subr.mxu0 0.0
        %1141 = vmatpush1.msra.mxu0 0.0
        %1142 = vmatprep.subr.mxu0 0.0
        %1143 = vmatpush1.msra.mxu0 0.0
        %1144 = vmatprep.subr.mxu0 0.0
        %1145 = vmatpush1.msra.mxu0 0.0
        %1146 = vmatprep.subr.mxu0 0.0
        %1147 = vmatpush1.msra.mxu0 0.0
        %1148 = vmatprep.subr.mxu0 0.0
        %1149 = vmatpush1.msra.mxu0 0.0
        %1150 = vmatprep.subr.mxu0 0.0
        %1151 = vmatpush1.msra.mxu0 0.0
        %1152 = vmatprep.subr.mxu0 0.0
        %1153 = vmatpush1.msra.mxu0 0.0
        %1154 = vmatprep.subr.mxu0 0.0
        %1155 = vmatpush1.msra.mxu0 0.0
        %1156 = vmatprep.subr.mxu0 0.0
        %1157 = vmatpush1.msra.mxu0 0.0
        %1158 = vmatprep.subr.mxu0 0.0
        %1159 = vmatpush1.msra.mxu0 0.0
        %1160 = vmatprep.mubr.f32.mxu0 0.0
        %1161 = vmatmul.mubr.f32.gmra.mrb[0].mxu0 %v1024
        %v1162 = vpop.f32.mrb[0].mxu0
        %v1163 = vadd.f32 0.0, %v1162
        %v1164 = vpop.f32.mrb[0].mxu0
        %1165 = vdwg.mxu0
        %vm1166 = vcmask 64512
        %v1168 = vsel %vm1166, %v1022, 0
        %v1171 = vsel %vm1166, %v1093, 0
        %1173 = vmatprep.subr.mxu0 0.0
        %1174 = vmatpush1.xpose.msra.mxu0 %v1171
        %1175 = vmatprep.subr.mxu0 0.0
        %1176 = vmatpush1.xpose.msra.mxu0 0.0
        %1177 = vmatprep.subr.mxu0 0.0
        %1178 = vmatpush1.xpose.msra.mxu0 0.0
        %1179 = vmatprep.subr.mxu0 0.0
        %1180 = vmatpush1.xpose.msra.mxu0 0.0
        %1181 = vmatprep.subr.mxu0 0.0
        %1182 = vmatpush1.xpose.msra.mxu0 0.0
        %1183 = vmatprep.subr.mxu0 0.0
        %1184 = vmatpush1.xpose.msra.mxu0 0.0
        %1185 = vmatprep.subr.mxu0 0.0
        %1186 = vmatpush1.xpose.msra.mxu0 0.0
        %1187 = vmatprep.subr.mxu0 0.0
        %1188 = vmatpush1.xpose.msra.mxu0 0.0
        %1189 = vmatprep.subr.mxu0 0.0
        %1190 = vmatpush1.xpose.msra.mxu0 0.0
        %1191 = vmatprep.subr.mxu0 0.0
        %1192 = vmatpush1.xpose.msra.mxu0 0.0
        %1193 = vmatprep.subr.mxu0 0.0
        %1194 = vmatpush1.xpose.msra.mxu0 0.0
        %1195 = vmatprep.subr.mxu0 0.0
        %1196 = vmatpush1.xpose.msra.mxu0 0.0
        %1197 = vmatprep.subr.mxu0 0.0
        %1198 = vmatpush1.xpose.msra.mxu0 0.0
        %1199 = vmatprep.subr.mxu0 0.0
        %1200 = vmatpush1.xpose.msra.mxu0 0.0
        %1201 = vmatprep.subr.mxu0 0.0
        %1202 = vmatpush1.xpose.msra.mxu0 0.0
        %1203 = vmatprep.subr.mxu0 0.0
        %1204 = vmatpush1.xpose.msra.mxu0 0.0
        %1205 = vmatprep.subr.mxu0 0.0
        %1206 = vmatpush1.xpose.msra.mxu0 0.0
        %1207 = vmatprep.subr.mxu0 0.0
        %1208 = vmatpush1.xpose.msra.mxu0 0.0
        %1209 = vmatprep.subr.mxu0 0.0
        %1210 = vmatpush1.xpose.msra.mxu0 0.0
        %1211 = vmatprep.subr.mxu0 0.0
        %1212 = vmatpush1.xpose.msra.mxu0 0.0
        %1213 = vmatprep.subr.mxu0 0.0
        %1214 = vmatpush1.xpose.msra.mxu0 0.0
        %1215 = vmatprep.subr.mxu0 0.0
        %1216 = vmatpush1.xpose.msra.mxu0 0.0
        %1217 = vmatprep.subr.mxu0 0.0
        %1218 = vmatpush1.xpose.msra.mxu0 0.0
        %1219 = vmatprep.subr.mxu0 0.0
        %1220 = vmatpush1.xpose.msra.mxu0 0.0
        %1221 = vmatprep.subr.mxu0 0.0
        %1222 = vmatpush1.xpose.msra.mxu0 0.0
        %1223 = vmatprep.subr.mxu0 0.0
        %1224 = vmatpush1.xpose.msra.mxu0 0.0
        %1225 = vmatprep.subr.mxu0 0.0
        %1226 = vmatpush1.xpose.msra.mxu0 0.0
        %1227 = vmatprep.subr.mxu0 0.0
        %1228 = vmatpush1.xpose.msra.mxu0 0.0
        %1229 = vmatprep.subr.mxu0 0.0
        %1230 = vmatpush1.xpose.msra.mxu0 0.0
        %1231 = vmatprep.subr.mxu0 0.0
        %1232 = vmatpush1.xpose.msra.mxu0 0.0
        %1233 = vmatprep.subr.mxu0 0.0
        %1234 = vmatpush1.xpose.msra.mxu0 0.0
        %1235 = vmatprep.subr.mxu0 0.0
        %1236 = vmatpush1.xpose.msra.mxu0 0.0
        %1237 = vmatprep.mubr.f32.mxu0 0.0
        %1238 = vmatmul.mubr.f32.gmra.mrb[0].mxu0 %v1168
        %v1239 = vpop.f32.mrb[0].mxu0
        %v1240 = vadd.f32 %v891, %v1239
        %v1241 = vpop.f32.mrb[0].mxu0
        %1242 = vdwg.mxu0
        %v1243 = vsel %vm1166, %v1240, -inf
        %1244 = vmax.xlane.f32.xlu0 %v1243
        %v1245 = vpop.xlane.xlu0 %1244
        %v1246 = vsub.f32 %v1240, %v1245
        %v1247 = vmul.f32 %v1246, 1.442695
        %v1248 = vpow.pop %v1247
        %v1249 = vsel %vm1166, %v1248, 0.0
        %1250 = vadd.xlane.f32.xlu0 %v1249
        %v1251 = vpop.xlane.xlu0 %1250
        %v1252 = vrcp.pop %v1251
        %v1253 = vmul.f32 %v1248, %v1252
        %v1255 = vsel %vm1166, %v1253, 0
        %1257 = vmatprep.subr.mxu0 0.0
        %1258 = vmatpush1.msra.mxu0 %v1163
        %1259 = vmatprep.subr.mxu0 0.0
        %1260 = vmatpush1.msra.mxu0 0.0
        %1261 = vmatprep.subr.mxu0 0.0
        %1262 = vmatpush1.msra.mxu0 0.0
        %1263 = vmatprep.subr.mxu0 0.0
        %1264 = vmatpush1.msra.mxu0 0.0
        %1265 = vmatprep.subr.mxu0 0.0
        %1266 = vmatpush1.msra.mxu0 0.0
        %1267 = vmatprep.subr.mxu0 0.0
        %1268 = vmatpush1.msra.mxu0 0.0
        %1269 = vmatprep.subr.mxu0 0.0
        %1270 = vmatpush1.msra.mxu0 0.0
        %1271 = vmatprep.subr.mxu0 0.0
        %1272 = vmatpush1.msra.mxu0 0.0
        %1273 = vmatprep.subr.mxu0 0.0
        %1274 = vmatpush1.msra.mxu0 0.0
        %1275 = vmatprep.subr.mxu0 0.0
        %1276 = vmatpush1.msra.mxu0 0.0
        %1277 = vmatprep.subr.mxu0 0.0
        %1278 = vmatpush1.msra.mxu0 0.0
        %1279 = vmatprep.subr.mxu0 0.0
        %1280 = vmatpush1.msra.mxu0 0.0
        %1281 = vmatprep.subr.mxu0 0.0
        %1282 = vmatpush1.msra.mxu0 0.0
        %1283 = vmatprep.subr.mxu0 0.0
        %1284 = vmatpush1.msra.mxu0 0.0
        %1285 = vmatprep.subr.mxu0 0.0
        %1286 = vmatpush1.msra.mxu0 0.0
        %1287 = vmatprep.subr.mxu0 0.0
        %1288 = vmatpush1.msra.mxu0 0.0
        %1289 = vmatprep.subr.mxu0 0.0
        %1290 = vmatpush1.msra.mxu0 0.0
        %1291 = vmatprep.subr.mxu0 0.0
        %1292 = vmatpush1.msra.mxu0 0.0
        %1293 = vmatprep.subr.mxu0 0.0
        %1294 = vmatpush1.msra.mxu0 0.0
        %1295 = vmatprep.subr.mxu0 0.0
        %1296 = vmatpush1.msra.mxu0 0.0
        %1297 = vmatprep.subr.mxu0 0.0
        %1298 = vmatpush1.msra.mxu0 0.0
        %1299 = vmatprep.subr.mxu0 0.0
        %1300 = vmatpush1.msra.mxu0 0.0
        %1301 = vmatprep.subr.mxu0 0.0
        %1302 = vmatpush1.msra.mxu0 0.0
        %1303 = vmatprep.subr.mxu0 0.0
        %1304 = vmatpush1.msra.mxu0 0.0
        %1305 = vmatprep.subr.mxu0 0.0
        %1306 = vmatpush1.msra.mxu0 0.0
        %1307 = vmatprep.subr.mxu0 0.0
        %1308 = vmatpush1.msra.mxu0 0.0
        %1309 = vmatprep.subr.mxu0 0.0
        %1310 = vmatpush1.msra.mxu0 0.0
        %1311 = vmatprep.subr.mxu0 0.0
        %1312 = vmatpush1.msra.mxu0 0.0
        %1313 = vmatprep.subr.mxu0 0.0
        %1314 = vmatpush1.msra.mxu0 0.0
        %1315 = vmatprep.subr.mxu0 0.0
        %1316 = vmatpush1.msra.mxu0 0.0
        %1317 = vmatprep.subr.mxu0 0.0
        %1318 = vmatpush1.msra.mxu0 0.0
        %1319 = vmatprep.subr.mxu0 0.0
        %1320 = vmatpush1.msra.mxu0 0.0
        %1321 = vmatprep.mubr.f32.mxu0 0.0
        %1322 = vmatmul.mubr.f32.gmra.mrb[0].mxu0 %v1255
        %v1323 = vpop.f32.mrb[0].mxu0
        %v1324 = vadd.f32 0.0, %v1323
        %v1325 = vpop.f32.mrb[0].mxu0
        %1326 = vdwg.mxu0
        %1327 = vrot.lane.b32.xlu0 %v1022, 120
        %v1328 = vpop.permute.xlu0 %1327
        %1329 = vrot.lane.b32.xlu0 %v1093, 120
        %v1330 = vpop.permute.xlu0 %1329
        %v1331 = vsel %vm1166, %v1328, 0
        %v1333 = vsel %vm1166, %v1330, 0
        %1335 = vmatprep.subr.mxu0 0.0
        %1336 = vmatpush1.xpose.msra.mxu0 %v1333
        %1337 = vmatprep.subr.mxu0 0.0
        %1338 = vmatpush1.xpose.msra.mxu0 0.0
        %1339 = vmatprep.subr.mxu0 0.0
        %1340 = vmatpush1.xpose.msra.mxu0 0.0
        %1341 = vmatprep.subr.mxu0 0.0
        %1342 = vmatpush1.xpose.msra.mxu0 0.0
        %1343 = vmatprep.subr.mxu0 0.0
        %1344 = vmatpush1.xpose.msra.mxu0 0.0
        %1345 = vmatprep.subr.mxu0 0.0
        %1346 = vmatpush1.xpose.msra.mxu0 0.0
        %1347 = vmatprep.subr.mxu0 0.0
        %1348 = vmatpush1.xpose.msra.mxu0 0.0
        %1349 = vmatprep.subr.mxu0 0.0
        %1350 = vmatpush1.xpose.msra.mxu0 0.0
        %1351 = vmatprep.subr.mxu0 0.0
        %1352 = vmatpush1.xpose.msra.mxu0 0.0
        %1353 = vmatprep.subr.mxu0 0.0
        %1354 = vmatpush1.xpose.msra.mxu0 0.0
        %1355 = vmatprep.subr.mxu0 0.0
        %1356 = vmatpush1.xpose.msra.mxu0 0.0
        %1357 = vmatprep.subr.mxu0 0.0
        %1358 = vmatpush1.xpose.msra.mxu0 0.0
        %1359 = vmatprep.subr.mxu0 0.0
        %1360 = vmatpush1.xpose.msra.mxu0 0.0
        %1361 = vmatprep.subr.mxu0 0.0
        %1362 = vmatpush1.xpose.msra.mxu0 0.0
        %1363 = vmatprep.subr.mxu0 0.0
        %1364 = vmatpush1.xpose.msra.mxu0 0.0
        %1365 = vmatprep.subr.mxu0 0.0
        %1366 = vmatpush1.xpose.msra.mxu0 0.0
        %1367 = vmatprep.subr.mxu0 0.0
        %1368 = vmatpush1.xpose.msra.mxu0 0.0
        %1369 = vmatprep.subr.mxu0 0.0
        %1370 = vmatpush1.xpose.msra.mxu0 0.0
        %1371 = vmatprep.subr.mxu0 0.0
        %1372 = vmatpush1.xpose.msra.mxu0 0.0
        %1373 = vmatprep.subr.mxu0 0.0
        %1374 = vmatpush1.xpose.msra.mxu0 0.0
        %1375 = vmatprep.subr.mxu0 0.0
        %1376 = vmatpush1.xpose.msra.mxu0 0.0
        %1377 = vmatprep.subr.mxu0 0.0
        %1378 = vmatpush1.xpose.msra.mxu0 0.0
        %1379 = vmatprep.subr.mxu0 0.0
        %1380 = vmatpush1.xpose.msra.mxu0 0.0
        %1381 = vmatprep.subr.mxu0 0.0
        %1382 = vmatpush1.xpose.msra.mxu0 0.0
        %1383 = vmatprep.subr.mxu0 0.0
        %1384 = vmatpush1.xpose.msra.mxu0 0.0
        %1385 = vmatprep.subr.mxu0 0.0
        %1386 = vmatpush1.xpose.msra.mxu0 0.0
        %1387 = vmatprep.subr.mxu0 0.0
        %1388 = vmatpush1.xpose.msra.mxu0 0.0
        %1389 = vmatprep.subr.mxu0 0.0
        %1390 = vmatpush1.xpose.msra.mxu0 0.0
        %1391 = vmatprep.subr.mxu0 0.0
        %1392 = vmatpush1.xpose.msra.mxu0 0.0
        %1393 = vmatprep.subr.mxu0 0.0
        %1394 = vmatpush1.xpose.msra.mxu0 0.0
        %1395 = vmatprep.subr.mxu0 0.0
        %1396 = vmatpush1.xpose.msra.mxu0 0.0
        %1397 = vmatprep.subr.mxu0 0.0
        %1398 = vmatpush1.xpose.msra.mxu0 0.0
        %1399 = vmatprep.mubr.f32.mxu0 0.0
        %1400 = vmatmul.mubr.f32.gmra.mrb[0].mxu0 %v1331
        %v1401 = vpop.f32.mrb[0].mxu0
        %v1402 = vadd.f32 %v891, %v1401
        %v1403 = vpop.f32.mrb[0].mxu0
        %1404 = vdwg.mxu0
        %v1405 = vsel %vm1166, %v1402, -inf
        %1406 = vmax.xlane.f32.xlu0 %v1405
        %v1407 = vpop.xlane.xlu0 %1406
        %v1408 = vsub.f32 %v1402, %v1407
        %v1409 = vmul.f32 %v1408, 1.442695
        %v1410 = vpow.pop %v1409
        %v1411 = vsel %vm1166, %v1410, 0.0
        %1412 = vadd.xlane.f32.xlu0 %v1411
        %v1413 = vpop.xlane.xlu0 %1412
        %v1414 = vrcp.pop %v1413
        %v1415 = vmul.f32 %v1410, %v1414
        %1417 = vrot.lane.b32.xlu0 %v1163, 120
        %v1418 = vpop.permute.xlu0 %1417
        %v1421 = vsel %vm1166, %v1415, 0
        %1423 = vmatprep.subr.mxu0 0.0
        %1424 = vmatpush1.msra.mxu0 %v1418
        %1425 = vmatprep.subr.mxu0 0.0
        %1426 = vmatpush1.msra.mxu0 0.0
        %1427 = vmatprep.subr.mxu0 0.0
        %1428 = vmatpush1.msra.mxu0 0.0
        %1429 = vmatprep.subr.mxu0 0.0
        %1430 = vmatpush1.msra.mxu0 0.0
        %1431 = vmatprep.subr.mxu0 0.0
        %1432 = vmatpush1.msra.mxu0 0.0
        %1433 = vmatprep.subr.mxu0 0.0
        %1434 = vmatpush1.msra.mxu0 0.0
        %1435 = vmatprep.subr.mxu0 0.0
        %1436 = vmatpush1.msra.mxu0 0.0
        %1437 = vmatprep.subr.mxu0 0.0
        %1438 = vmatpush1.msra.mxu0 0.0
        %1439 = vmatprep.subr.mxu0 0.0
        %1440 = vmatpush1.msra.mxu0 0.0
        %1441 = vmatprep.subr.mxu0 0.0
        %1442 = vmatpush1.msra.mxu0 0.0
        %1443 = vmatprep.subr.mxu0 0.0
        %1444 = vmatpush1.msra.mxu0 0.0
        %1445 = vmatprep.subr.mxu0 0.0
        %1446 = vmatpush1.msra.mxu0 0.0
        %1447 = vmatprep.subr.mxu0 0.0
        %1448 = vmatpush1.msra.mxu0 0.0
        %1449 = vmatprep.subr.mxu0 0.0
        %1450 = vmatpush1.msra.mxu0 0.0
        %1451 = vmatprep.subr.mxu0 0.0
        %1452 = vmatpush1.msra.mxu0 0.0
        %1453 = vmatprep.subr.mxu0 0.0
        %1454 = vmatpush1.msra.mxu0 0.0
        %1455 = vmatprep.subr.mxu0 0.0
        %1456 = vmatpush1.msra.mxu0 0.0
        %1457 = vmatprep.subr.mxu0 0.0
        %1458 = vmatpush1.msra.mxu0 0.0
        %1459 = vmatprep.subr.mxu0 0.0
        %1460 = vmatpush1.msra.mxu0 0.0
        %1461 = vmatprep.subr.mxu0 0.0
        %1462 = vmatpush1.msra.mxu0 0.0
        %1463 = vmatprep.subr.mxu0 0.0
        %1464 = vmatpush1.msra.mxu0 0.0
        %1465 = vmatprep.subr.mxu0 0.0
        %1466 = vmatpush1.msra.mxu0 0.0
        %1467 = vmatprep.subr.mxu0 0.0
        %1468 = vmatpush1.msra.mxu0 0.0
        %1469 = vmatprep.subr.mxu0 0.0
        %1470 = vmatpush1.msra.mxu0 0.0
        %1471 = vmatprep.subr.mxu0 0.0
        %1472 = vmatpush1.msra.mxu0 0.0
        %1473 = vmatprep.subr.mxu0 0.0
        %1474 = vmatpush1.msra.mxu0 0.0
        %1475 = vmatprep.subr.mxu0 0.0
        %1476 = vmatpush1.msra.mxu0 0.0
        %1477 = vmatprep.subr.mxu0 0.0
        %1478 = vmatpush1.msra.mxu0 0.0
        %1479 = vmatprep.subr.mxu0 0.0
        %1480 = vmatpush1.msra.mxu0 0.0
        %1481 = vmatprep.subr.mxu0 0.0
        %1482 = vmatpush1.msra.mxu0 0.0
        %1483 = vmatprep.subr.mxu0 0.0
        %1484 = vmatpush1.msra.mxu0 0.0
        %1485 = vmatprep.subr.mxu0 0.0
        %1486 = vmatpush1.msra.mxu0 0.0
        %1487 = vmatprep.mubr.f32.mxu0 0.0
        %1488 = vmatmul.mubr.f32.gmra.mrb[0].mxu0 %v1421
        %v1489 = vpop.f32.mrb[0].mxu0
        %v1490 = vadd.f32 0.0, %v1489
        %v1491 = vpop.f32.mrb[0].mxu0
        %1492 = vdwg.mxu0
        %v1494 = vsel %vm1166, %v1490, 0
        %1496 = vmatprep.subr.mxu0 0.0
        %1497 = vmatpush1.msra.mxu0 %v909
        %1498 = vmatprep.subr.mxu0 0.0
        %1499 = vmatpush1.msra.mxu0 0.0
        %1500 = vmatprep.subr.mxu0 0.0
        %1501 = vmatpush1.msra.mxu0 0.0
        %1502 = vmatprep.subr.mxu0 0.0
        %1503 = vmatpush1.msra.mxu0 0.0
        %1504 = vmatprep.subr.mxu0 0.0
        %1505 = vmatpush1.msra.mxu0 0.0
        %1506 = vmatprep.subr.mxu0 0.0
        %1507 = vmatpush1.msra.mxu0 0.0
        %1508 = vmatprep.subr.mxu0 0.0
        %1509 = vmatpush1.msra.mxu0 0.0
        %1510 = vmatprep.subr.mxu0 0.0
        %1511 = vmatpush1.msra.mxu0 0.0
        %1512 = vmatprep.subr.mxu0 0.0
        %1513 = vmatpush1.msra.mxu0 0.0
        %1514 = vmatprep.subr.mxu0 0.0
        %1515 = vmatpush1.msra.mxu0 0.0
        %1516 = vmatprep.subr.mxu0 0.0
        %1517 = vmatpush1.msra.mxu0 0.0
        %1518 = vmatprep.subr.mxu0 0.0
        %1519 = vmatpush1.msra.mxu0 0.0
        %1520 = vmatprep.subr.mxu0 0.0
        %1521 = vmatpush1.msra.mxu0 0.0
        %1522 = vmatprep.subr.mxu0 0.0
        %1523 = vmatpush1.msra.mxu0 0.0
        %1524 = vmatprep.subr.mxu0 0.0
        %1525 = vmatpush1.msra.mxu0 0.0
        %1526 = vmatprep.subr.mxu0 0.0
        %1527 = vmatpush1.msra.mxu0 0.0
        %1528 = vmatprep.subr.mxu0 0.0
        %1529 = vmatpush1.msra.mxu0 0.0
        %1530 = vmatprep.subr.mxu0 0.0
        %1531 = vmatpush1.msra.mxu0 0.0
        %1532 = vmatprep.subr.mxu0 0.0
        %1533 = vmatpush1.msra.mxu0 0.0
        %1534 = vmatprep.subr.mxu0 0.0
        %1535 = vmatpush1.msra.mxu0 0.0
        %1536 = vmatprep.subr.mxu0 0.0
        %1537 = vmatpush1.msra.mxu0 0.0
        %1538 = vmatprep.subr.mxu0 0.0
        %1539 = vmatpush1.msra.mxu0 0.0
        %1540 = vmatprep.subr.mxu0 0.0
        %1541 = vmatpush1.msra.mxu0 0.0
        %1542 = vmatprep.subr.mxu0 0.0
        %1543 = vmatpush1.msra.mxu0 0.0
        %1544 = vmatprep.subr.mxu0 0.0
        %1545 = vmatpush1.msra.mxu0 0.0
        %1546 = vmatprep.subr.mxu0 0.0
        %1547 = vmatpush1.msra.mxu0 0.0
        %1548 = vmatprep.subr.mxu0 0.0
        %1549 = vmatpush1.msra.mxu0 0.0
        %1550 = vmatprep.subr.mxu0 0.0
        %1551 = vmatpush1.msra.mxu0 0.0
        %1552 = vmatprep.subr.mxu0 0.0
        %1553 = vmatpush1.msra.mxu0 0.0
        %1554 = vmatprep.subr.mxu0 0.0
        %1555 = vmatpush1.msra.mxu0 0.0
        %1556 = vmatprep.subr.mxu0 0.0
        %1557 = vmatpush1.msra.mxu0 0.0
        %1558 = vmatprep.subr.mxu0 0.0
        %1559 = vmatpush1.msra.mxu0 0.0
        %1560 = vmatprep.mubr.f32.mxu0 0.0
        %1561 = vmatmul.mubr.f32.gmra.mrb[0].mxu0 %v1494
        %v1562 = vpop.f32.mrb[0].mxu0
        %v1563 = vadd.f32 0.0, %v1562
        %v1564 = vpop.f32.mrb[0].mxu0
        %1565 = vdwg.mxu0
        %v1567 = vsel %vm1166, %v1324, 0
        %1569 = vmatprep.subr.mxu0 0.0
        %1570 = vmatpush1.msra.mxu0 %v908
        %1571 = vmatprep.subr.mxu0 0.0
        %1572 = vmatpush1.msra.mxu0 0.0
        %1573 = vmatprep.subr.mxu0 0.0
        %1574 = vmatpush1.msra.mxu0 0.0
        %1575 = vmatprep.subr.mxu0 0.0
        %1576 = vmatpush1.msra.mxu0 0.0
        %1577 = vmatprep.subr.mxu0 0.0
        %1578 = vmatpush1.msra.mxu0 0.0
        %1579 = vmatprep.subr.mxu0 0.0
        %1580 = vmatpush1.msra.mxu0 0.0
        %1581 = vmatprep.subr.mxu0 0.0
        %1582 = vmatpush1.msra.mxu0 0.0
        %1583 = vmatprep.subr.mxu0 0.0
        %1584 = vmatpush1.msra.mxu0 0.0
        %1585 = vmatprep.subr.mxu0 0.0
        %1586 = vmatpush1.msra.mxu0 0.0
        %1587 = vmatprep.subr.mxu0 0.0
        %1588 = vmatpush1.msra.mxu0 0.0
        %1589 = vmatprep.subr.mxu0 0.0
        %1590 = vmatpush1.msra.mxu0 0.0
        %1591 = vmatprep.subr.mxu0 0.0
        %1592 = vmatpush1.msra.mxu0 0.0
        %1593 = vmatprep.subr.mxu0 0.0
        %1594 = vmatpush1.msra.mxu0 0.0
        %1595 = vmatprep.subr.mxu0 0.0
        %1596 = vmatpush1.msra.mxu0 0.0
        %1597 = vmatprep.subr.mxu0 0.0
        %1598 = vmatpush1.msra.mxu0 0.0
        %1599 = vmatprep.subr.mxu0 0.0
        %1600 = vmatpush1.msra.mxu0 0.0
        %1601 = vmatprep.subr.mxu0 0.0
        %1602 = vmatpush1.msra.mxu0 0.0
        %1603 = vmatprep.subr.mxu0 0.0
        %1604 = vmatpush1.msra.mxu0 0.0
        %1605 = vmatprep.subr.mxu0 0.0
        %1606 = vmatpush1.msra.mxu0 0.0
        %1607 = vmatprep.subr.mxu0 0.0
        %1608 = vmatpush1.msra.mxu0 0.0
        %1609 = vmatprep.subr.mxu0 0.0
        %1610 = vmatpush1.msra.mxu0 0.0
        %1611 = vmatprep.subr.mxu0 0.0
        %1612 = vmatpush1.msra.mxu0 0.0
        %1613 = vmatprep.subr.mxu0 0.0
        %1614 = vmatpush1.msra.mxu0 0.0
        %1615 = vmatprep.subr.mxu0 0.0
        %1616 = vmatpush1.msra.mxu0 0.0
        %1617 = vmatprep.subr.mxu0 0.0
        %1618 = vmatpush1.msra.mxu0 0.0
        %1619 = vmatprep.subr.mxu0 0.0
        %1620 = vmatpush1.msra.mxu0 0.0
        %1621 = vmatprep.subr.mxu0 0.0
        %1622 = vmatpush1.msra.mxu0 0.0
        %1623 = vmatprep.subr.mxu0 0.0
        %1624 = vmatpush1.msra.mxu0 0.0
        %1625 = vmatprep.subr.mxu0 0.0
        %1626 = vmatpush1.msra.mxu0 0.0
        %1627 = vmatprep.subr.mxu0 0.0
        %1628 = vmatpush1.msra.mxu0 0.0
        %1629 = vmatprep.subr.mxu0 0.0
        %1630 = vmatpush1.msra.mxu0 0.0
        %1631 = vmatprep.subr.mxu0 0.0
        %1632 = vmatpush1.msra.mxu0 0.0
        %1633 = vmatprep.mubr.f32.mxu0 0.0
        %1634 = vmatmul.mubr.f32.gmra.mrb[0].mxu0 %v1567
        %v1635 = vpop.f32.mrb[0].mxu0
        %v1636 = vadd.f32 %v1563, %v1635
        %v1637 = vpop.f32.mrb[0].mxu0
        %1638 = vdwg.mxu0
        %1639 = vrot.lane.b32.xlu0 %v1022, 112
        %v1640 = vpop.permute.xlu0 %1639
        %1641 = vrot.lane.b32.xlu0 %v1093, 112
        %v1642 = vpop.permute.xlu0 %1641
        %v1643 = vsel %vm1166, %v1640, 0
        %v1645 = vsel %vm1166, %v1642, 0
        %1647 = vmatprep.subr.mxu0 0.0
        %1648 = vmatpush1.xpose.msra.mxu0 %v1645
        %1649 = vmatprep.subr.mxu0 0.0
        %1650 = vmatpush1.xpose.msra.mxu0 0.0
        %1651 = vmatprep.subr.mxu0 0.0
        %1652 = vmatpush1.xpose.msra.mxu0 0.0
        %1653 = vmatprep.subr.mxu0 0.0
        %1654 = vmatpush1.xpose.msra.mxu0 0.0
        %1655 = vmatprep.subr.mxu0 0.0
        %1656 = vmatpush1.xpose.msra.mxu0 0.0
        %1657 = vmatprep.subr.mxu0 0.0
        %1658 = vmatpush1.xpose.msra.mxu0 0.0
        %1659 = vmatprep.subr.mxu0 0.0
        %1660 = vmatpush1.xpose.msra.mxu0 0.0
        %1661 = vmatprep.subr.mxu0 0.0
        %1662 = vmatpush1.xpose.msra.mxu0 0.0
        %1663 = vmatprep.subr.mxu0 0.0
        %1664 = vmatpush1.xpose.msra.mxu0 0.0
        %1665 = vmatprep.subr.mxu0 0.0
        %1666 = vmatpush1.xpose.msra.mxu0 0.0
        %1667 = vmatprep.subr.mxu0 0.0
        %1668 = vmatpush1.xpose.msra.mxu0 0.0
        %1669 = vmatprep.subr.mxu0 0.0
        %1670 = vmatpush1.xpose.msra.mxu0 0.0
        %1671 = vmatprep.subr.mxu0 0.0
        %1672 = vmatpush1.xpose.msra.mxu0 0.0
        %1673 = vmatprep.subr.mxu0 0.0
        %1674 = vmatpush1.xpose.msra.mxu0 0.0
        %1675 = vmatprep.subr.mxu0 0.0
        %1676 = vmatpush1.xpose.msra.mxu0 0.0
        %1677 = vmatprep.subr.mxu0 0.0
        %1678 = vmatpush1.xpose.msra.mxu0 0.0
        %1679 = vmatprep.subr.mxu0 0.0
        %1680 = vmatpush1.xpose.msra.mxu0 0.0
        %1681 = vmatprep.subr.mxu0 0.0
        %1682 = vmatpush1.xpose.msra.mxu0 0.0
        %1683 = vmatprep.subr.mxu0 0.0
        %1684 = vmatpush1.xpose.msra.mxu0 0.0
        %1685 = vmatprep.subr.mxu0 0.0
        %1686 = vmatpush1.xpose.msra.mxu0 0.0
        %1687 = vmatprep.subr.mxu0 0.0
        %1688 = vmatpush1.xpose.msra.mxu0 0.0
        %1689 = vmatprep.subr.mxu0 0.0
        %1690 = vmatpush1.xpose.msra.mxu0 0.0
        %1691 = vmatprep.subr.mxu0 0.0
        %1692 = vmatpush1.xpose.msra.mxu0 0.0
        %1693 = vmatprep.subr.mxu0 0.0
        %1694 = vmatpush1.xpose.msra.mxu0 0.0
        %1695 = vmatprep.subr.mxu0 0.0
        %1696 = vmatpush1.xpose.msra.mxu0 0.0
        %1697 = vmatprep.subr.mxu0 0.0
        %1698 = vmatpush1.xpose.msra.mxu0 0.0
        %1699 = vmatprep.subr.mxu0 0.0
        %1700 = vmatpush1.xpose.msra.mxu0 0.0
        %1701 = vmatprep.subr.mxu0 0.0
        %1702 = vmatpush1.xpose.msra.mxu0 0.0
        %1703 = vmatprep.subr.mxu0 0.0
        %1704 = vmatpush1.xpose.msra.mxu0 0.0
        %1705 = vmatprep.subr.mxu0 0.0
        %1706 = vmatpush1.xpose.msra.mxu0 0.0
        %1707 = vmatprep.subr.mxu0 0.0
        %1708 = vmatpush1.xpose.msra.mxu0 0.0
        %1709 = vmatprep.subr.mxu0 0.0
        %1710 = vmatpush1.xpose.msra.mxu0 0.0
        %1711 = vmatprep.mubr.f32.mxu0 0.0
        %1712 = vmatmul.mubr.f32.gmra.mrb[0].mxu0 %v1643
        %v1713 = vpop.f32.mrb[0].mxu0
        %v1714 = vadd.f32 %v891, %v1713
        %v1715 = vpop.f32.mrb[0].mxu0
        %1716 = vdwg.mxu0
        %v1717 = vsel %vm1166, %v1714, -inf
        %1718 = vmax.xlane.f32.xlu0 %v1717
        %v1719 = vpop.xlane.xlu0 %1718
        %v1720 = vsub.f32 %v1714, %v1719
        %v1721 = vmul.f32 %v1720, 1.442695
        %v1722 = vpow.pop %v1721
        %v1723 = vsel %vm1166, %v1722, 0.0
        %1724 = vadd.xlane.f32.xlu0 %v1723
        %v1725 = vpop.xlane.xlu0 %1724
        %v1726 = vrcp.pop %v1725
        %v1727 = vmul.f32 %v1722, %v1726
        %1728 = vrot.lane.b32.xlu0 %v1163, 112
        %v1729 = vpop.permute.xlu0 %1728
        %v1732 = vsel %vm1166, %v1727, 0
        %1734 = vmatprep.subr.mxu0 0.0
        %1735 = vmatpush1.msra.mxu0 %v1729
        %1736 = vmatprep.subr.mxu0 0.0
        %1737 = vmatpush1.msra.mxu0 0.0
        %1738 = vmatprep.subr.mxu0 0.0
        %1739 = vmatpush1.msra.mxu0 0.0
        %1740 = vmatprep.subr.mxu0 0.0
        %1741 = vmatpush1.msra.mxu0 0.0
        %1742 = vmatprep.subr.mxu0 0.0
        %1743 = vmatpush1.msra.mxu0 0.0
        %1744 = vmatprep.subr.mxu0 0.0
        %1745 = vmatpush1.msra.mxu0 0.0
        %1746 = vmatprep.subr.mxu0 0.0
        %1747 = vmatpush1.msra.mxu0 0.0
        %1748 = vmatprep.subr.mxu0 0.0
        %1749 = vmatpush1.msra.mxu0 0.0
        %1750 = vmatprep.subr.mxu0 0.0
        %1751 = vmatpush1.msra.mxu0 0.0
        %1752 = vmatprep.subr.mxu0 0.0
        %1753 = vmatpush1.msra.mxu0 0.0
        %1754 = vmatprep.subr.mxu0 0.0
        %1755 = vmatpush1.msra.mxu0 0.0
        %1756 = vmatprep.subr.mxu0 0.0
        %1757 = vmatpush1.msra.mxu0 0.0
        %1758 = vmatprep.subr.mxu0 0.0
        %1759 = vmatpush1.msra.mxu0 0.0
        %1760 = vmatprep.subr.mxu0 0.0
        %1761 = vmatpush1.msra.mxu0 0.0
        %1762 = vmatprep.subr.mxu0 0.0
        %1763 = vmatpush1.msra.mxu0 0.0
        %1764 = vmatprep.subr.mxu0 0.0
        %1765 = vmatpush1.msra.mxu0 0.0
        %1766 = vmatprep.subr.mxu0 0.0
        %1767 = vmatpush1.msra.mxu0 0.0
        %1768 = vmatprep.subr.mxu0 0.0
        %1769 = vmatpush1.msra.mxu0 0.0
        %1770 = vmatprep.subr.mxu0 0.0
        %1771 = vmatpush1.msra.mxu0 0.0
        %1772 = vmatprep.subr.mxu0 0.0
        %1773 = vmatpush1.msra.mxu0 0.0
        %1774 = vmatprep.subr.mxu0 0.0
        %1775 = vmatpush1.msra.mxu0 0.0
        %1776 = vmatprep.subr.mxu0 0.0
        %1777 = vmatpush1.msra.mxu0 0.0
        %1778 = vmatprep.subr.mxu0 0.0
        %1779 = vmatpush1.msra.mxu0 0.0
        %1780 = vmatprep.subr.mxu0 0.0
        %1781 = vmatpush1.msra.mxu0 0.0
        %1782 = vmatprep.subr.mxu0 0.0
        %1783 = vmatpush1.msra.mxu0 0.0
        %1784 = vmatprep.subr.mxu0 0.0
        %1785 = vmatpush1.msra.mxu0 0.0
        %1786 = vmatprep.subr.mxu0 0.0
        %1787 = vmatpush1.msra.mxu0 0.0
        %1788 = vmatprep.subr.mxu0 0.0
        %1789 = vmatpush1.msra.mxu0 0.0
        %1790 = vmatprep.subr.mxu0 0.0
        %1791 = vmatpush1.msra.mxu0 0.0
        %1792 = vmatprep.subr.mxu0 0.0
        %1793 = vmatpush1.msra.mxu0 0.0
        %1794 = vmatprep.subr.mxu0 0.0
        %1795 = vmatpush1.msra.mxu0 0.0
        %1796 = vmatprep.subr.mxu0 0.0
        %1797 = vmatpush1.msra.mxu0 0.0
        %1798 = vmatprep.mubr.f32.mxu0 0.0
        %1799 = vmatmul.mubr.f32.gmra.mrb[0].mxu0 %v1732
        %v1800 = vpop.f32.mrb[0].mxu0
        %v1801 = vadd.f32 0.0, %v1800
        %v1802 = vpop.f32.mrb[0].mxu0
        %1803 = vdwg.mxu0
        %v1805 = vsel %vm1166, %v1801, 0
        %1807 = vmatprep.subr.mxu0 0.0
        %1808 = vmatpush1.msra.mxu0 %v910
        %1809 = vmatprep.subr.mxu0 0.0
        %1810 = vmatpush1.msra.mxu0 0.0
        %1811 = vmatprep.subr.mxu0 0.0
        %1812 = vmatpush1.msra.mxu0 0.0
        %1813 = vmatprep.subr.mxu0 0.0
        %1814 = vmatpush1.msra.mxu0 0.0
        %1815 = vmatprep.subr.mxu0 0.0
        %1816 = vmatpush1.msra.mxu0 0.0
        %1817 = vmatprep.subr.mxu0 0.0
        %1818 = vmatpush1.msra.mxu0 0.0
        %1819 = vmatprep.subr.mxu0 0.0
        %1820 = vmatpush1.msra.mxu0 0.0
        %1821 = vmatprep.subr.mxu0 0.0
        %1822 = vmatpush1.msra.mxu0 0.0
        %1823 = vmatprep.subr.mxu0 0.0
        %1824 = vmatpush1.msra.mxu0 0.0
        %1825 = vmatprep.subr.mxu0 0.0
        %1826 = vmatpush1.msra.mxu0 0.0
        %1827 = vmatprep.subr.mxu0 0.0
        %1828 = vmatpush1.msra.mxu0 0.0
        %1829 = vmatprep.subr.mxu0 0.0
        %1830 = vmatpush1.msra.mxu0 0.0
        %1831 = vmatprep.subr.mxu0 0.0
        %1832 = vmatpush1.msra.mxu0 0.0
        %1833 = vmatprep.subr.mxu0 0.0
        %1834 = vmatpush1.msra.mxu0 0.0
        %1835 = vmatprep.subr.mxu0 0.0
        %1836 = vmatpush1.msra.mxu0 0.0
        %1837 = vmatprep.subr.mxu0 0.0
        %1838 = vmatpush1.msra.mxu0 0.0
        %1839 = vmatprep.subr.mxu0 0.0
        %1840 = vmatpush1.msra.mxu0 0.0
        %1841 = vmatprep.subr.mxu0 0.0
        %1842 = vmatpush1.msra.mxu0 0.0
        %1843 = vmatprep.subr.mxu0 0.0
        %1844 = vmatpush1.msra.mxu0 0.0
        %1845 = vmatprep.subr.mxu0 0.0
        %1846 = vmatpush1.msra.mxu0 0.0
        %1847 = vmatprep.subr.mxu0 0.0
        %1848 = vmatpush1.msra.mxu0 0.0
        %1849 = vmatprep.subr.mxu0 0.0
        %1850 = vmatpush1.msra.mxu0 0.0
        %1851 = vmatprep.subr.mxu0 0.0
        %1852 = vmatpush1.msra.mxu0 0.0
        %1853 = vmatprep.subr.mxu0 0.0
        %1854 = vmatpush1.msra.mxu0 0.0
        %1855 = vmatprep.subr.mxu0 0.0
        %1856 = vmatpush1.msra.mxu0 0.0
        %1857 = vmatprep.subr.mxu0 0.0
        %1858 = vmatpush1.msra.mxu0 0.0
        %1859 = vmatprep.subr.mxu0 0.0
        %1860 = vmatpush1.msra.mxu0 0.0
        %1861 = vmatprep.subr.mxu0 0.0
        %1862 = vmatpush1.msra.mxu0 0.0
        %1863 = vmatprep.subr.mxu0 0.0
        %1864 = vmatpush1.msra.mxu0 0.0
        %1865 = vmatprep.subr.mxu0 0.0
        %1866 = vmatpush1.msra.mxu0 0.0
        %1867 = vmatprep.subr.mxu0 0.0
        %1868 = vmatpush1.msra.mxu0 0.0
        %1869 = vmatprep.subr.mxu0 0.0
        %1870 = vmatpush1.msra.mxu0 0.0
        %1871 = vmatprep.mubr.f32.mxu0 0.0
        %1872 = vmatmul.mubr.f32.gmra.mrb[0].mxu0 %v1805
        %v1873 = vpop.f32.mrb[0].mxu0
        %v1874 = vadd.f32 0.0, %v1873
        %v1875 = vpop.f32.mrb[0].mxu0
        %1876 = vdwg.mxu0
        %v1877 = vadd.f32 %v1636, %v1874
        %1878 = vrot.lane.b32.xlu0 %v1022, 104
        %v1879 = vpop.permute.xlu0 %1878
        %1880 = vrot.lane.b32.xlu0 %v1093, 104
        %v1881 = vpop.permute.xlu0 %1880
        %v1882 = vsel %vm1166, %v1879, 0
        %v1884 = vsel %vm1166, %v1881, 0
        %1886 = vmatprep.subr.mxu0 0.0
        %1887 = vmatpush1.xpose.msra.mxu0 %v1884
        %1888 = vmatprep.subr.mxu0 0.0
        %1889 = vmatpush1.xpose.msra.mxu0 0.0
        %1890 = vmatprep.subr.mxu0 0.0
        %1891 = vmatpush1.xpose.msra.mxu0 0.0
        %1892 = vmatprep.subr.mxu0 0.0
        %1893 = vmatpush1.xpose.msra.mxu0 0.0
        %1894 = vmatprep.subr.mxu0 0.0
        %1895 = vmatpush1.xpose.msra.mxu0 0.0
        %1896 = vmatprep.subr.mxu0 0.0
        %1897 = vmatpush1.xpose.msra.mxu0 0.0
        %1898 = vmatprep.subr.mxu0 0.0
        %1899 = vmatpush1.xpose.msra.mxu0 0.0
        %1900 = vmatprep.subr.mxu0 0.0
        %1901 = vmatpush1.xpose.msra.mxu0 0.0
        %1902 = vmatprep.subr.mxu0 0.0
        %1903 = vmatpush1.xpose.msra.mxu0 0.0
        %1904 = vmatprep.subr.mxu0 0.0
        %1905 = vmatpush1.xpose.msra.mxu0 0.0
        %1906 = vmatprep.subr.mxu0 0.0
        %1907 = vmatpush1.xpose.msra.mxu0 0.0
        %1908 = vmatprep.subr.mxu0 0.0
        %1909 = vmatpush1.xpose.msra.mxu0 0.0
        %1910 = vmatprep.subr.mxu0 0.0
        %1911 = vmatpush1.xpose.msra.mxu0 0.0
        %1912 = vmatprep.subr.mxu0 0.0
        %1913 = vmatpush1.xpose.msra.mxu0 0.0
        %1914 = vmatprep.subr.mxu0 0.0
        %1915 = vmatpush1.xpose.msra.mxu0 0.0
        %1916 = vmatprep.subr.mxu0 0.0
        %1917 = vmatpush1.xpose.msra.mxu0 0.0
        %1918 = vmatprep.subr.mxu0 0.0
        %1919 = vmatpush1.xpose.msra.mxu0 0.0
        %1920 = vmatprep.subr.mxu0 0.0
        %1921 = vmatpush1.xpose.msra.mxu0 0.0
        %1922 = vmatprep.subr.mxu0 0.0
        %1923 = vmatpush1.xpose.msra.mxu0 0.0
        %1924 = vmatprep.subr.mxu0 0.0
        %1925 = vmatpush1.xpose.msra.mxu0 0.0
        %1926 = vmatprep.subr.mxu0 0.0
        %1927 = vmatpush1.xpose.msra.mxu0 0.0
        %1928 = vmatprep.subr.mxu0 0.0
        %1929 = vmatpush1.xpose.msra.mxu0 0.0
        %1930 = vmatprep.subr.mxu0 0.0
        %1931 = vmatpush1.xpose.msra.mxu0 0.0
        %1932 = vmatprep.subr.mxu0 0.0
        %1933 = vmatpush1.xpose.msra.mxu0 0.0
        %1934 = vmatprep.subr.mxu0 0.0
        %1935 = vmatpush1.xpose.msra.mxu0 0.0
        %1936 = vmatprep.subr.mxu0 0.0
        %1937 = vmatpush1.xpose.msra.mxu0 0.0
        %1938 = vmatprep.subr.mxu0 0.0
        %1939 = vmatpush1.xpose.msra.mxu0 0.0
        %1940 = vmatprep.subr.mxu0 0.0
        %1941 = vmatpush1.xpose.msra.mxu0 0.0
        %1942 = vmatprep.subr.mxu0 0.0
        %1943 = vmatpush1.xpose.msra.mxu0 0.0
        %1944 = vmatprep.subr.mxu0 0.0
        %1945 = vmatpush1.xpose.msra.mxu0 0.0
        %1946 = vmatprep.subr.mxu0 0.0
        %1947 = vmatpush1.xpose.msra.mxu0 0.0
        %1948 = vmatprep.subr.mxu0 0.0
        %1949 = vmatpush1.xpose.msra.mxu0 0.0
        %1950 = vmatprep.mubr.f32.mxu0 0.0
        %1951 = vmatmul.mubr.f32.gmra.mrb[0].mxu0 %v1882
        %v1952 = vpop.f32.mrb[0].mxu0
        %v1953 = vadd.f32 %v891, %v1952
        %v1954 = vpop.f32.mrb[0].mxu0
        %1955 = vdwg.mxu0
        %v1956 = vsel %vm1166, %v1953, -inf
        %1957 = vmax.xlane.f32.xlu0 %v1956
        %v1958 = vpop.xlane.xlu0 %1957
        %v1959 = vsub.f32 %v1953, %v1958
        %v1960 = vmul.f32 %v1959, 1.442695
        %v1961 = vpow.pop %v1960
        %v1962 = vsel %vm1166, %v1961, 0.0
        %1963 = vadd.xlane.f32.xlu0 %v1962
        %v1964 = vpop.xlane.xlu0 %1963
        %v1965 = vrcp.pop %v1964
        %v1966 = vmul.f32 %v1961, %v1965
        %1967 = vrot.lane.b32.xlu0 %v1163, 104
        %v1968 = vpop.permute.xlu0 %1967
        %v1971 = vsel %vm1166, %v1966, 0
        %1973 = vmatprep.subr.mxu0 0.0
        %1974 = vmatpush1.msra.mxu0 %v1968
        %1975 = vmatprep.subr.mxu0 0.0
        %1976 = vmatpush1.msra.mxu0 0.0
        %1977 = vmatprep.subr.mxu0 0.0
        %1978 = vmatpush1.msra.mxu0 0.0
        %1979 = vmatprep.subr.mxu0 0.0
        %1980 = vmatpush1.msra.mxu0 0.0
        %1981 = vmatprep.subr.mxu0 0.0
        %1982 = vmatpush1.msra.mxu0 0.0
        %1983 = vmatprep.subr.mxu0 0.0
        %1984 = vmatpush1.msra.mxu0 0.0
        %1985 = vmatprep.subr.mxu0 0.0
        %1986 = vmatpush1.msra.mxu0 0.0
        %1987 = vmatprep.subr.mxu0 0.0
        %1988 = vmatpush1.msra.mxu0 0.0
        %1989 = vmatprep.subr.mxu0 0.0
        %1990 = vmatpush1.msra.mxu0 0.0
        %1991 = vmatprep.subr.mxu0 0.0
        %1992 = vmatpush1.msra.mxu0 0.0
        %1993 = vmatprep.subr.mxu0 0.0
        %1994 = vmatpush1.msra.mxu0 0.0
        %1995 = vmatprep.subr.mxu0 0.0
        %1996 = vmatpush1.msra.mxu0 0.0
        %1997 = vmatprep.subr.mxu0 0.0
        %1998 = vmatpush1.msra.mxu0 0.0
        %1999 = vmatprep.subr.mxu0 0.0
        %2000 = vmatpush1.msra.mxu0 0.0
        %2001 = vmatprep.subr.mxu0 0.0
        %2002 = vmatpush1.msra.mxu0 0.0
        %2003 = vmatprep.subr.mxu0 0.0
        %2004 = vmatpush1.msra.mxu0 0.0
        %2005 = vmatprep.subr.mxu0 0.0
        %2006 = vmatpush1.msra.mxu0 0.0
        %2007 = vmatprep.subr.mxu0 0.0
        %2008 = vmatpush1.msra.mxu0 0.0
        %2009 = vmatprep.subr.mxu0 0.0
        %2010 = vmatpush1.msra.mxu0 0.0
        %2011 = vmatprep.subr.mxu0 0.0
        %2012 = vmatpush1.msra.mxu0 0.0
        %2013 = vmatprep.subr.mxu0 0.0
        %2014 = vmatpush1.msra.mxu0 0.0
        %2015 = vmatprep.subr.mxu0 0.0
        %2016 = vmatpush1.msra.mxu0 0.0
        %2017 = vmatprep.subr.mxu0 0.0
        %2018 = vmatpush1.msra.mxu0 0.0
        %2019 = vmatprep.subr.mxu0 0.0
        %2020 = vmatpush1.msra.mxu0 0.0
        %2021 = vmatprep.subr.mxu0 0.0
        %2022 = vmatpush1.msra.mxu0 0.0
        %2023 = vmatprep.subr.mxu0 0.0
        %2024 = vmatpush1.msra.mxu0 0.0
        %2025 = vmatprep.subr.mxu0 0.0
        %2026 = vmatpush1.msra.mxu0 0.0
        %2027 = vmatprep.subr.mxu0 0.0
        %2028 = vmatpush1.msra.mxu0 0.0
        %2029 = vmatprep.subr.mxu0 0.0
        %2030 = vmatpush1.msra.mxu0 0.0
        %2031 = vmatprep.subr.mxu0 0.0
        %2032 = vmatpush1.msra.mxu0 0.0
        %2033 = vmatprep.subr.mxu0 0.0
        %2034 = vmatpush1.msra.mxu0 0.0
        %2035 = vmatprep.subr.mxu0 0.0
        %2036 = vmatpush1.msra.mxu0 0.0
        %2037 = vmatprep.mubr.f32.mxu0 0.0
        %2038 = vmatmul.mubr.f32.gmra.mrb[0].mxu0 %v1971
        %v2039 = vpop.f32.mrb[0].mxu0
        %v2040 = vadd.f32 0.0, %v2039
        %v2041 = vpop.f32.mrb[0].mxu0
        %2042 = vdwg.mxu0
        %v2044 = vsel %vm1166, %v2040, 0
        %2046 = vmatprep.subr.mxu0 0.0
        %2047 = vmatpush1.msra.mxu0 %v911
        %2048 = vmatprep.subr.mxu0 0.0
        %2049 = vmatpush1.msra.mxu0 0.0
        %2050 = vmatprep.subr.mxu0 0.0
        %2051 = vmatpush1.msra.mxu0 0.0
        %2052 = vmatprep.subr.mxu0 0.0
        %2053 = vmatpush1.msra.mxu0 0.0
        %2054 = vmatprep.subr.mxu0 0.0
        %2055 = vmatpush1.msra.mxu0 0.0
        %2056 = vmatprep.subr.mxu0 0.0
        %2057 = vmatpush1.msra.mxu0 0.0
        %2058 = vmatprep.subr.mxu0 0.0
        %2059 = vmatpush1.msra.mxu0 0.0
        %2060 = vmatprep.subr.mxu0 0.0
        %2061 = vmatpush1.msra.mxu0 0.0
        %2062 = vmatprep.subr.mxu0 0.0
        %2063 = vmatpush1.msra.mxu0 0.0
        %2064 = vmatprep.subr.mxu0 0.0
        %2065 = vmatpush1.msra.mxu0 0.0
        %2066 = vmatprep.subr.mxu0 0.0
        %2067 = vmatpush1.msra.mxu0 0.0
        %2068 = vmatprep.subr.mxu0 0.0
        %2069 = vmatpush1.msra.mxu0 0.0
        %2070 = vmatprep.subr.mxu0 0.0
        %2071 = vmatpush1.msra.mxu0 0.0
        %2072 = vmatprep.subr.mxu0 0.0
        %2073 = vmatpush1.msra.mxu0 0.0
        %2074 = vmatprep.subr.mxu0 0.0
        %2075 = vmatpush1.msra.mxu0 0.0
        %2076 = vmatprep.subr.mxu0 0.0
        %2077 = vmatpush1.msra.mxu0 0.0
        %2078 = vmatprep.subr.mxu0 0.0
        %2079 = vmatpush1.msra.mxu0 0.0
        %2080 = vmatprep.subr.mxu0 0.0
        %2081 = vmatpush1.msra.mxu0 0.0
        %2082 = vmatprep.subr.mxu0 0.0
        %2083 = vmatpush1.msra.mxu0 0.0
        %2084 = vmatprep.subr.mxu0 0.0
        %2085 = vmatpush1.msra.mxu0 0.0
        %2086 = vmatprep.subr.mxu0 0.0
        %2087 = vmatpush1.msra.mxu0 0.0
        %2088 = vmatprep.subr.mxu0 0.0
        %2089 = vmatpush1.msra.mxu0 0.0
        %2090 = vmatprep.subr.mxu0 0.0
        %2091 = vmatpush1.msra.mxu0 0.0
        %2092 = vmatprep.subr.mxu0 0.0
        %2093 = vmatpush1.msra.mxu0 0.0
        %2094 = vmatprep.subr.mxu0 0.0
        %2095 = vmatpush1.msra.mxu0 0.0
        %2096 = vmatprep.subr.mxu0 0.0
        %2097 = vmatpush1.msra.mxu0 0.0
        %2098 = vmatprep.subr.mxu0 0.0
        %2099 = vmatpush1.msra.mxu0 0.0
        %2100 = vmatprep.subr.mxu0 0.0
        %2101 = vmatpush1.msra.mxu0 0.0
        %2102 = vmatprep.subr.mxu0 0.0
        %2103 = vmatpush1.msra.mxu0 0.0
        %2104 = vmatprep.subr.mxu0 0.0
        %2105 = vmatpush1.msra.mxu0 0.0
        %2106 = vmatprep.subr.mxu0 0.0
        %2107 = vmatpush1.msra.mxu0 0.0
        %2108 = vmatprep.subr.mxu0 0.0
        %2109 = vmatpush1.msra.mxu0 0.0
        %2110 = vmatprep.mubr.f32.mxu0 0.0
        %2111 = vmatmul.mubr.f32.gmra.mrb[0].mxu0 %v2044
        %v2112 = vpop.f32.mrb[0].mxu0
        %v2113 = vadd.f32 0.0, %v2112
        %v2114 = vpop.f32.mrb[0].mxu0
        %2115 = vdwg.mxu0
        %v2116 = vadd.f32 %v1877, %v2113
        %v2117 = vadd.f32 %v883, %v2116
        %v2118 = vsel %vm948, %v2117, 0.0
        %2119 = vadd.xlane.f32.xlu0 %v2118
        %v2120 = vpop.xlane.xlu0 %2119
        %v2121 = vrcp.pop 32.0
        %v2122 = vmul.f32 %v2120, %v2121
        %v2123 = vsub.f32 %v2117, %v2122
        %v2124 = vmul.f32 %v2123, %v2123
        %v2125 = vsel %vm948, %v2124, 0.0
        %2126 = vadd.xlane.f32.xlu0 %v2125
        %v2127 = vpop.xlane.xlu0 %2126
        %v2128 = vmul.f32 %v2127, %v2121
        %v2129 = vadd.f32 %v2128, 1e-05
        %v2130 = vrsqrt.pop %v2129
        %v2131 = vmul.f32 %v2123, %v2130
        %v2133 = vlaneseq
        %v2134 = vshrl.u32 %v2133, 7
        %v2135 = vsub.s32 0, %v2134
        %v2136 = vrot.slane %v928, %v2135
        %v2138 = vmul.f32 %v2131, %v2136
        %v2140 = vlaneseq
        %v2141 = vshrl.u32 %v2140, 7
        %v2142 = vsub.s32 0, %v2141
        %v2143 = vrot.slane %v929, %v2142
        %v2145 = vadd.f32 %v2138, %v2143
        %v2147 = vsel %vm948, %v2145, 0
        %2149 = vmatprep.subr.mxu0 0.0
        %2150 = vmatpush1.msra.mxu0 %v912
        %2151 = vmatprep.subr.mxu0 0.0
        %2152 = vmatpush1.msra.mxu0 %v913
        %2153 = vmatprep.subr.mxu0 0.0
        %2154 = vmatpush1.msra.mxu0 %v914
        %2155 = vmatprep.subr.mxu0 0.0
        %2156 = vmatpush1.msra.mxu0 %v915
        %2157 = vmatprep.subr.mxu0 0.0
        %2158 = vmatpush1.msra.mxu0 0.0
        %2159 = vmatprep.subr.mxu0 0.0
        %2160 = vmatpush1.msra.mxu0 0.0
        %2161 = vmatprep.subr.mxu0 0.0
        %2162 = vmatpush1.msra.mxu0 0.0
        %2163 = vmatprep.subr.mxu0 0.0
        %2164 = vmatpush1.msra.mxu0 0.0
        %2165 = vmatprep.subr.mxu0 0.0
        %2166 = vmatpush1.msra.mxu0 0.0
        %2167 = vmatprep.subr.mxu0 0.0
        %2168 = vmatpush1.msra.mxu0 0.0
        %2169 = vmatprep.subr.mxu0 0.0
        %2170 = vmatpush1.msra.mxu0 0.0
        %2171 = vmatprep.subr.mxu0 0.0
        %2172 = vmatpush1.msra.mxu0 0.0
        %2173 = vmatprep.subr.mxu0 0.0
        %2174 = vmatpush1.msra.mxu0 0.0
        %2175 = vmatprep.subr.mxu0 0.0
        %2176 = vmatpush1.msra.mxu0 0.0
        %2177 = vmatprep.subr.mxu0 0.0
        %2178 = vmatpush1.msra.mxu0 0.0
        %2179 = vmatprep.subr.mxu0 0.0
        %2180 = vmatpush1.msra.mxu0 0.0
        %2181 = vmatprep.subr.mxu0 0.0
        %2182 = vmatpush1.msra.mxu0 0.0
        %2183 = vmatprep.subr.mxu0 0.0
        %2184 = vmatpush1.msra.mxu0 0.0
        %2185 = vmatprep.subr.mxu0 0.0
        %2186 = vmatpush1.msra.mxu0 0.0
        %2187 = vmatprep.subr.mxu0 0.0
        %2188 = vmatpush1.msra.mxu0 0.0
        %2189 = vmatprep.subr.mxu0 0.0
        %2190 = vmatpush1.msra.mxu0 0.0
        %2191 = vmatprep.subr.mxu0 0.0
        %2192 = vmatpush1.msra.mxu0 0.0
        %2193 = vmatprep.subr.mxu0 0.0
        %2194 = vmatpush1.msra.mxu0 0.0
        %2195 = vmatprep.subr.mxu0 0.0
        %2196 = vmatpush1.msra.mxu0 0.0
        %2197 = vmatprep.subr.mxu0 0.0
        %2198 = vmatpush1.msra.mxu0 0.0
        %2199 = vmatprep.subr.mxu0 0.0
        %2200 = vmatpush1.msra.mxu0 0.0
        %2201 = vmatprep.subr.mxu0 0.0
        %2202 = vmatpush1.msra.mxu0 0.0
        %2203 = vmatprep.subr.mxu0 0.0
        %2204 = vmatpush1.msra.mxu0 0.0
        %2205 = vmatprep.subr.mxu0 0.0
        %2206 = vmatpush1.msra.mxu0 0.0
        %2207 = vmatprep.subr.mxu0 0.0
        %2208 = vmatpush1.msra.mxu0 0.0
        %2209 = vmatprep.subr.mxu0 0.0
        %2210 = vmatpush1.msra.mxu0 0.0
        %2211 = vmatprep.subr.mxu0 0.0
        %2212 = vmatpush1.msra.mxu0 0.0
        %2213 = vmatprep.mubr.f32.mxu0 0.0
        %2214 = vmatmul.mubr.f32.gmra.mrb[0].mxu0 %v2147
        %v2215 = vpop.f32.mrb[0].mxu0
        %v2216 = vadd.f32 0.0, %v2215
        %v2217 = vpop.f32.mrb[0].mxu0
        %2218 = vdwg.mxu0
        %v2219 = vmul.f32 %v2216, 0.35355338
        %v2221 = vsel %vm948, %v885, 0
        %2223 = vmatprep.subr.mxu0 0.0
        %2224 = vmatpush1.msra.mxu0 %v916
        %2225 = vmatprep.subr.mxu0 0.0
        %2226 = vmatpush1.msra.mxu0 %v917
        %2227 = vmatprep.subr.mxu0 0.0
        %2228 = vmatpush1.msra.mxu0 %v918
        %2229 = vmatprep.subr.mxu0 0.0
        %2230 = vmatpush1.msra.mxu0 %v919
        %2231 = vmatprep.subr.mxu0 0.0
        %2232 = vmatpush1.msra.mxu0 0.0
        %2233 = vmatprep.subr.mxu0 0.0
        %2234 = vmatpush1.msra.mxu0 0.0
        %2235 = vmatprep.subr.mxu0 0.0
        %2236 = vmatpush1.msra.mxu0 0.0
        %2237 = vmatprep.subr.mxu0 0.0
        %2238 = vmatpush1.msra.mxu0 0.0
        %2239 = vmatprep.subr.mxu0 0.0
        %2240 = vmatpush1.msra.mxu0 0.0
        %2241 = vmatprep.subr.mxu0 0.0
        %2242 = vmatpush1.msra.mxu0 0.0
        %2243 = vmatprep.subr.mxu0 0.0
        %2244 = vmatpush1.msra.mxu0 0.0
        %2245 = vmatprep.subr.mxu0 0.0
        %2246 = vmatpush1.msra.mxu0 0.0
        %2247 = vmatprep.subr.mxu0 0.0
        %2248 = vmatpush1.msra.mxu0 0.0
        %2249 = vmatprep.subr.mxu0 0.0
        %2250 = vmatpush1.msra.mxu0 0.0
        %2251 = vmatprep.subr.mxu0 0.0
        %2252 = vmatpush1.msra.mxu0 0.0
        %2253 = vmatprep.subr.mxu0 0.0
        %2254 = vmatpush1.msra.mxu0 0.0
        %2255 = vmatprep.subr.mxu0 0.0
        %2256 = vmatpush1.msra.mxu0 0.0
        %2257 = vmatprep.subr.mxu0 0.0
        %2258 = vmatpush1.msra.mxu0 0.0
        %2259 = vmatprep.subr.mxu0 0.0
        %2260 = vmatpush1.msra.mxu0 0.0
        %2261 = vmatprep.subr.mxu0 0.0
        %2262 = vmatpush1.msra.mxu0 0.0
        %2263 = vmatprep.subr.mxu0 0.0
        %2264 = vmatpush1.msra.mxu0 0.0
        %2265 = vmatprep.subr.mxu0 0.0
        %2266 = vmatpush1.msra.mxu0 0.0
        %2267 = vmatprep.subr.mxu0 0.0
        %2268 = vmatpush1.msra.mxu0 0.0
        %2269 = vmatprep.subr.mxu0 0.0
        %2270 = vmatpush1.msra.mxu0 0.0
        %2271 = vmatprep.subr.mxu0 0.0
        %2272 = vmatpush1.msra.mxu0 0.0
        %2273 = vmatprep.subr.mxu0 0.0
        %2274 = vmatpush1.msra.mxu0 0.0
        %2275 = vmatprep.subr.mxu0 0.0
        %2276 = vmatpush1.msra.mxu0 0.0
        %2277 = vmatprep.subr.mxu0 0.0
        %2278 = vmatpush1.msra.mxu0 0.0
        %2279 = vmatprep.subr.mxu0 0.0
        %2280 = vmatpush1.msra.mxu0 0.0
        %2281 = vmatprep.subr.mxu0 0.0
        %2282 = vmatpush1.msra.mxu0 0.0
        %2283 = vmatprep.subr.mxu0 0.0
        %2284 = vmatpush1.msra.mxu0 0.0
        %2285 = vmatprep.subr.mxu0 0.0
        %2286 = vmatpush1.msra.mxu0 0.0
        %2287 = vmatprep.mubr.f32.mxu0 0.0
        %2288 = vmatmul.mubr.f32.gmra.mrb[0].mxu0 %v2221
        %v2289 = vpop.f32.mrb[0].mxu0
        %v2290 = vadd.f32 0.0, %v2289
        %v2291 = vpop.f32.mrb[0].mxu0
        %2292 = vdwg.mxu0
        %2293 = vmatprep.subr.mxu0 0.0
        %2294 = vmatpush1.msra.mxu0 %v920
        %2295 = vmatprep.subr.mxu0 0.0
        %2296 = vmatpush1.msra.mxu0 %v921
        %2297 = vmatprep.subr.mxu0 0.0
        %2298 = vmatpush1.msra.mxu0 %v922
        %2299 = vmatprep.subr.mxu0 0.0
        %2300 = vmatpush1.msra.mxu0 %v923
        %2301 = vmatprep.subr.mxu0 0.0
        %2302 = vmatpush1.msra.mxu0 0.0
        %2303 = vmatprep.subr.mxu0 0.0
        %2304 = vmatpush1.msra.mxu0 0.0
        %2305 = vmatprep.subr.mxu0 0.0
        %2306 = vmatpush1.msra.mxu0 0.0
        %2307 = vmatprep.subr.mxu0 0.0
        %2308 = vmatpush1.msra.mxu0 0.0
        %2309 = vmatprep.subr.mxu0 0.0
        %2310 = vmatpush1.msra.mxu0 0.0
        %2311 = vmatprep.subr.mxu0 0.0
        %2312 = vmatpush1.msra.mxu0 0.0
        %2313 = vmatprep.subr.mxu0 0.0
        %2314 = vmatpush1.msra.mxu0 0.0
        %2315 = vmatprep.subr.mxu0 0.0
        %2316 = vmatpush1.msra.mxu0 0.0
        %2317 = vmatprep.subr.mxu0 0.0
        %2318 = vmatpush1.msra.mxu0 0.0
        %2319 = vmatprep.subr.mxu0 0.0
        %2320 = vmatpush1.msra.mxu0 0.0
        %2321 = vmatprep.subr.mxu0 0.0
        %2322 = vmatpush1.msra.mxu0 0.0
        %2323 = vmatprep.subr.mxu0 0.0
        %2324 = vmatpush1.msra.mxu0 0.0
        %2325 = vmatprep.subr.mxu0 0.0
        %2326 = vmatpush1.msra.mxu0 0.0
        %2327 = vmatprep.subr.mxu0 0.0
        %2328 = vmatpush1.msra.mxu0 0.0
        %2329 = vmatprep.subr.mxu0 0.0
        %2330 = vmatpush1.msra.mxu0 0.0
        %2331 = vmatprep.subr.mxu0 0.0
        %2332 = vmatpush1.msra.mxu0 0.0
        %2333 = vmatprep.subr.mxu0 0.0
        %2334 = vmatpush1.msra.mxu0 0.0
        %2335 = vmatprep.subr.mxu0 0.0
        %2336 = vmatpush1.msra.mxu0 0.0
        %2337 = vmatprep.subr.mxu0 0.0
        %2338 = vmatpush1.msra.mxu0 0.0
        %2339 = vmatprep.subr.mxu0 0.0
        %2340 = vmatpush1.msra.mxu0 0.0
        %2341 = vmatprep.subr.mxu0 0.0
        %2342 = vmatpush1.msra.mxu0 0.0
        %2343 = vmatprep.subr.mxu0 0.0
        %2344 = vmatpush1.msra.mxu0 0.0
        %2345 = vmatprep.subr.mxu0 0.0
        %2346 = vmatpush1.msra.mxu0 0.0
        %2347 = vmatprep.subr.mxu0 0.0
        %2348 = vmatpush1.msra.mxu0 0.0
        %2349 = vmatprep.subr.mxu0 0.0
        %2350 = vmatpush1.msra.mxu0 0.0
        %2351 = vmatprep.subr.mxu0 0.0
        %2352 = vmatpush1.msra.mxu0 0.0
        %2353 = vmatprep.subr.mxu0 0.0
        %2354 = vmatpush1.msra.mxu0 0.0
        %2355 = vmatprep.subr.mxu0 0.0
        %2356 = vmatpush1.msra.mxu0 0.0
        %2357 = vmatprep.mubr.f32.mxu0 0.0
        %2358 = vmatmul.mubr.f32.gmra.mrb[0].mxu0 %v2221
        %v2359 = vpop.f32.mrb[0].mxu0
        %v2360 = vadd.f32 0.0, %v2359
        %v2361 = vpop.f32.mrb[0].mxu0
        %2362 = vdwg.mxu0
        %v2364 = vsel %vm1166, %v2219, 0
        %v2367 = vsel %vm1166, %v2290, 0
        %2369 = vmatprep.subr.mxu0 0.0
        %2370 = vmatpush1.xpose.msra.mxu0 %v2367
        %2371 = vmatprep.subr.mxu0 0.0
        %2372 = vmatpush1.xpose.msra.mxu0 0.0
        %2373 = vmatprep.subr.mxu0 0.0
        %2374 = vmatpush1.xpose.msra.mxu0 0.0
        %2375 = vmatprep.subr.mxu0 0.0
        %2376 = vmatpush1.xpose.msra.mxu0 0.0
        %2377 = vmatprep.subr.mxu0 0.0
        %2378 = vmatpush1.xpose.msra.mxu0 0.0
        %2379 = vmatprep.subr.mxu0 0.0
        %2380 = vmatpush1.xpose.msra.mxu0 0.0
        %2381 = vmatprep.subr.mxu0 0.0
        %2382 = vmatpush1.xpose.msra.mxu0 0.0
        %2383 = vmatprep.subr.mxu0 0.0
        %2384 = vmatpush1.xpose.msra.mxu0 0.0
        %2385 = vmatprep.subr.mxu0 0.0
        %2386 = vmatpush1.xpose.msra.mxu0 0.0
        %2387 = vmatprep.subr.mxu0 0.0
        %2388 = vmatpush1.xpose.msra.mxu0 0.0
        %2389 = vmatprep.subr.mxu0 0.0
        %2390 = vmatpush1.xpose.msra.mxu0 0.0
        %2391 = vmatprep.subr.mxu0 0.0
        %2392 = vmatpush1.xpose.msra.mxu0 0.0
        %2393 = vmatprep.subr.mxu0 0.0
        %2394 = vmatpush1.xpose.msra.mxu0 0.0
        %2395 = vmatprep.subr.mxu0 0.0
        %2396 = vmatpush1.xpose.msra.mxu0 0.0
        %2397 = vmatprep.subr.mxu0 0.0
        %2398 = vmatpush1.xpose.msra.mxu0 0.0
        %2399 = vmatprep.subr.mxu0 0.0
        %2400 = vmatpush1.xpose.msra.mxu0 0.0
        %2401 = vmatprep.subr.mxu0 0.0
        %2402 = vmatpush1.xpose.msra.mxu0 0.0
        %2403 = vmatprep.subr.mxu0 0.0
        %2404 = vmatpush1.xpose.msra.mxu0 0.0
        %2405 = vmatprep.subr.mxu0 0.0
        %2406 = vmatpush1.xpose.msra.mxu0 0.0
        %2407 = vmatprep.subr.mxu0 0.0
        %2408 = vmatpush1.xpose.msra.mxu0 0.0
        %2409 = vmatprep.subr.mxu0 0.0
        %2410 = vmatpush1.xpose.msra.mxu0 0.0
        %2411 = vmatprep.subr.mxu0 0.0
        %2412 = vmatpush1.xpose.msra.mxu0 0.0
        %2413 = vmatprep.subr.mxu0 0.0
        %2414 = vmatpush1.xpose.msra.mxu0 0.0
        %2415 = vmatprep.subr.mxu0 0.0
        %2416 = vmatpush1.xpose.msra.mxu0 0.0
        %2417 = vmatprep.subr.mxu0 0.0
        %2418 = vmatpush1.xpose.msra.mxu0 0.0
        %2419 = vmatprep.subr.mxu0 0.0
        %2420 = vmatpush1.xpose.msra.mxu0 0.0
        %2421 = vmatprep.subr.mxu0 0.0
        %2422 = vmatpush1.xpose.msra.mxu0 0.0
        %2423 = vmatprep.subr.mxu0 0.0
        %2424 = vmatpush1.xpose.msra.mxu0 0.0
        %2425 = vmatprep.subr.mxu0 0.0
        %2426 = vmatpush1.xpose.msra.mxu0 0.0
        %2427 = vmatprep.subr.mxu0 0.0
        %2428 = vmatpush1.xpose.msra.mxu0 0.0
        %2429 = vmatprep.subr.mxu0 0.0
        %2430 = vmatpush1.xpose.msra.mxu0 0.0
        %2431 = vmatprep.subr.mxu0 0.0
        %2432 = vmatpush1.xpose.msra.mxu0 0.0
        %2433 = vmatprep.mubr.f32.mxu0 0.0
        %2434 = vmatmul.mubr.f32.gmra.mrb[0].mxu0 %v2364
        %v2435 = vpop.f32.mrb[0].mxu0
        %v2436 = vadd.f32 %v895, %v2435
        %v2437 = vpop.f32.mrb[0].mxu0
        %2438 = vdwg.mxu0
        %v2439 = vsel %vm1166, %v2436, -inf
        %2440 = vmax.xlane.f32.xlu0 %v2439
        %v2441 = vpop.xlane.xlu0 %2440
        %v2442 = vsub.f32 %v2436, %v2441
        %v2443 = vmul.f32 %v2442, 1.442695
        %v2444 = vpow.pop %v2443
        %v2445 = vsel %vm1166, %v2444, 0.0
        %2446 = vadd.xlane.f32.xlu0 %v2445
        %v2447 = vpop.xlane.xlu0 %2446
        %v2448 = vrcp.pop %v2447
        %v2449 = vmul.f32 %v2444, %v2448
        %v2451 = vsel %vm1166, %v2449, 0
        %2453 = vmatprep.subr.mxu0 0.0
        %2454 = vmatpush1.msra.mxu0 %v2360
        %2455 = vmatprep.subr.mxu0 0.0
        %2456 = vmatpush1.msra.mxu0 0.0
        %2457 = vmatprep.subr.mxu0 0.0
        %2458 = vmatpush1.msra.mxu0 0.0
        %2459 = vmatprep.subr.mxu0 0.0
        %2460 = vmatpush1.msra.mxu0 0.0
        %2461 = vmatprep.subr.mxu0 0.0
        %2462 = vmatpush1.msra.mxu0 0.0
        %2463 = vmatprep.subr.mxu0 0.0
        %2464 = vmatpush1.msra.mxu0 0.0
        %2465 = vmatprep.subr.mxu0 0.0
        %2466 = vmatpush1.msra.mxu0 0.0
        %2467 = vmatprep.subr.mxu0 0.0
        %2468 = vmatpush1.msra.mxu0 0.0
        %2469 = vmatprep.subr.mxu0 0.0
        %2470 = vmatpush1.msra.mxu0 0.0
        %2471 = vmatprep.subr.mxu0 0.0
        %2472 = vmatpush1.msra.mxu0 0.0
        %2473 = vmatprep.subr.mxu0 0.0
        %2474 = vmatpush1.msra.mxu0 0.0
        %2475 = vmatprep.subr.mxu0 0.0
        %2476 = vmatpush1.msra.mxu0 0.0
        %2477 = vmatprep.subr.mxu0 0.0
        %2478 = vmatpush1.msra.mxu0 0.0
        %2479 = vmatprep.subr.mxu0 0.0
        %2480 = vmatpush1.msra.mxu0 0.0
        %2481 = vmatprep.subr.mxu0 0.0
        %2482 = vmatpush1.msra.mxu0 0.0
        %2483 = vmatprep.subr.mxu0 0.0
        %2484 = vmatpush1.msra.mxu0 0.0
        %2485 = vmatprep.subr.mxu0 0.0
        %2486 = vmatpush1.msra.mxu0 0.0
        %2487 = vmatprep.subr.mxu0 0.0
        %2488 = vmatpush1.msra.mxu0 0.0
        %2489 = vmatprep.subr.mxu0 0.0
        %2490 = vmatpush1.msra.mxu0 0.0
        %2491 = vmatprep.subr.mxu0 0.0
        %2492 = vmatpush1.msra.mxu0 0.0
        %2493 = vmatprep.subr.mxu0 0.0
        %2494 = vmatpush1.msra.mxu0 0.0
        %2495 = vmatprep.subr.mxu0 0.0
        %2496 = vmatpush1.msra.mxu0 0.0
        %2497 = vmatprep.subr.mxu0 0.0
        %2498 = vmatpush1.msra.mxu0 0.0
        %2499 = vmatprep.subr.mxu0 0.0
        %2500 = vmatpush1.msra.mxu0 0.0
        %2501 = vmatprep.subr.mxu0 0.0
        %2502 = vmatpush1.msra.mxu0 0.0
        %2503 = vmatprep.subr.mxu0 0.0
        %2504 = vmatpush1.msra.mxu0 0.0
        %2505 = vmatprep.subr.mxu0 0.0
        %2506 = vmatpush1.msra.mxu0 0.0
        %2507 = vmatprep.subr.mxu0 0.0
        %2508 = vmatpush1.msra.mxu0 0.0
        %2509 = vmatprep.subr.mxu0 0.0
        %2510 = vmatpush1.msra.mxu0 0.0
        %2511 = vmatprep.subr.mxu0 0.0
        %2512 = vmatpush1.msra.mxu0 0.0
        %2513 = vmatprep.subr.mxu0 0.0
        %2514 = vmatpush1.msra.mxu0 0.0
        %2515 = vmatprep.subr.mxu0 0.0
        %2516 = vmatpush1.msra.mxu0 0.0
        %2517 = vmatprep.mubr.f32.mxu0 0.0
        %2518 = vmatmul.mubr.f32.gmra.mrb[0].mxu0 %v2451
        %v2519 = vpop.f32.mrb[0].mxu0
        %v2520 = vadd.f32 0.0, %v2519
        %v2521 = vpop.f32.mrb[0].mxu0
        %2522 = vdwg.mxu0
        %2523 = vrot.lane.b32.xlu0 %v2219, 120
        %v2524 = vpop.permute.xlu0 %2523
        %2525 = vrot.lane.b32.xlu0 %v2290, 120
        %v2526 = vpop.permute.xlu0 %2525
        %v2527 = vsel %vm1166, %v2524, 0
        %v2529 = vsel %vm1166, %v2526, 0
        %2531 = vmatprep.subr.mxu0 0.0
        %2532 = vmatpush1.xpose.msra.mxu0 %v2529
        %2533 = vmatprep.subr.mxu0 0.0
        %2534 = vmatpush1.xpose.msra.mxu0 0.0
        %2535 = vmatprep.subr.mxu0 0.0
        %2536 = vmatpush1.xpose.msra.mxu0 0.0
        %2537 = vmatprep.subr.mxu0 0.0
        %2538 = vmatpush1.xpose.msra.mxu0 0.0
        %2539 = vmatprep.subr.mxu0 0.0
        %2540 = vmatpush1.xpose.msra.mxu0 0.0
        %2541 = vmatprep.subr.mxu0 0.0
        %2542 = vmatpush1.xpose.msra.mxu0 0.0
        %2543 = vmatprep.subr.mxu0 0.0
        %2544 = vmatpush1.xpose.msra.mxu0 0.0
        %2545 = vmatprep.subr.mxu0 0.0
        %2546 = vmatpush1.xpose.msra.mxu0 0.0
        %2547 = vmatprep.subr.mxu0 0.0
        %2548 = vmatpush1.xpose.msra.mxu0 0.0
        %2549 = vmatprep.subr.mxu0 0.0
        %2550 = vmatpush1.xpose.msra.mxu0 0.0
        %2551 = vmatprep.subr.mxu0 0.0
        %2552 = vmatpush1.xpose.msra.mxu0 0.0
        %2553 = vmatprep.subr.mxu0 0.0
        %2554 = vmatpush1.xpose.msra.mxu0 0.0
        %2555 = vmatprep.subr.mxu0 0.0
        %2556 = vmatpush1.xpose.msra.mxu0 0.0
        %2557 = vmatprep.subr.mxu0 0.0
        %2558 = vmatpush1.xpose.msra.mxu0 0.0
        %2559 = vmatprep.subr.mxu0 0.0
        %2560 = vmatpush1.xpose.msra.mxu0 0.0
        %2561 = vmatprep.subr.mxu0 0.0
        %2562 = vmatpush1.xpose.msra.mxu0 0.0
        %2563 = vmatprep.subr.mxu0 0.0
        %2564 = vmatpush1.xpose.msra.mxu0 0.0
        %2565 = vmatprep.subr.mxu0 0.0
        %2566 = vmatpush1.xpose.msra.mxu0 0.0
        %2567 = vmatprep.subr.mxu0 0.0
        %2568 = vmatpush1.xpose.msra.mxu0 0.0
        %2569 = vmatprep.subr.mxu0 0.0
        %2570 = vmatpush1.xpose.msra.mxu0 0.0
        %2571 = vmatprep.subr.mxu0 0.0
        %2572 = vmatpush1.xpose.msra.mxu0 0.0
        %2573 = vmatprep.subr.mxu0 0.0
        %2574 = vmatpush1.xpose.msra.mxu0 0.0
        %2575 = vmatprep.subr.mxu0 0.0
        %2576 = vmatpush1.xpose.msra.mxu0 0.0
        %2577 = vmatprep.subr.mxu0 0.0
        %2578 = vmatpush1.xpose.msra.mxu0 0.0
        %2579 = vmatprep.subr.mxu0 0.0
        %2580 = vmatpush1.xpose.msra.mxu0 0.0
        %2581 = vmatprep.subr.mxu0 0.0
        %2582 = vmatpush1.xpose.msra.mxu0 0.0
        %2583 = vmatprep.subr.mxu0 0.0
        %2584 = vmatpush1.xpose.msra.mxu0 0.0
        %2585 = vmatprep.subr.mxu0 0.0
        %2586 = vmatpush1.xpose.msra.mxu0 0.0
        %2587 = vmatprep.subr.mxu0 0.0
        %2588 = vmatpush1.xpose.msra.mxu0 0.0
        %2589 = vmatprep.subr.mxu0 0.0
        %2590 = vmatpush1.xpose.msra.mxu0 0.0
        %2591 = vmatprep.subr.mxu0 0.0
        %2592 = vmatpush1.xpose.msra.mxu0 0.0
        %2593 = vmatprep.subr.mxu0 0.0
        %2594 = vmatpush1.xpose.msra.mxu0 0.0
        %2595 = vmatprep.mubr.f32.mxu0 0.0
        %2596 = vmatmul.mubr.f32.gmra.mrb[0].mxu0 %v2527
        %v2597 = vpop.f32.mrb[0].mxu0
        %v2598 = vadd.f32 %v895, %v2597
        %v2599 = vpop.f32.mrb[0].mxu0
        %2600 = vdwg.mxu0
        %v2601 = vsel %vm1166, %v2598, -inf
        %2602 = vmax.xlane.f32.xlu0 %v2601
        %v2603 = vpop.xlane.xlu0 %2602
        %v2604 = vsub.f32 %v2598, %v2603
        %v2605 = vmul.f32 %v2604, 1.442695
        %v2606 = vpow.pop %v2605
        %v2607 = vsel %vm1166, %v2606, 0.0
        %2608 = vadd.xlane.f32.xlu0 %v2607
        %v2609 = vpop.xlane.xlu0 %2608
        %v2610 = vrcp.pop %v2609
        %v2611 = vmul.f32 %v2606, %v2610
        %2613 = vrot.lane.b32.xlu0 %v2360, 120
        %v2614 = vpop.permute.xlu0 %2613
        %v2617 = vsel %vm1166, %v2611, 0
        %2619 = vmatprep.subr.mxu0 0.0
        %2620 = vmatpush1.msra.mxu0 %v2614
        %2621 = vmatprep.subr.mxu0 0.0
        %2622 = vmatpush1.msra.mxu0 0.0
        %2623 = vmatprep.subr.mxu0 0.0
        %2624 = vmatpush1.msra.mxu0 0.0
        %2625 = vmatprep.subr.mxu0 0.0
        %2626 = vmatpush1.msra.mxu0 0.0
        %2627 = vmatprep.subr.mxu0 0.0
        %2628 = vmatpush1.msra.mxu0 0.0
        %2629 = vmatprep.subr.mxu0 0.0
        %2630 = vmatpush1.msra.mxu0 0.0
        %2631 = vmatprep.subr.mxu0 0.0
        %2632 = vmatpush1.msra.mxu0 0.0
        %2633 = vmatprep.subr.mxu0 0.0
        %2634 = vmatpush1.msra.mxu0 0.0
        %2635 = vmatprep.subr.mxu0 0.0
        %2636 = vmatpush1.msra.mxu0 0.0
        %2637 = vmatprep.subr.mxu0 0.0
        %2638 = vmatpush1.msra.mxu0 0.0
        %2639 = vmatprep.subr.mxu0 0.0
        %2640 = vmatpush1.msra.mxu0 0.0
        %2641 = vmatprep.subr.mxu0 0.0
        %2642 = vmatpush1.msra.mxu0 0.0
        %2643 = vmatprep.subr.mxu0 0.0
        %2644 = vmatpush1.msra.mxu0 0.0
        %2645 = vmatprep.subr.mxu0 0.0
        %2646 = vmatpush1.msra.mxu0 0.0
        %2647 = vmatprep.subr.mxu0 0.0
        %2648 = vmatpush1.msra.mxu0 0.0
        %2649 = vmatprep.subr.mxu0 0.0
        %2650 = vmatpush1.msra.mxu0 0.0
        %2651 = vmatprep.subr.mxu0 0.0
        %2652 = vmatpush1.msra.mxu0 0.0
        %2653 = vmatprep.subr.mxu0 0.0
        %2654 = vmatpush1.msra.mxu0 0.0
        %2655 = vmatprep.subr.mxu0 0.0
        %2656 = vmatpush1.msra.mxu0 0.0
        %2657 = vmatprep.subr.mxu0 0.0
        %2658 = vmatpush1.msra.mxu0 0.0
        %2659 = vmatprep.subr.mxu0 0.0
        %2660 = vmatpush1.msra.mxu0 0.0
        %2661 = vmatprep.subr.mxu0 0.0
        %2662 = vmatpush1.msra.mxu0 0.0
        %2663 = vmatprep.subr.mxu0 0.0
        %2664 = vmatpush1.msra.mxu0 0.0
        %2665 = vmatprep.subr.mxu0 0.0
        %2666 = vmatpush1.msra.mxu0 0.0
        %2667 = vmatprep.subr.mxu0 0.0
        %2668 = vmatpush1.msra.mxu0 0.0
        %2669 = vmatprep.subr.mxu0 0.0
        %2670 = vmatpush1.msra.mxu0 0.0
        %2671 = vmatprep.subr.mxu0 0.0
        %2672 = vmatpush1.msra.mxu0 0.0
        %2673 = vmatprep.subr.mxu0 0.0
        %2674 = vmatpush1.msra.mxu0 0.0
        %2675 = vmatprep.subr.mxu0 0.0
        %2676 = vmatpush1.msra.mxu0 0.0
        %2677 = vmatprep.subr.mxu0 0.0
        %2678 = vmatpush1.msra.mxu0 0.0
        %2679 = vmatprep.subr.mxu0 0.0
        %2680 = vmatpush1.msra.mxu0 0.0
        %2681 = vmatprep.subr.mxu0 0.0
        %2682 = vmatpush1.msra.mxu0 0.0
        %2683 = vmatprep.mubr.f32.mxu0 0.0
        %2684 = vmatmul.mubr.f32.gmra.mrb[0].mxu0 %v2617
        %v2685 = vpop.f32.mrb[0].mxu0
        %v2686 = vadd.f32 0.0, %v2685
        %v2687 = vpop.f32.mrb[0].mxu0
        %2688 = vdwg.mxu0
        %v2690 = vsel %vm1166, %v2686, 0
        %2692 = vmatprep.subr.mxu0 0.0
        %2693 = vmatpush1.msra.mxu0 %v925
        %2694 = vmatprep.subr.mxu0 0.0
        %2695 = vmatpush1.msra.mxu0 0.0
        %2696 = vmatprep.subr.mxu0 0.0
        %2697 = vmatpush1.msra.mxu0 0.0
        %2698 = vmatprep.subr.mxu0 0.0
        %2699 = vmatpush1.msra.mxu0 0.0
        %2700 = vmatprep.subr.mxu0 0.0
        %2701 = vmatpush1.msra.mxu0 0.0
        %2702 = vmatprep.subr.mxu0 0.0
        %2703 = vmatpush1.msra.mxu0 0.0
        %2704 = vmatprep.subr.mxu0 0.0
        %2705 = vmatpush1.msra.mxu0 0.0
        %2706 = vmatprep.subr.mxu0 0.0
        %2707 = vmatpush1.msra.mxu0 0.0
        %2708 = vmatprep.subr.mxu0 0.0
        %2709 = vmatpush1.msra.mxu0 0.0
        %2710 = vmatprep.subr.mxu0 0.0
        %2711 = vmatpush1.msra.mxu0 0.0
        %2712 = vmatprep.subr.mxu0 0.0
        %2713 = vmatpush1.msra.mxu0 0.0
        %2714 = vmatprep.subr.mxu0 0.0
        %2715 = vmatpush1.msra.mxu0 0.0
        %2716 = vmatprep.subr.mxu0 0.0
        %2717 = vmatpush1.msra.mxu0 0.0
        %2718 = vmatprep.subr.mxu0 0.0
        %2719 = vmatpush1.msra.mxu0 0.0
        %2720 = vmatprep.subr.mxu0 0.0
        %2721 = vmatpush1.msra.mxu0 0.0
        %2722 = vmatprep.subr.mxu0 0.0
        %2723 = vmatpush1.msra.mxu0 0.0
        %2724 = vmatprep.subr.mxu0 0.0
        %2725 = vmatpush1.msra.mxu0 0.0
        %2726 = vmatprep.subr.mxu0 0.0
        %2727 = vmatpush1.msra.mxu0 0.0
        %2728 = vmatprep.subr.mxu0 0.0
        %2729 = vmatpush1.msra.mxu0 0.0
        %2730 = vmatprep.subr.mxu0 0.0
        %2731 = vmatpush1.msra.mxu0 0.0
        %2732 = vmatprep.subr.mxu0 0.0
        %2733 = vmatpush1.msra.mxu0 0.0
        %2734 = vmatprep.subr.mxu0 0.0
        %2735 = vmatpush1.msra.mxu0 0.0
        %2736 = vmatprep.subr.mxu0 0.0
        %2737 = vmatpush1.msra.mxu0 0.0
        %2738 = vmatprep.subr.mxu0 0.0
        %2739 = vmatpush1.msra.mxu0 0.0
        %2740 = vmatprep.subr.mxu0 0.0
        %2741 = vmatpush1.msra.mxu0 0.0
        %2742 = vmatprep.subr.mxu0 0.0
        %2743 = vmatpush1.msra.mxu0 0.0
        %2744 = vmatprep.subr.mxu0 0.0
        %2745 = vmatpush1.msra.mxu0 0.0
        %2746 = vmatprep.subr.mxu0 0.0
        %2747 = vmatpush1.msra.mxu0 0.0
        %2748 = vmatprep.subr.mxu0 0.0
        %2749 = vmatpush1.msra.mxu0 0.0
        %2750 = vmatprep.subr.mxu0 0.0
        %2751 = vmatpush1.msra.mxu0 0.0
        %2752 = vmatprep.subr.mxu0 0.0
        %2753 = vmatpush1.msra.mxu0 0.0
        %2754 = vmatprep.subr.mxu0 0.0
        %2755 = vmatpush1.msra.mxu0 0.0
        %2756 = vmatprep.mubr.f32.mxu0 0.0
        %2757 = vmatmul.mubr.f32.gmra.mrb[0].mxu0 %v2690
        %v2758 = vpop.f32.mrb[0].mxu0
        %v2759 = vadd.f32 0.0, %v2758
        %v2760 = vpop.f32.mrb[0].mxu0
        %2761 = vdwg.mxu0
        %v2763 = vsel %vm1166, %v2520, 0
        %2765 = vmatprep.subr.mxu0 0.0
        %2766 = vmatpush1.msra.mxu0 %v924
        %2767 = vmatprep.subr.mxu0 0.0
        %2768 = vmatpush1.msra.mxu0 0.0
        %2769 = vmatprep.subr.mxu0 0.0
        %2770 = vmatpush1.msra.mxu0 0.0
        %2771 = vmatprep.subr.mxu0 0.0
        %2772 = vmatpush1.msra.mxu0 0.0
        %2773 = vmatprep.subr.mxu0 0.0
        %2774 = vmatpush1.msra.mxu0 0.0
        %2775 = vmatprep.subr.mxu0 0.0
        %2776 = vmatpush1.msra.mxu0 0.0
        %2777 = vmatprep.subr.mxu0 0.0
        %2778 = vmatpush1.msra.mxu0 0.0
        %2779 = vmatprep.subr.mxu0 0.0
        %2780 = vmatpush1.msra.mxu0 0.0
        %2781 = vmatprep.subr.mxu0 0.0
        %2782 = vmatpush1.msra.mxu0 0.0
        %2783 = vmatprep.subr.mxu0 0.0
        %2784 = vmatpush1.msra.mxu0 0.0
        %2785 = vmatprep.subr.mxu0 0.0
        %2786 = vmatpush1.msra.mxu0 0.0
        %2787 = vmatprep.subr.mxu0 0.0
        %2788 = vmatpush1.msra.mxu0 0.0
        %2789 = vmatprep.subr.mxu0 0.0
        %2790 = vmatpush1.msra.mxu0 0.0
        %2791 = vmatprep.subr.mxu0 0.0
        %2792 = vmatpush1.msra.mxu0 0.0
        %2793 = vmatprep.subr.mxu0 0.0
        %2794 = vmatpush1.msra.mxu0 0.0
        %2795 = vmatprep.subr.mxu0 0.0
        %2796 = vmatpush1.msra.mxu0 0.0
        %2797 = vmatprep.subr.mxu0 0.0
        %2798 = vmatpush1.msra.mxu0 0.0
        %2799 = vmatprep.subr.mxu0 0.0
        %2800 = vmatpush1.msra.mxu0 0.0
        %2801 = vmatprep.subr.mxu0 0.0
        %2802 = vmatpush1.msra.mxu0 0.0
        %2803 = vmatprep.subr.mxu0 0.0
        %2804 = vmatpush1.msra.mxu0 0.0
        %2805 = vmatprep.subr.mxu0 0.0
        %2806 = vmatpush1.msra.mxu0 0.0
        %2807 = vmatprep.subr.mxu0 0.0
        %2808 = vmatpush1.msra.mxu0 0.0
        %2809 = vmatprep.subr.mxu0 0.0
        %2810 = vmatpush1.msra.mxu0 0.0
        %2811 = vmatprep.subr.mxu0 0.0
        %2812 = vmatpush1.msra.mxu0 0.0
        %2813 = vmatprep.subr.mxu0 0.0
        %2814 = vmatpush1.msra.mxu0 0.0
        %2815 = vmatprep.subr.mxu0 0.0
        %2816 = vmatpush1.msra.mxu0 0.0
        %2817 = vmatprep.subr.mxu0 0.0
        %2818 = vmatpush1.msra.mxu0 0.0
        %2819 = vmatprep.subr.mxu0 0.0
        %2820 = vmatpush1.msra.mxu0 0.0
        %2821 = vmatprep.subr.mxu0 0.0
        %2822 = vmatpush1.msra.mxu0 0.0
        %2823 = vmatprep.subr.mxu0 0.0
        %2824 = vmatpush1.msra.mxu0 0.0
        %2825 = vmatprep.subr.mxu0 0.0
        %2826 = vmatpush1.msra.mxu0 0.0
        %2827 = vmatprep.subr.mxu0 0.0
        %2828 = vmatpush1.msra.mxu0 0.0
        %2829 = vmatprep.mubr.f32.mxu0 0.0
        %2830 = vmatmul.mubr.f32.gmra.mrb[0].mxu0 %v2763
        %v2831 = vpop.f32.mrb[0].mxu0
        %v2832 = vadd.f32 %v2759, %v2831
        %v2833 = vpop.f32.mrb[0].mxu0
        %2834 = vdwg.mxu0
        %2835 = vrot.lane.b32.xlu0 %v2219, 112
        %v2836 = vpop.permute.xlu0 %2835
        %2837 = vrot.lane.b32.xlu0 %v2290, 112
        %v2838 = vpop.permute.xlu0 %2837
        %v2839 = vsel %vm1166, %v2836, 0
        %v2841 = vsel %vm1166, %v2838, 0
        %2843 = vmatprep.subr.mxu0 0.0
        %2844 = vmatpush1.xpose.msra.mxu0 %v2841
        %2845 = vmatprep.subr.mxu0 0.0
        %2846 = vmatpush1.xpose.msra.mxu0 0.0
        %2847 = vmatprep.subr.mxu0 0.0
        %2848 = vmatpush1.xpose.msra.mxu0 0.0
        %2849 = vmatprep.subr.mxu0 0.0
        %2850 = vmatpush1.xpose.msra.mxu0 0.0
        %2851 = vmatprep.subr.mxu0 0.0
        %2852 = vmatpush1.xpose.msra.mxu0 0.0
        %2853 = vmatprep.subr.mxu0 0.0
        %2854 = vmatpush1.xpose.msra.mxu0 0.0
        %2855 = vmatprep.subr.mxu0 0.0
        %2856 = vmatpush1.xpose.msra.mxu0 0.0
        %2857 = vmatprep.subr.mxu0 0.0
        %2858 = vmatpush1.xpose.msra.mxu0 0.0
        %2859 = vmatprep.subr.mxu0 0.0
        %2860 = vmatpush1.xpose.msra.mxu0 0.0
        %2861 = vmatprep.subr.mxu0 0.0
        %2862 = vmatpush1.xpose.msra.mxu0 0.0
        %2863 = vmatprep.subr.mxu0 0.0
        %2864 = vmatpush1.xpose.msra.mxu0 0.0
        %2865 = vmatprep.subr.mxu0 0.0
        %2866 = vmatpush1.xpose.msra.mxu0 0.0
        %2867 = vmatprep.subr.mxu0 0.0
        %2868 = vmatpush1.xpose.msra.mxu0 0.0
        %2869 = vmatprep.subr.mxu0 0.0
        %2870 = vmatpush1.xpose.msra.mxu0 0.0
        %2871 = vmatprep.subr.mxu0 0.0
        %2872 = vmatpush1.xpose.msra.mxu0 0.0
        %2873 = vmatprep.subr.mxu0 0.0
        %2874 = vmatpush1.xpose.msra.mxu0 0.0
        %2875 = vmatprep.subr.mxu0 0.0
        %2876 = vmatpush1.xpose.msra.mxu0 0.0
        %2877 = vmatprep.subr.mxu0 0.0
        %2878 = vmatpush1.xpose.msra.mxu0 0.0
        %2879 = vmatprep.subr.mxu0 0.0
        %2880 = vmatpush1.xpose.msra.mxu0 0.0
        %2881 = vmatprep.subr.mxu0 0.0
        %2882 = vmatpush1.xpose.msra.mxu0 0.0
        %2883 = vmatprep.subr.mxu0 0.0
        %2884 = vmatpush1.xpose.msra.mxu0 0.0
        %2885 = vmatprep.subr.mxu0 0.0
        %2886 = vmatpush1.xpose.msra.mxu0 0.0
        %2887 = vmatprep.subr.mxu0 0.0
        %2888 = vmatpush1.xpose.msra.mxu0 0.0
        %2889 = vmatprep.subr.mxu0 0.0
        %2890 = vmatpush1.xpose.msra.mxu0 0.0
        %2891 = vmatprep.subr.mxu0 0.0
        %2892 = vmatpush1.xpose.msra.mxu0 0.0
        %2893 = vmatprep.subr.mxu0 0.0
        %2894 = vmatpush1.xpose.msra.mxu0 0.0
        %2895 = vmatprep.subr.mxu0 0.0
        %2896 = vmatpush1.xpose.msra.mxu0 0.0
        %2897 = vmatprep.subr.mxu0 0.0
        %2898 = vmatpush1.xpose.msra.mxu0 0.0
        %2899 = vmatprep.subr.mxu0 0.0
        %2900 = vmatpush1.xpose.msra.mxu0 0.0
        %2901 = vmatprep.subr.mxu0 0.0
        %2902 = vmatpush1.xpose.msra.mxu0 0.0
        %2903 = vmatprep.subr.mxu0 0.0
        %2904 = vmatpush1.xpose.msra.mxu0 0.0
        %2905 = vmatprep.subr.mxu0 0.0
        %2906 = vmatpush1.xpose.msra.mxu0 0.0
        %2907 = vmatprep.mubr.f32.mxu0 0.0
        %2908 = vmatmul.mubr.f32.gmra.mrb[0].mxu0 %v2839
        %v2909 = vpop.f32.mrb[0].mxu0
        %v2910 = vadd.f32 %v895, %v2909
        %v2911 = vpop.f32.mrb[0].mxu0
        %2912 = vdwg.mxu0
        %v2913 = vsel %vm1166, %v2910, -inf
        %2914 = vmax.xlane.f32.xlu0 %v2913
        %v2915 = vpop.xlane.xlu0 %2914
        %v2916 = vsub.f32 %v2910, %v2915
        %v2917 = vmul.f32 %v2916, 1.442695
        %v2918 = vpow.pop %v2917
        %v2919 = vsel %vm1166, %v2918, 0.0
        %2920 = vadd.xlane.f32.xlu0 %v2919
        %v2921 = vpop.xlane.xlu0 %2920
        %v2922 = vrcp.pop %v2921
        %v2923 = vmul.f32 %v2918, %v2922
        %2924 = vrot.lane.b32.xlu0 %v2360, 112
        %v2925 = vpop.permute.xlu0 %2924
        %v2928 = vsel %vm1166, %v2923, 0
        %2930 = vmatprep.subr.mxu0 0.0
        %2931 = vmatpush1.msra.mxu0 %v2925
        %2932 = vmatprep.subr.mxu0 0.0
        %2933 = vmatpush1.msra.mxu0 0.0
        %2934 = vmatprep.subr.mxu0 0.0
        %2935 = vmatpush1.msra.mxu0 0.0
        %2936 = vmatprep.subr.mxu0 0.0
        %2937 = vmatpush1.msra.mxu0 0.0
        %2938 = vmatprep.subr.mxu0 0.0
        %2939 = vmatpush1.msra.mxu0 0.0
        %2940 = vmatprep.subr.mxu0 0.0
        %2941 = vmatpush1.msra.mxu0 0.0
        %2942 = vmatprep.subr.mxu0 0.0
        %2943 = vmatpush1.msra.mxu0 0.0
        %2944 = vmatprep.subr.mxu0 0.0
        %2945 = vmatpush1.msra.mxu0 0.0
        %2946 = vmatprep.subr.mxu0 0.0
        %2947 = vmatpush1.msra.mxu0 0.0
        %2948 = vmatprep.subr.mxu0 0.0
        %2949 = vmatpush1.msra.mxu0 0.0
        %2950 = vmatprep.subr.mxu0 0.0
        %2951 = vmatpush1.msra.mxu0 0.0
        %2952 = vmatprep.subr.mxu0 0.0
        %2953 = vmatpush1.msra.mxu0 0.0
        %2954 = vmatprep.subr.mxu0 0.0
        %2955 = vmatpush1.msra.mxu0 0.0
        %2956 = vmatprep.subr.mxu0 0.0
        %2957 = vmatpush1.msra.mxu0 0.0
        %2958 = vmatprep.subr.mxu0 0.0
        %2959 = vmatpush1.msra.mxu0 0.0
        %2960 = vmatprep.subr.mxu0 0.0
        %2961 = vmatpush1.msra.mxu0 0.0
        %2962 = vmatprep.subr.mxu0 0.0
        %2963 = vmatpush1.msra.mxu0 0.0
        %2964 = vmatprep.subr.mxu0 0.0
        %2965 = vmatpush1.msra.mxu0 0.0
        %2966 = vmatprep.subr.mxu0 0.0
        %2967 = vmatpush1.msra.mxu0 0.0
        %2968 = vmatprep.subr.mxu0 0.0
        %2969 = vmatpush1.msra.mxu0 0.0
        %2970 = vmatprep.subr.mxu0 0.0
        %2971 = vmatpush1.msra.mxu0 0.0
        %2972 = vmatprep.subr.mxu0 0.0
        %2973 = vmatpush1.msra.mxu0 0.0
        %2974 = vmatprep.subr.mxu0 0.0
        %2975 = vmatpush1.msra.mxu0 0.0
        %2976 = vmatprep.subr.mxu0 0.0
        %2977 = vmatpush1.msra.mxu0 0.0
        %2978 = vmatprep.subr.mxu0 0.0
        %2979 = vmatpush1.msra.mxu0 0.0
        %2980 = vmatprep.subr.mxu0 0.0
        %2981 = vmatpush1.msra.mxu0 0.0
        %2982 = vmatprep.subr.mxu0 0.0
        %2983 = vmatpush1.msra.mxu0 0.0
        %2984 = vmatprep.subr.mxu0 0.0
        %2985 = vmatpush1.msra.mxu0 0.0
        %2986 = vmatprep.subr.mxu0 0.0
        %2987 = vmatpush1.msra.mxu0 0.0
        %2988 = vmatprep.subr.mxu0 0.0
        %2989 = vmatpush1.msra.mxu0 0.0
        %2990 = vmatprep.subr.mxu0 0.0
        %2991 = vmatpush1.msra.mxu0 0.0
        %2992 = vmatprep.subr.mxu0 0.0
        %2993 = vmatpush1.msra.mxu0 0.0
        %2994 = vmatprep.mubr.f32.mxu0 0.0
        %2995 = vmatmul.mubr.f32.gmra.mrb[0].mxu0 %v2928
        %v2996 = vpop.f32.mrb[0].mxu0
        %v2997 = vadd.f32 0.0, %v2996
        %v2998 = vpop.f32.mrb[0].mxu0
        %2999 = vdwg.mxu0
        %v3001 = vsel %vm1166, %v2997, 0
        %3003 = vmatprep.subr.mxu0 0.0
        %3004 = vmatpush1.msra.mxu0 %v926
        %3005 = vmatprep.subr.mxu0 0.0
        %3006 = vmatpush1.msra.mxu0 0.0
        %3007 = vmatprep.subr.mxu0 0.0
        %3008 = vmatpush1.msra.mxu0 0.0
        %3009 = vmatprep.subr.mxu0 0.0
        %3010 = vmatpush1.msra.mxu0 0.0
        %3011 = vmatprep.subr.mxu0 0.0
        %3012 = vmatpush1.msra.mxu0 0.0
        %3013 = vmatprep.subr.mxu0 0.0
        %3014 = vmatpush1.msra.mxu0 0.0
        %3015 = vmatprep.subr.mxu0 0.0
        %3016 = vmatpush1.msra.mxu0 0.0
        %3017 = vmatprep.subr.mxu0 0.0
        %3018 = vmatpush1.msra.mxu0 0.0
        %3019 = vmatprep.subr.mxu0 0.0
        %3020 = vmatpush1.msra.mxu0 0.0
        %3021 = vmatprep.subr.mxu0 0.0
        %3022 = vmatpush1.msra.mxu0 0.0
        %3023 = vmatprep.subr.mxu0 0.0
        %3024 = vmatpush1.msra.mxu0 0.0
        %3025 = vmatprep.subr.mxu0 0.0
        %3026 = vmatpush1.msra.mxu0 0.0
        %3027 = vmatprep.subr.mxu0 0.0
        %3028 = vmatpush1.msra.mxu0 0.0
        %3029 = vmatprep.subr.mxu0 0.0
        %3030 = vmatpush1.msra.mxu0 0.0
        %3031 = vmatprep.subr.mxu0 0.0
        %3032 = vmatpush1.msra.mxu0 0.0
        %3033 = vmatprep.subr.mxu0 0.0
        %3034 = vmatpush1.msra.mxu0 0.0
        %3035 = vmatprep.subr.mxu0 0.0
        %3036 = vmatpush1.msra.mxu0 0.0
        %3037 = vmatprep.subr.mxu0 0.0
        %3038 = vmatpush1.msra.mxu0 0.0
        %3039 = vmatprep.subr.mxu0 0.0
        %3040 = vmatpush1.msra.mxu0 0.0
        %3041 = vmatprep.subr.mxu0 0.0
        %3042 = vmatpush1.msra.mxu0 0.0
        %3043 = vmatprep.subr.mxu0 0.0
        %3044 = vmatpush1.msra.mxu0 0.0
        %3045 = vmatprep.subr.mxu0 0.0
        %3046 = vmatpush1.msra.mxu0 0.0
        %3047 = vmatprep.subr.mxu0 0.0
        %3048 = vmatpush1.msra.mxu0 0.0
        %3049 = vmatprep.subr.mxu0 0.0
        %3050 = vmatpush1.msra.mxu0 0.0
        %3051 = vmatprep.subr.mxu0 0.0
        %3052 = vmatpush1.msra.mxu0 0.0
        %3053 = vmatprep.subr.mxu0 0.0
        %3054 = vmatpush1.msra.mxu0 0.0
        %3055 = vmatprep.subr.mxu0 0.0
        %3056 = vmatpush1.msra.mxu0 0.0
        %3057 = vmatprep.subr.mxu0 0.0
        %3058 = vmatpush1.msra.mxu0 0.0
        %3059 = vmatprep.subr.mxu0 0.0
        %3060 = vmatpush1.msra.mxu0 0.0
        %3061 = vmatprep.subr.mxu0 0.0
        %3062 = vmatpush1.msra.mxu0 0.0
        %3063 = vmatprep.subr.mxu0 0.0
        %3064 = vmatpush1.msra.mxu0 0.0
        %3065 = vmatprep.subr.mxu0 0.0
        %3066 = vmatpush1.msra.mxu0 0.0
        %3067 = vmatprep.mubr.f32.mxu0 0.0
        %3068 = vmatmul.mubr.f32.gmra.mrb[0].mxu0 %v3001
        %v3069 = vpop.f32.mrb[0].mxu0
        %v3070 = vadd.f32 0.0, %v3069
        %v3071 = vpop.f32.mrb[0].mxu0
        %3072 = vdwg.mxu0
        %v3073 = vadd.f32 %v2832, %v3070
        %3074 = vrot.lane.b32.xlu0 %v2219, 104
        %v3075 = vpop.permute.xlu0 %3074
        %3076 = vrot.lane.b32.xlu0 %v2290, 104
        %v3077 = vpop.permute.xlu0 %3076
        %v3078 = vsel %vm1166, %v3075, 0
        %v3080 = vsel %vm1166, %v3077, 0
        %3082 = vmatprep.subr.mxu0 0.0
        %3083 = vmatpush1.xpose.msra.mxu0 %v3080
        %3084 = vmatprep.subr.mxu0 0.0
        %3085 = vmatpush1.xpose.msra.mxu0 0.0
        %3086 = vmatprep.subr.mxu0 0.0
        %3087 = vmatpush1.xpose.msra.mxu0 0.0
        %3088 = vmatprep.subr.mxu0 0.0
        %3089 = vmatpush1.xpose.msra.mxu0 0.0
        %3090 = vmatprep.subr.mxu0 0.0
        %3091 = vmatpush1.xpose.msra.mxu0 0.0
        %3092 = vmatprep.subr.mxu0 0.0
        %3093 = vmatpush1.xpose.msra.mxu0 0.0
        %3094 = vmatprep.subr.mxu0 0.0
        %3095 = vmatpush1.xpose.msra.mxu0 0.0
        %3096 = vmatprep.subr.mxu0 0.0
        %3097 = vmatpush1.xpose.msra.mxu0 0.0
        %3098 = vmatprep.subr.mxu0 0.0
        %3099 = vmatpush1.xpose.msra.mxu0 0.0
        %3100 = vmatprep.subr.mxu0 0.0
        %3101 = vmatpush1.xpose.msra.mxu0 0.0
        %3102 = vmatprep.subr.mxu0 0.0
        %3103 = vmatpush1.xpose.msra.mxu0 0.0
        %3104 = vmatprep.subr.mxu0 0.0
        %3105 = vmatpush1.xpose.msra.mxu0 0.0
        %3106 = vmatprep.subr.mxu0 0.0
        %3107 = vmatpush1.xpose.msra.mxu0 0.0
        %3108 = vmatprep.subr.mxu0 0.0
        %3109 = vmatpush1.xpose.msra.mxu0 0.0
        %3110 = vmatprep.subr.mxu0 0.0
        %3111 = vmatpush1.xpose.msra.mxu0 0.0
        %3112 = vmatprep.subr.mxu0 0.0
        %3113 = vmatpush1.xpose.msra.mxu0 0.0
        %3114 = vmatprep.subr.mxu0 0.0
        %3115 = vmatpush1.xpose.msra.mxu0 0.0
        %3116 = vmatprep.subr.mxu0 0.0
        %3117 = vmatpush1.xpose.msra.mxu0 0.0
        %3118 = vmatprep.subr.mxu0 0.0
        %3119 = vmatpush1.xpose.msra.mxu0 0.0
        %3120 = vmatprep.subr.mxu0 0.0
        %3121 = vmatpush1.xpose.msra.mxu0 0.0
        %3122 = vmatprep.subr.mxu0 0.0
        %3123 = vmatpush1.xpose.msra.mxu0 0.0
        %3124 = vmatprep.subr.mxu0 0.0
        %3125 = vmatpush1.xpose.msra.mxu0 0.0
        %3126 = vmatprep.subr.mxu0 0.0
        %3127 = vmatpush1.xpose.msra.mxu0 0.0
        %3128 = vmatprep.subr.mxu0 0.0
        %3129 = vmatpush1.xpose.msra.mxu0 0.0
        %3130 = vmatprep.subr.mxu0 0.0
        %3131 = vmatpush1.xpose.msra.mxu0 0.0
        %3132 = vmatprep.subr.mxu0 0.0
        %3133 = vmatpush1.xpose.msra.mxu0 0.0
        %3134 = vmatprep.subr.mxu0 0.0
        %3135 = vmatpush1.xpose.msra.mxu0 0.0
        %3136 = vmatprep.subr.mxu0 0.0
        %3137 = vmatpush1.xpose.msra.mxu0 0.0
        %3138 = vmatprep.subr.mxu0 0.0
        %3139 = vmatpush1.xpose.msra.mxu0 0.0
        %3140 = vmatprep.subr.mxu0 0.0
        %3141 = vmatpush1.xpose.msra.mxu0 0.0
        %3142 = vmatprep.subr.mxu0 0.0
        %3143 = vmatpush1.xpose.msra.mxu0 0.0
        %3144 = vmatprep.subr.mxu0 0.0
        %3145 = vmatpush1.xpose.msra.mxu0 0.0
        %3146 = vmatprep.mubr.f32.mxu0 0.0
        %3147 = vmatmul.mubr.f32.gmra.mrb[0].mxu0 %v3078
        %v3148 = vpop.f32.mrb[0].mxu0
        %v3149 = vadd.f32 %v895, %v3148
        %v3150 = vpop.f32.mrb[0].mxu0
        %3151 = vdwg.mxu0
        %v3152 = vsel %vm1166, %v3149, -inf
        %3153 = vmax.xlane.f32.xlu0 %v3152
        %v3154 = vpop.xlane.xlu0 %3153
        %v3155 = vsub.f32 %v3149, %v3154
        %v3156 = vmul.f32 %v3155, 1.442695
        %v3157 = vpow.pop %v3156
        %v3158 = vsel %vm1166, %v3157, 0.0
        %3159 = vadd.xlane.f32.xlu0 %v3158
        %v3160 = vpop.xlane.xlu0 %3159
        %v3161 = vrcp.pop %v3160
        %v3162 = vmul.f32 %v3157, %v3161
        %3163 = vrot.lane.b32.xlu0 %v2360, 104
        %v3164 = vpop.permute.xlu0 %3163
        %v3167 = vsel %vm1166, %v3162, 0
        %3169 = vmatprep.subr.mxu0 0.0
        %3170 = vmatpush1.msra.mxu0 %v3164
        %3171 = vmatprep.subr.mxu0 0.0
        %3172 = vmatpush1.msra.mxu0 0.0
        %3173 = vmatprep.subr.mxu0 0.0
        %3174 = vmatpush1.msra.mxu0 0.0
        %3175 = vmatprep.subr.mxu0 0.0
        %3176 = vmatpush1.msra.mxu0 0.0
        %3177 = vmatprep.subr.mxu0 0.0
        %3178 = vmatpush1.msra.mxu0 0.0
        %3179 = vmatprep.subr.mxu0 0.0
        %3180 = vmatpush1.msra.mxu0 0.0
        %3181 = vmatprep.subr.mxu0 0.0
        %3182 = vmatpush1.msra.mxu0 0.0
        %3183 = vmatprep.subr.mxu0 0.0
        %3184 = vmatpush1.msra.mxu0 0.0
        %3185 = vmatprep.subr.mxu0 0.0
        %3186 = vmatpush1.msra.mxu0 0.0
        %3187 = vmatprep.subr.mxu0 0.0
        %3188 = vmatpush1.msra.mxu0 0.0
        %3189 = vmatprep.subr.mxu0 0.0
        %3190 = vmatpush1.msra.mxu0 0.0
        %3191 = vmatprep.subr.mxu0 0.0
        %3192 = vmatpush1.msra.mxu0 0.0
        %3193 = vmatprep.subr.mxu0 0.0
        %3194 = vmatpush1.msra.mxu0 0.0
        %3195 = vmatprep.subr.mxu0 0.0
        %3196 = vmatpush1.msra.mxu0 0.0
        %3197 = vmatprep.subr.mxu0 0.0
        %3198 = vmatpush1.msra.mxu0 0.0
        %3199 = vmatprep.subr.mxu0 0.0
        %3200 = vmatpush1.msra.mxu0 0.0
        %3201 = vmatprep.subr.mxu0 0.0
        %3202 = vmatpush1.msra.mxu0 0.0
        %3203 = vmatprep.subr.mxu0 0.0
        %3204 = vmatpush1.msra.mxu0 0.0
        %3205 = vmatprep.subr.mxu0 0.0
        %3206 = vmatpush1.msra.mxu0 0.0
        %3207 = vmatprep.subr.mxu0 0.0
        %3208 = vmatpush1.msra.mxu0 0.0
        %3209 = vmatprep.subr.mxu0 0.0
        %3210 = vmatpush1.msra.mxu0 0.0
        %3211 = vmatprep.subr.mxu0 0.0
        %3212 = vmatpush1.msra.mxu0 0.0
        %3213 = vmatprep.subr.mxu0 0.0
        %3214 = vmatpush1.msra.mxu0 0.0
        %3215 = vmatprep.subr.mxu0 0.0
        %3216 = vmatpush1.msra.mxu0 0.0
        %3217 = vmatprep.subr.mxu0 0.0
        %3218 = vmatpush1.msra.mxu0 0.0
        %3219 = vmatprep.subr.mxu0 0.0
        %3220 = vmatpush1.msra.mxu0 0.0
        %3221 = vmatprep.subr.mxu0 0.0
        %3222 = vmatpush1.msra.mxu0 0.0
        %3223 = vmatprep.subr.mxu0 0.0
        %3224 = vmatpush1.msra.mxu0 0.0
        %3225 = vmatprep.subr.mxu0 0.0
        %3226 = vmatpush1.msra.mxu0 0.0
        %3227 = vmatprep.subr.mxu0 0.0
        %3228 = vmatpush1.msra.mxu0 0.0
        %3229 = vmatprep.subr.mxu0 0.0
        %3230 = vmatpush1.msra.mxu0 0.0
        %3231 = vmatprep.subr.mxu0 0.0
        %3232 = vmatpush1.msra.mxu0 0.0
        %3233 = vmatprep.mubr.f32.mxu0 0.0
        %3234 = vmatmul.mubr.f32.gmra.mrb[0].mxu0 %v3167
        %v3235 = vpop.f32.mrb[0].mxu0
        %v3236 = vadd.f32 0.0, %v3235
        %v3237 = vpop.f32.mrb[0].mxu0
        %3238 = vdwg.mxu0
        %v3240 = vsel %vm1166, %v3236, 0
        %3242 = vmatprep.subr.mxu0 0.0
        %3243 = vmatpush1.msra.mxu0 %v927
        %3244 = vmatprep.subr.mxu0 0.0
        %3245 = vmatpush1.msra.mxu0 0.0
        %3246 = vmatprep.subr.mxu0 0.0
        %3247 = vmatpush1.msra.mxu0 0.0
        %3248 = vmatprep.subr.mxu0 0.0
        %3249 = vmatpush1.msra.mxu0 0.0
        %3250 = vmatprep.subr.mxu0 0.0
        %3251 = vmatpush1.msra.mxu0 0.0
        %3252 = vmatprep.subr.mxu0 0.0
        %3253 = vmatpush1.msra.mxu0 0.0
        %3254 = vmatprep.subr.mxu0 0.0
        %3255 = vmatpush1.msra.mxu0 0.0
        %3256 = vmatprep.subr.mxu0 0.0
        %3257 = vmatpush1.msra.mxu0 0.0
        %3258 = vmatprep.subr.mxu0 0.0
        %3259 = vmatpush1.msra.mxu0 0.0
        %3260 = vmatprep.subr.mxu0 0.0
        %3261 = vmatpush1.msra.mxu0 0.0
        %3262 = vmatprep.subr.mxu0 0.0
        %3263 = vmatpush1.msra.mxu0 0.0
        %3264 = vmatprep.subr.mxu0 0.0
        %3265 = vmatpush1.msra.mxu0 0.0
        %3266 = vmatprep.subr.mxu0 0.0
        %3267 = vmatpush1.msra.mxu0 0.0
        %3268 = vmatprep.subr.mxu0 0.0
        %3269 = vmatpush1.msra.mxu0 0.0
        %3270 = vmatprep.subr.mxu0 0.0
        %3271 = vmatpush1.msra.mxu0 0.0
        %3272 = vmatprep.subr.mxu0 0.0
        %3273 = vmatpush1.msra.mxu0 0.0
        %3274 = vmatprep.subr.mxu0 0.0
        %3275 = vmatpush1.msra.mxu0 0.0
        %3276 = vmatprep.subr.mxu0 0.0
        %3277 = vmatpush1.msra.mxu0 0.0
        %3278 = vmatprep.subr.mxu0 0.0
        %3279 = vmatpush1.msra.mxu0 0.0
        %3280 = vmatprep.subr.mxu0 0.0
        %3281 = vmatpush1.msra.mxu0 0.0
        %3282 = vmatprep.subr.mxu0 0.0
        %3283 = vmatpush1.msra.mxu0 0.0
        %3284 = vmatprep.subr.mxu0 0.0
        %3285 = vmatpush1.msra.mxu0 0.0
        %3286 = vmatprep.subr.mxu0 0.0
        %3287 = vmatpush1.msra.mxu0 0.0
        %3288 = vmatprep.subr.mxu0 0.0
        %3289 = vmatpush1.msra.mxu0 0.0
        %3290 = vmatprep.subr.mxu0 0.0
        %3291 = vmatpush1.msra.mxu0 0.0
        %3292 = vmatprep.subr.mxu0 0.0
        %3293 = vmatpush1.msra.mxu0 0.0
        %3294 = vmatprep.subr.mxu0 0.0
        %3295 = vmatpush1.msra.mxu0 0.0
        %3296 = vmatprep.subr.mxu0 0.0
        %3297 = vmatpush1.msra.mxu0 0.0
        %3298 = vmatprep.subr.mxu0 0.0
        %3299 = vmatpush1.msra.mxu0 0.0
        %3300 = vmatprep.subr.mxu0 0.0
        %3301 = vmatpush1.msra.mxu0 0.0
        %3302 = vmatprep.subr.mxu0 0.0
        %3303 = vmatpush1.msra.mxu0 0.0
        %3304 = vmatprep.subr.mxu0 0.0
        %3305 = vmatpush1.msra.mxu0 0.0
        %3306 = vmatprep.mubr.f32.mxu0 0.0
        %3307 = vmatmul.mubr.f32.gmra.mrb[0].mxu0 %v3240
        %v3308 = vpop.f32.mrb[0].mxu0
        %v3309 = vadd.f32 0.0, %v3308
        %v3310 = vpop.f32.mrb[0].mxu0
        %3311 = vdwg.mxu0
        %v3312 = vadd.f32 %v3073, %v3309
        %v3313 = vadd.f32 %v2145, %v3312
        %v3314 = vsel %vm948, %v3313, 0.0
        %3315 = vadd.xlane.f32.xlu0 %v3314
        %v3316 = vpop.xlane.xlu0 %3315
        %v3317 = vmul.f32 %v3316, %v2121
        %v3318 = vsub.f32 %v3313, %v3317
        %v3319 = vmul.f32 %v3318, %v3318
        %v3320 = vsel %vm948, %v3319, 0.0
        %3321 = vadd.xlane.f32.xlu0 %v3320
        %v3322 = vpop.xlane.xlu0 %3321
        %v3323 = vmul.f32 %v3322, %v2121
        %v3324 = vadd.f32 %v3323, 1e-05
        %v3325 = vrsqrt.pop %v3324
        %v3326 = vmul.f32 %v3318, %v3325
        %v3328 = vlaneseq
        %v3329 = vshrl.u32 %v3328, 7
        %v3330 = vsub.s32 0, %v3329
        %v3331 = vrot.slane %v930, %v3330
        %v3333 = vmul.f32 %v3326, %v3331
        %v3335 = vlaneseq
        %v3336 = vshrl.u32 %v3335, 7
        %v3337 = vsub.s32 0, %v3336
        %v3338 = vrot.slane %v931, %v3337
        %v3340 = vadd.f32 %v3333, %v3338
        %v3342 = vlaneseq
        %v3343 = vshrl.u32 %v3342, 7
        %v3344 = vsub.s32 0, %v3343
        %v3345 = vrot.slane %v938, %v3344
        %v3348 = vsel %vm948, %v3340, 0
        %3350 = vmatprep.subr.mxu0 0.0
        %3351 = vmatpush1.msra.mxu0 %v934
        %3352 = vmatprep.subr.mxu0 0.0
        %3353 = vmatpush1.msra.mxu0 %v935
        %3354 = vmatprep.subr.mxu0 0.0
        %3355 = vmatpush1.msra.mxu0 %v936
        %3356 = vmatprep.subr.mxu0 0.0
        %3357 = vmatpush1.msra.mxu0 %v937
        %3358 = vmatprep.subr.mxu0 0.0
        %3359 = vmatpush1.msra.mxu0 0.0
        %3360 = vmatprep.subr.mxu0 0.0
        %3361 = vmatpush1.msra.mxu0 0.0
        %3362 = vmatprep.subr.mxu0 0.0
        %3363 = vmatpush1.msra.mxu0 0.0
        %3364 = vmatprep.subr.mxu0 0.0
        %3365 = vmatpush1.msra.mxu0 0.0
        %3366 = vmatprep.subr.mxu0 0.0
        %3367 = vmatpush1.msra.mxu0 0.0
        %3368 = vmatprep.subr.mxu0 0.0
        %3369 = vmatpush1.msra.mxu0 0.0
        %3370 = vmatprep.subr.mxu0 0.0
        %3371 = vmatpush1.msra.mxu0 0.0
        %3372 = vmatprep.subr.mxu0 0.0
        %3373 = vmatpush1.msra.mxu0 0.0
        %3374 = vmatprep.subr.mxu0 0.0
        %3375 = vmatpush1.msra.mxu0 0.0
        %3376 = vmatprep.subr.mxu0 0.0
        %3377 = vmatpush1.msra.mxu0 0.0
        %3378 = vmatprep.subr.mxu0 0.0
        %3379 = vmatpush1.msra.mxu0 0.0
        %3380 = vmatprep.subr.mxu0 0.0
        %3381 = vmatpush1.msra.mxu0 0.0
        %3382 = vmatprep.subr.mxu0 0.0
        %3383 = vmatpush1.msra.mxu0 0.0
        %3384 = vmatprep.subr.mxu0 0.0
        %3385 = vmatpush1.msra.mxu0 0.0
        %3386 = vmatprep.subr.mxu0 0.0
        %3387 = vmatpush1.msra.mxu0 0.0
        %3388 = vmatprep.subr.mxu0 0.0
        %3389 = vmatpush1.msra.mxu0 0.0
        %3390 = vmatprep.subr.mxu0 0.0
        %3391 = vmatpush1.msra.mxu0 0.0
        %3392 = vmatprep.subr.mxu0 0.0
        %3393 = vmatpush1.msra.mxu0 0.0
        %3394 = vmatprep.subr.mxu0 0.0
        %3395 = vmatpush1.msra.mxu0 0.0
        %3396 = vmatprep.subr.mxu0 0.0
        %3397 = vmatpush1.msra.mxu0 0.0
        %3398 = vmatprep.subr.mxu0 0.0
        %3399 = vmatpush1.msra.mxu0 0.0
        %3400 = vmatprep.subr.mxu0 0.0
        %3401 = vmatpush1.msra.mxu0 0.0
        %3402 = vmatprep.subr.mxu0 0.0
        %3403 = vmatpush1.msra.mxu0 0.0
        %3404 = vmatprep.subr.mxu0 0.0
        %3405 = vmatpush1.msra.mxu0 0.0
        %3406 = vmatprep.subr.mxu0 0.0
        %3407 = vmatpush1.msra.mxu0 0.0
        %3408 = vmatprep.subr.mxu0 0.0
        %3409 = vmatpush1.msra.mxu0 0.0
        %3410 = vmatprep.subr.mxu0 0.0
        %3411 = vmatpush1.msra.mxu0 0.0
        %3412 = vmatprep.subr.mxu0 0.0
        %3413 = vmatpush1.msra.mxu0 0.0
        %3414 = vmatprep.mubr.f32.mxu0 0.0
        %3415 = vmatmul.mubr.f32.gmra.mrb[0].mxu0 %v3348
        %v3416 = vpop.f32.mrb[0].mxu0
        %v3417 = vadd.f32 %v3345, %v3416
        %v3418 = vpop.f32.mrb[0].mxu0
        %3419 = vdwg.mxu0
        %v3420 = vmax.f32 %v3417, 0.0
        %v3422 = vlaneseq
        %v3423 = vshrl.u32 %v3422, 7
        %v3424 = vsub.s32 0, %v3423
        %v3425 = vrot.slane %v947, %v3424
        %vm3427 = vcmask 523264
        %v3429 = vsel %vm3427, %v3420, 0
        %3431 = vmatprep.subr.mxu0 0.0
        %3432 = vmatpush1.msra.mxu0 %v939
        %3433 = vmatprep.subr.mxu0 0.0
        %3434 = vmatpush1.msra.mxu0 %v940
        %3435 = vmatprep.subr.mxu0 0.0
        %3436 = vmatpush1.msra.mxu0 %v941
        %3437 = vmatprep.subr.mxu0 0.0
        %3438 = vmatpush1.msra.mxu0 %v942
        %3439 = vmatprep.subr.mxu0 0.0
        %3440 = vmatpush1.msra.mxu0 %v943
        %3441 = vmatprep.subr.mxu0 0.0
        %3442 = vmatpush1.msra.mxu0 %v944
        %3443 = vmatprep.subr.mxu0 0.0
        %3444 = vmatpush1.msra.mxu0 %v945
        %3445 = vmatprep.subr.mxu0 0.0
        %3446 = vmatpush1.msra.mxu0 %v946
        %3447 = vmatprep.subr.mxu0 0.0
        %3448 = vmatpush1.msra.mxu0 0.0
        %3449 = vmatprep.subr.mxu0 0.0
        %3450 = vmatpush1.msra.mxu0 0.0
        %3451 = vmatprep.subr.mxu0 0.0
        %3452 = vmatpush1.msra.mxu0 0.0
        %3453 = vmatprep.subr.mxu0 0.0
        %3454 = vmatpush1.msra.mxu0 0.0
        %3455 = vmatprep.subr.mxu0 0.0
        %3456 = vmatpush1.msra.mxu0 0.0
        %3457 = vmatprep.subr.mxu0 0.0
        %3458 = vmatpush1.msra.mxu0 0.0
        %3459 = vmatprep.subr.mxu0 0.0
        %3460 = vmatpush1.msra.mxu0 0.0
        %3461 = vmatprep.subr.mxu0 0.0
        %3462 = vmatpush1.msra.mxu0 0.0
        %3463 = vmatprep.subr.mxu0 0.0
        %3464 = vmatpush1.msra.mxu0 0.0
        %3465 = vmatprep.subr.mxu0 0.0
        %3466 = vmatpush1.msra.mxu0 0.0
        %3467 = vmatprep.subr.mxu0 0.0
        %3468 = vmatpush1.msra.mxu0 0.0
        %3469 = vmatprep.subr.mxu0 0.0
        %3470 = vmatpush1.msra.mxu0 0.0
        %3471 = vmatprep.subr.mxu0 0.0
        %3472 = vmatpush1.msra.mxu0 0.0
        %3473 = vmatprep.subr.mxu0 0.0
        %3474 = vmatpush1.msra.mxu0 0.0
        %3475 = vmatprep.subr.mxu0 0.0
        %3476 = vmatpush1.msra.mxu0 0.0
        %3477 = vmatprep.subr.mxu0 0.0
        %3478 = vmatpush1.msra.mxu0 0.0
        %3479 = vmatprep.subr.mxu0 0.0
        %3480 = vmatpush1.msra.mxu0 0.0
        %3481 = vmatprep.subr.mxu0 0.0
        %3482 = vmatpush1.msra.mxu0 0.0
        %3483 = vmatprep.subr.mxu0 0.0
        %3484 = vmatpush1.msra.mxu0 0.0
        %3485 = vmatprep.subr.mxu0 0.0
        %3486 = vmatpush1.msra.mxu0 0.0
        %3487 = vmatprep.subr.mxu0 0.0
        %3488 = vmatpush1.msra.mxu0 0.0
        %3489 = vmatprep.subr.mxu0 0.0
        %3490 = vmatpush1.msra.mxu0 0.0
        %3491 = vmatprep.subr.mxu0 0.0
        %3492 = vmatpush1.msra.mxu0 0.0
        %3493 = vmatprep.subr.mxu0 0.0
        %3494 = vmatpush1.msra.mxu0 0.0
        %3495 = vmatprep.mubr.f32.mxu0 0.0
        %3496 = vmatmul.mubr.f32.gmra.mrb[0].mxu0 %v3429
        %v3497 = vpop.f32.mrb[0].mxu0
        %v3498 = vadd.f32 %v3425, %v3497
        %v3499 = vpop.f32.mrb[0].mxu0
        %3500 = vdwg.mxu0
        %v3501 = vadd.f32 %v3340, %v3498
        %v3502 = vsel %vm948, %v3501, 0.0
        %3503 = vadd.xlane.f32.xlu0 %v3502
        %v3504 = vpop.xlane.xlu0 %3503
        %v3505 = vmul.f32 %v3504, %v2121
        %v3506 = vsub.f32 %v3501, %v3505
        %v3507 = vmul.f32 %v3506, %v3506
        %v3508 = vsel %vm948, %v3507, 0.0
        %3509 = vadd.xlane.f32.xlu0 %v3508
        %v3510 = vpop.xlane.xlu0 %3509
        %v3511 = vmul.f32 %v3510, %v2121
        %v3512 = vadd.f32 %v3511, 1e-05
        %v3513 = vrsqrt.pop %v3512
        %v3514 = vmul.f32 %v3506, %v3513
        %v3516 = vlaneseq
        %v3517 = vshrl.u32 %v3516, 7
        %v3518 = vsub.s32 0, %v3517
        %v3519 = vrot.slane %v932, %v3518
        %v3521 = vmul.f32 %v3514, %v3519
        %v3523 = vlaneseq
        %v3524 = vshrl.u32 %v3523, 7
        %v3525 = vsub.s32 0, %v3524
        %v3526 = vrot.slane %v933, %v3525
        %v3528 = vadd.f32 %v3521, %v3526
        %3529 = vst.msk [vmem:[%s882] sm:$0xff] %vm948, %v3528
        %s3530 = sand.u32 %s515, 1
        %s3531 = scalar_lea.sflag [#allocation6], %s3530
        %s3532 = sand.u32 %s515, 1
        %s3533 = smul.addr %s3532, 8
        %s3534 = scalar_lea.vmem [#allocation25], %s3533
        // Predicated region
        $region157: #{tpu_custom_call.1} parent=103 // pred_check
          %p3535 = pneg %p525
        $region158: #{tpu_custom_call.1} parent=103 // pred_check_branch
          %3537 = sbr.rel (%p3535) target = $region160
        $region159: #{tpu_custom_call.1} parent=103 // pred_region
          %s3539 = ssub.s32 128, 128
          %3540 = vsyncadd %s3531, %s3539
          %s3541 = smul.addr %s51, 128
          %s3542 = scalar_lea.hbm %s22, %s3541
          %s3544 = sshll.u32 %s3534, 4
          %s3545 = int_to_ptr.vmem [resolvable:$true] %s3544
          %3547 = dma.vmem_to_hbm [thread:$0]  %s3545, 128, %s3542, %s3531
        $region160: #{tpu_custom_call.1} parent=103 // pred_fallthru
          _
      $region104: #{tpu_custom_call.1} parent=5 // pred_fallthru
        _
      %p3548 = scmp.le.s32.totalorder 2, %s46
      // Predicated region
      $region161: #{tpu_custom_call.1} parent=5 // pred_check
        %p3549 = pneg %p3548
      $region162: #{tpu_custom_call.1} parent=5 // pred_check_branch
        %3551 = sbr.rel (%p3549) target = $region164
      $region163: #{tpu_custom_call.1} parent=5 // pred_region
        %s3552 = ssub.s32 %s46, 2
        // Predicated region
        $region165: #{tpu_custom_call.1} parent=163 // pred_check
          %p3553 = pneg %p531
        $region166: #{tpu_custom_call.1} parent=163 // pred_check_branch
          %3555 = sbr.rel (%p3553) target = $region168
        $region167: #{tpu_custom_call.1} parent=163 // pred_region
          %s3556 = sand.u32 %s516, 1
          %s3557 = scalar_lea.sflag [#allocation6], %s3556
          %s3558 = sand.u32 %s516, 1
          %s3559 = smul.addr %s3558, 8
          %s3560 = scalar_lea.vmem [#allocation25], %s3559
          %3561 = dma.done %s3557, 128
        $region168: #{tpu_custom_call.1} parent=163 // pred_fallthru
          _
      $region164: #{tpu_custom_call.1} parent=5 // pred_fallthru
        _
    $region6: #{tpu_custom_call.1} parent=1 // loop_footer
      %s50 = sadd.s32 1, %s46
    $region7: #{tpu_custom_call.1} parent=1 // loop_footer_branch
      %45 = sbr.rel target = $region3
    $region8: #{tpu_custom_call.1} parent=1 // loop_exit
      _
    %3562 = vsyncpa [#allocation5], 1
    %s3563 = scalar_lea.sflag [#allocation5], 1
    %3564 = vsyncpa %s3563, 1
    %3565 = vsyncpa [#allocation8], 1
    %s3566 = scalar_lea.sflag [#allocation8], 1
    %3567 = vsyncpa %s3566, 1
    %3568 = vsyncpa [#allocation11], 1
    %3569 = vsyncpa [#allocation14], 1
    %3570 = vsyncpa [#allocation17], 1
    %3571 = vsyncpa [#allocation20], 1
    %3572 = vsyncpa [#allocation23], 1
    %3573 = vsyncpa [#allocation6], 1
    %s3574 = scalar_lea.sflag [#allocation6], 1
    %3575 = vsyncpa %s3574, 1

</llo_original>
